<compile_context>
chip_gen: v6e
topology: v6e:2x2x1
jax: 0.10.0
libtpu: 0.0.40
codegen_flags: <defaults>
</compile_context>

<pallas_src>
import jax
import jax.numpy as jnp
from jax.experimental import pallas as pl
from jax.experimental.pallas import tpu as pltpu


# ------------------------------ head / layout constants ------------------------------

HEAD_NAMES = ["pe", "npe", "idt", "lpe", "rpe", "cpe", "gte", "lt",
              "chronic", "acute_and_chronic"]
HEAD_DIMS = [512] + [1] * 9                     # last_linear_pe: 512, others: 1
H_TOTAL = sum(HEAD_DIMS)                        # 521
H_PAD = ((H_TOTAL + 127) // 128) * 128          # 640 -> lane-dense output slab

# order of packed weight operands handed to the kernel
_W_ORDER = ["wkv_big", "wq_big", "wq_hid", "wkv_hid", "wo_all",
            "bq_all", "bkv_all", "bo_all", "inds", "seeds",
            "dec_w", "dec_b", "att_w", "att_b",
            "head_w_max", "head_w_att", "head_b"]


# ------------------------------ parameter init (packed) ------------------------------

def init_params(key, *, d_in, d_hid, n_inds, n_seeds, d_out):
    keys = iter(jax.random.split(key, 32))

    def nrm(shape, scale=0.05, dtype=jnp.float32):
        return (scale * jax.random.normal(next(keys), shape, jnp.float32)).astype(dtype)

    bf = jnp.bfloat16
    # MAB order used everywhere: [isab1_mab0, isab1_mab1, isab2_mab0, isab2_mab1, pma_mab]
    p = {
        "wkv_big": nrm((d_in, 2 * d_hid), dtype=bf),      # isab1_mab0 fused K/V proj (big-K)
        "wq_big":  nrm((d_in, d_hid), dtype=bf),          # isab1_mab1 Q proj (big-K)
        "wq_hid":  nrm((4, d_hid, d_hid), dtype=bf),      # Q proj of mabs [0, 2, 3, 4]
        "wkv_hid": nrm((4, d_hid, 2 * d_hid), dtype=bf),  # fused K/V proj of mabs [1, 2, 3, 4]
        "wo_all":  nrm((5, d_hid, d_hid), dtype=bf),      # output proj of all 5 mabs
        "bq_all":  jnp.zeros((5, 1, d_hid), jnp.float32),
        "bkv_all": jnp.zeros((5, 1, 2 * d_hid), jnp.float32),
        "bo_all":  jnp.zeros((5, 1, d_hid), jnp.float32),
        "inds":    nrm((2, n_inds, d_hid)),               # ISAB1.I, ISAB2.I
        "seeds":   nrm((n_seeds, d_hid)),                 # PMA seeds S
        "dec_w":   nrm((d_hid, d_out), dtype=bf),
        "dec_b":   jnp.zeros((1, d_out), jnp.float32),
        "att_w":   nrm((1, d_out)),                       # Attention weight (row form)
        "att_b":   jnp.zeros((1, n_seeds), jnp.float32),
    }

    # 10 classification heads fused once at init and padded to a lane multiple:
    #   concat([max_pool, att_pool]) @ W == max_pool @ W_top + att_pool @ W_bot
    w_all = nrm((2 * d_out, H_TOTAL))
    b_all = jnp.zeros((1, H_TOTAL), jnp.float32)
    w_all = jnp.pad(w_all, ((0, 0), (0, H_PAD - H_TOTAL)))
    b_all = jnp.pad(b_all, ((0, 0), (0, H_PAD - H_TOTAL)))
    p["head_w_max"] = w_all[:d_out].astype(bf)            # rows applied to max_pool
    p["head_w_att"] = w_all[d_out:].astype(bf)            # rows applied to att_pool
    p["head_b"] = b_all
    return p


# --------------------------------- the fused kernel ---------------------------------

def _penet_kernel(x_ref, mask_ref,
                  wkv_big_ref, wq_big_ref, wq_hid_ref, wkv_hid_ref, wo_ref,
                  bq_ref, bkv_ref, bo_ref, inds_ref, seeds_ref,
                  dec_w_ref, dec_b_ref, att_w_ref, att_b_ref,
                  wh_max_ref, wh_att_ref, bh_ref,
                  logits_ref, flag_ref):
    bt, n_set, _ = x_ref.shape
    x = x_ref[...]                                    # (Bt, N, d_in) bf16

    def mm(a, w):
        # bf16 operands on the MXU, f32 accumulation.
        return jnp.dot(a.astype(w.dtype), w, preferred_element_type=jnp.float32)

    def mab(q_in, k_in, idx, wq, wkv, q_shared):
        """MAB(Q, K), num_heads=1, ln=False.  k_in: (Bt, Mk, dk).
        q_in: (Mq, dq) when the query set is shared across the batch
        (inducing points / PMA seeds, projected once), else (Bt, Mq, dq)."""
        dv = wq.shape[-1]
        bq, bkv, bo = bq_ref[idx], bkv_ref[idx], bo_ref[idx]     # (1, dv) / (1, 2dv) / (1, dv)
        wo = wo_ref[idx]                                          # (dv, dv)

        mk = k_in.shape[1]
        if q_shared:
            mq = q_in.shape[0]
            q = mm(q_in, wq) + bq                                 # (Mq, dv), shared
            q_b = jnp.broadcast_to(q[None], (bt, mq, dv))
        else:
            mq = q_in.shape[1]
            q = mm(q_in.reshape(bt * mq, -1), wq) + bq            # batch folded into M
            q_b = q.reshape(bt, mq, dv)

        kv = mm(k_in.reshape(bt * mk, -1), wkv) + bkv             # fused K/V, batch in M
        kv_b = kv.reshape(bt, mk, 2 * dv)
        k_b, v_b = kv_b[:, :, :dv], kv_b[:, :, dv:]

        s = jnp.einsum('bqd,bkd->bqk', q_b, k_b,
                       preferred_element_type=jnp.float32) * (1.0 / float(dv) ** 0.5)
        s = s - jnp.max(s, axis=-1, keepdims=True)
        p = jnp.exp(s)
        p = p * pl.reciprocal(jnp.sum(p, axis=-1, keepdims=True), approx=True)

        o = q_b + jnp.einsum('bqk,bkd->bqd', p, v_b,
                             preferred_element_type=jnp.float32)
        o2 = o.reshape(bt * mq, dv)
        o2 = o2 + jax.nn.relu(mm(o2, wo) + bo)
        return o2.reshape(bt, mq, dv)

    i1 = inds_ref[0]                                  # (n_inds, d_hid)
    i2 = inds_ref[1]
    seeds = seeds_ref[...]                            # (n_seeds, d_hid)
    n_seeds, d_hid = seeds.shape
    d_out = dec_w_ref.shape[-1]

    # ---- SetTransformer encoder: ISAB(d_in->d_hid) then ISAB(d_hid->d_hid) ----
    # TODO(synk): on v7x at the real 6144-K shapes, stream wkv_big / wq_big with a
    # K-tiled pltpu.emit_pipeline instead of keeping them fully resident.
    h1 = mab(i1, x, 0, wq_hid_ref[0], wkv_big_ref[...], q_shared=True)    # (Bt, n_inds, d_hid)
    z1 = mab(x, h1, 1, wq_big_ref[...], wkv_hid_ref[0], q_shared=False)   # (Bt, N,      d_hid)
    h2 = mab(i2, z1, 2, wq_hid_ref[1], wkv_hid_ref[1], q_shared=True)     # (Bt, n_inds, d_hid)
    z2 = mab(z1, h2, 3, wq_hid_ref[2], wkv_hid_ref[2], q_shared=False)    # (Bt, N,      d_hid)

    # ---- decoder: Dropout(id) -> PMA -> Dropout(id) -> Linear(d_hid, d_out) ----
    pma = mab(seeds, z2, 4, wq_hid_ref[3], wkv_hid_ref[3], q_shared=True)  # (Bt, n_seeds, d_hid)
    tok = (mm(pma.reshape(bt * n_seeds, d_hid), dec_w_ref[...]) + dec_b_ref[...]
           ).reshape(bt, n_seeds, d_out)              # == h_lstm1 block

    # ---- NaN-guard flag (replaces the full h_lstm1 device->host readback) ----
    isn = jnp.isnan(tok).astype(jnp.float32)
    f = jnp.max(isn, axis=2, keepdims=True)
    f = jnp.max(f, axis=1, keepdims=True)
    flag_ref[...] = jnp.max(f, axis=0, keepdims=True)  # (1, 1, 1)

    # ---- max-pool + Attention pool (contractions on the MXU) ----
    max_pool = jnp.max(tok, axis=1)                   # (Bt, d_out)

    att_w_b = jnp.broadcast_to(att_w_ref[...][None], (bt, 1, d_out))
    eij = jnp.tanh(jnp.einsum('bod,bkd->bok', att_w_b, tok,
                              preferred_element_type=jnp.float32)
                   + att_b_ref[...][None])            # (Bt, 1, n_seeds)
    a = jnp.exp(eij) * mask_ref[...]                  # mask: (Bt, 1, n_seeds)
    # reference: a = a / sum(a, 1) + 1e-10  (epsilon added AFTER the divide)
    a = a * pl.reciprocal(jnp.sum(a, axis=-1, keepdims=True), approx=True) + 1e-10
    att_pool = jnp.einsum('bqk,bkd->bqd', a, tok,
                          preferred_element_type=jnp.float32).reshape(bt, d_out)

    # ---- 10 classification heads, fused at init + lane-padded to H_PAD ----
    logits = (mm(max_pool, wh_max_ref[...]) + mm(att_pool, wh_att_ref[...])
              + bh_ref[...])                          # (Bt, H_PAD)
    logits_ref[...] = logits.reshape(bt, 1, H_PAD)


# ------------------------------------- forward --------------------------------------

def penet_settransformer_forward(params, x, mask, *, block_b=2, check_nan=True):
    """Mirrors PENet_SetTransformer_v2.forward(x, mask); returns the 10 head logits."""
    B, n_set, d_in = x.shape
    n_seeds = params["att_b"].shape[-1]

    bt = max(1, min(block_b, B))                      # samples per grid step
    nb = -(-B // bt)
    b_pad = nb * bt
    mask = jnp.asarray(mask, jnp.float32)
    if b_pad != B:
        x = jnp.pad(x, ((0, b_pad - B), (0, 0), (0, 0)))
        mask = jnp.pad(mask, ((0, b_pad - B), (0, 0)), constant_values=1.0)
    x = x.astype(jnp.bfloat16)                        # halves activation HBM traffic
    mask3 = mask.reshape(b_pad, 1, n_seeds)

    ws = [params[k] for k in _W_ORDER]

    def wspec(a):
        # Whole weight resident in VMEM, same block every step; single buffer
        # (constant index_map -> never re-fetched) keeps residency at 1x.
        kwargs = {}
        if hasattr(pl, "Buffered"):
            kwargs["pipeline_mode"] = pl.Buffered(1)
        return pl.BlockSpec(a.shape, lambda b, _z=(0,) * a.ndim: _z, **kwargs)

    logits_pad, nan_flag = pl.pallas_call(
        _penet_kernel,
        grid=(nb,),
        in_specs=[pl.BlockSpec((bt, n_set, d_in), lambda b: (b, 0, 0)),
                  pl.BlockSpec((bt, 1, n_seeds), lambda b: (b, 0, 0))]
                 + [wspec(a) for a in ws],
        out_specs=[pl.BlockSpec((bt, 1, H_PAD), lambda b: (b, 0, 0)),
                   pl.BlockSpec((1, 1, 1), lambda b: (b, 0, 0))],
        out_shape=(jax.ShapeDtypeStruct((b_pad, 1, H_PAD), jnp.float32),
                   jax.ShapeDtypeStruct((nb, 1, 1), jnp.float32)),
        compiler_params=pltpu.CompilerParams(
            dimension_semantics=("parallel",),
            vmem_limit_bytes=64 * 1024 * 1024),
    )(x, mask3, *ws)

    if check_nan:
        # Reference: torch.any(torch.isnan(h_lstm1)).item() -> print + exit.
        # Only a tiny (nb,) flag crosses device->host here.
        # TODO(synk): this host sync mirrors the reference but is non-jittable;
        # pass check_nan=False when wrapping the forward in jax.jit.
        if bool(jnp.any(nan_flag > 0.0)):
            print('[INFO] h_lstm1 contains nan element!!')
            raise SystemExit(1)

    logits = logits_pad.reshape(b_pad, H_PAD)[:B, :H_TOTAL]
    outs, off = [], 0
    for odim in HEAD_DIMS:
        outs.append(logits[:, off:off + odim])
        off += odim
    # (logits_pe, logits_npe, logits_idt, logits_lpe, logits_rpe, logits_cpe,
    #  logits_gte, logits_lt, logits_chronic, logits_acute_and_chronic)
    return tuple(outs)


# -------------------------------------- main -----------------------------------------

if __name__ == "__main__":
    # Small demo shapes consistent with the module (reference values in parens):
    B, N = 4, 8              # batch, set size
    D_IN = 32                # dim_input   (6144)
    D_HID = 32               # dim_hidden  (512)
    NUM_INDS = 8             # num_inds    (32)
    NUM_SEEDS = 16           # num_outputs (512) == Attention step_dim
    D_OUT = 32               # dim_output  (768) == Attention feature_dim

    key = jax.random.PRNGKey(0)
    kx, kp = jax.random.split(key)
    x = jax.random.normal(kx, (B, N, D_IN), dtype=jnp.float32)
    mask = jnp.ones((B, NUM_SEEDS), dtype=jnp.float32)

    params = init_params(kp, d_in=D_IN, d_hid=D_HID, n_inds=NUM_INDS,
                         n_seeds=NUM_SEEDS, d_out=D_OUT)

    outs = penet_settransformer_forward(params, x, mask, block_b=2)
    outs = jax.block_until_ready(outs)

    assert outs[0].shape == (B, 512)
    assert all(o.shape == (B, 1) for o in outs[1:])
    assert not any(bool(jnp.any(jnp.isnan(o))) for o in outs)

    print("KERNEL_OK")
</pallas_src>

<mosaic_0001>
module attributes {stable_mosaic.version = 11 : i64} {
  func.func @_penet_kernel(%arg0: i32, %arg1: memref<2x8x32xbf16, #tpu.memory_space<vmem>>, %arg2: memref<2x1x16xf32, #tpu.memory_space<vmem>>, %arg3: memref<32x64xbf16, #tpu.memory_space<vmem>>, %arg4: memref<32x32xbf16, #tpu.memory_space<vmem>>, %arg5: memref<4x32x32xbf16, #tpu.memory_space<vmem>>, %arg6: memref<4x32x64xbf16, #tpu.memory_space<vmem>>, %arg7: memref<5x32x32xbf16, #tpu.memory_space<vmem>>, %arg8: memref<5x1x32xf32, #tpu.memory_space<vmem>>, %arg9: memref<5x1x64xf32, #tpu.memory_space<vmem>>, %arg10: memref<5x1x32xf32, #tpu.memory_space<vmem>>, %arg11: memref<2x8x32xf32, #tpu.memory_space<vmem>>, %arg12: memref<16x32xf32, #tpu.memory_space<vmem>>, %arg13: memref<32x32xbf16, #tpu.memory_space<vmem>>, %arg14: memref<1x32xf32, #tpu.memory_space<vmem>>, %arg15: memref<1x32xf32, #tpu.memory_space<vmem>>, %arg16: memref<1x16xf32, #tpu.memory_space<vmem>>, %arg17: memref<32x640xbf16, #tpu.memory_space<vmem>>, %arg18: memref<32x640xbf16, #tpu.memory_space<vmem>>, %arg19: memref<1x640xf32, #tpu.memory_space<vmem>>, %arg20: memref<2x1x640xf32, #tpu.memory_space<vmem>>, %arg21: memref<1x1x1xf32, #tpu.memory_space<vmem>>) attributes {dimension_semantics = [#tpu.dimension_semantics<parallel>], iteration_bounds = array<i64: 2>, scalar_prefetch = 0 : i64, scratch_operands = 0 : i64, tpu.core_type = #tpu.core_type<tc>, window_params = [{transform_indices = @transform_0, window_bounds = array<i64: 2, 8, 32>}, {transform_indices = @transform_1, window_bounds = array<i64: 2, 1, 16>}, {pipeline_mode = #tpu.pipeline_mode<synchronous>, transform_indices = @transform_2, window_bounds = array<i64: 32, 64>}, {pipeline_mode = #tpu.pipeline_mode<synchronous>, transform_indices = @transform_3, window_bounds = array<i64: 32, 32>}, {pipeline_mode = #tpu.pipeline_mode<synchronous>, transform_indices = @transform_4, window_bounds = array<i64: 4, 32, 32>}, {pipeline_mode = #tpu.pipeline_mode<synchronous>, transform_indices = @transform_5, window_bounds = array<i64: 4, 32, 64>}, {pipeline_mode = #tpu.pipeline_mode<synchronous>, transform_indices = @transform_6, window_bounds = array<i64: 5, 32, 32>}, {pipeline_mode = #tpu.pipeline_mode<synchronous>, transform_indices = @transform_7, window_bounds = array<i64: 5, 1, 32>}, {pipeline_mode = #tpu.pipeline_mode<synchronous>, transform_indices = @transform_8, window_bounds = array<i64: 5, 1, 64>}, {pipeline_mode = #tpu.pipeline_mode<synchronous>, transform_indices = @transform_9, window_bounds = array<i64: 5, 1, 32>}, {pipeline_mode = #tpu.pipeline_mode<synchronous>, transform_indices = @transform_10, window_bounds = array<i64: 2, 8, 32>}, {pipeline_mode = #tpu.pipeline_mode<synchronous>, transform_indices = @transform_11, window_bounds = array<i64: 16, 32>}, {pipeline_mode = #tpu.pipeline_mode<synchronous>, transform_indices = @transform_12, window_bounds = array<i64: 32, 32>}, {pipeline_mode = #tpu.pipeline_mode<synchronous>, transform_indices = @transform_13, window_bounds = array<i64: 1, 32>}, {pipeline_mode = #tpu.pipeline_mode<synchronous>, transform_indices = @transform_14, window_bounds = array<i64: 1, 32>}, {pipeline_mode = #tpu.pipeline_mode<synchronous>, transform_indices = @transform_15, window_bounds = array<i64: 1, 16>}, {pipeline_mode = #tpu.pipeline_mode<synchronous>, transform_indices = @transform_16, window_bounds = array<i64: 32, 640>}, {pipeline_mode = #tpu.pipeline_mode<synchronous>, transform_indices = @transform_17, window_bounds = array<i64: 32, 640>}, {pipeline_mode = #tpu.pipeline_mode<synchronous>, transform_indices = @transform_18, window_bounds = array<i64: 1, 640>}, {transform_indices = @transform_19, window_bounds = array<i64: 2, 1, 640>}, {transform_indices = @transform_20, window_bounds = array<i64: 1, 1, 1>}]} {
    %c0 = arith.constant 0 : index
    %c0_0 = arith.constant 0 : index
    %c0_1 = arith.constant 0 : index
    %0 = vector.load %arg1[%c0, %c0_0, %c0_1] : memref<2x8x32xbf16, #tpu.memory_space<vmem>>, vector<2x8x32xbf16>
    %c0_2 = arith.constant 0 : index
    %c0_3 = arith.constant 0 : index
    %c0_4 = arith.constant 0 : index
    %1 = vector.load %arg11[%c0_2, %c0_3, %c0_4] : memref<2x8x32xf32, #tpu.memory_space<vmem>>, vector<1x8x32xf32>
    %2 = vector.shape_cast %1 : vector<1x8x32xf32> to vector<8x32xf32>
    %c1 = arith.constant 1 : index
    %c0_5 = arith.constant 0 : index
    %c0_6 = arith.constant 0 : index
    %3 = vector.load %arg11[%c1, %c0_5, %c0_6] : memref<2x8x32xf32, #tpu.memory_space<vmem>>, vector<1x8x32xf32>
    %4 = vector.shape_cast %3 : vector<1x8x32xf32> to vector<8x32xf32>
    %c0_7 = arith.constant 0 : index
    %c0_8 = arith.constant 0 : index
    %5 = vector.load %arg12[%c0_7, %c0_8] : memref<16x32xf32, #tpu.memory_space<vmem>>, vector<16x32xf32>
    %c0_9 = arith.constant 0 : index
    %c0_10 = arith.constant 0 : index
    %c0_11 = arith.constant 0 : index
    %6 = vector.load %arg5[%c0_9, %c0_10, %c0_11] : memref<4x32x32xbf16, #tpu.memory_space<vmem>>, vector<1x32x32xbf16>
    %7 = vector.shape_cast %6 : vector<1x32x32xbf16> to vector<32x32xbf16>
    %c0_12 = arith.constant 0 : index
    %c0_13 = arith.constant 0 : index
    %8 = vector.load %arg3[%c0_12, %c0_13] : memref<32x64xbf16, #tpu.memory_space<vmem>>, vector<32x64xbf16>
    %c0_14 = arith.constant 0 : index
    %c0_15 = arith.constant 0 : index
    %c0_16 = arith.constant 0 : index
    %9 = vector.load %arg8[%c0_14, %c0_15, %c0_16] : memref<5x1x32xf32, #tpu.memory_space<vmem>>, vector<1x1x32xf32>
    %10 = vector.shape_cast %9 : vector<1x1x32xf32> to vector<1x32xf32>
    %c0_17 = arith.constant 0 : index
    %c0_18 = arith.constant 0 : index
    %c0_19 = arith.constant 0 : index
    %11 = vector.load %arg9[%c0_17, %c0_18, %c0_19] : memref<5x1x64xf32, #tpu.memory_space<vmem>>, vector<1x1x64xf32>
    %12 = vector.shape_cast %11 : vector<1x1x64xf32> to vector<1x64xf32>
    %c0_20 = arith.constant 0 : index
    %c0_21 = arith.constant 0 : index
    %c0_22 = arith.constant 0 : index
    %13 = vector.load %arg10[%c0_20, %c0_21, %c0_22] : memref<5x1x32xf32, #tpu.memory_space<vmem>>, vector<1x1x32xf32>
    %14 = vector.shape_cast %13 : vector<1x1x32xf32> to vector<1x32xf32>
    %c0_23 = arith.constant 0 : index
    %c0_24 = arith.constant 0 : index
    %c0_25 = arith.constant 0 : index
    %15 = vector.load %arg7[%c0_23, %c0_24, %c0_25] : memref<5x32x32xbf16, #tpu.memory_space<vmem>>, vector<1x32x32xbf16>
    %16 = vector.shape_cast %15 : vector<1x32x32xbf16> to vector<32x32xbf16>
    %17 = arith.truncf %2 : vector<8x32xf32> to vector<8x32xbf16>
    %cst = arith.constant dense<0.000000e+00> : vector<8x32xf32>
    %18 = tpu.matmul %17, %7, %cst {dimension_numbers = #tpu.dot_dimension_numbers<[1], [0], [0], [1], [0, 0, 1, 1], [], []>} : vector<8x32xbf16>, vector<32x32xbf16>, vector<8x32xf32> -> vector<8x32xf32>
    %19 = vector.broadcast %10 : vector<1x32xf32> to vector<8x32xf32>
    %20 = arith.addf %18, %19 : vector<8x32xf32>
    %21 = vector.shape_cast %20 : vector<8x32xf32> to vector<1x8x32xf32>
    %22 = vector.shape_cast %21 : vector<1x8x32xf32> to vector<1x8x32xf32>
    %23 = vector.broadcast %22 : vector<1x8x32xf32> to vector<2x8x32xf32>
    %24 = vector.shape_cast %0 : vector<2x8x32xbf16> to vector<16x32xbf16>
    %cst_26 = arith.constant dense<0.000000e+00> : vector<16x64xf32>
    %25 = tpu.matmul %24, %8, %cst_26 {dimension_numbers = #tpu.dot_dimension_numbers<[1], [0], [0], [1], [0, 0, 1, 1], [], []>} : vector<16x32xbf16>, vector<32x64xbf16>, vector<16x64xf32> -> vector<16x64xf32>
    %26 = vector.broadcast %12 : vector<1x64xf32> to vector<16x64xf32>
    %27 = arith.addf %25, %26 : vector<16x64xf32>
    %28 = vector.shape_cast %27 : vector<16x64xf32> to vector<2x8x64xf32>
    %29 = vector.extract_strided_slice %28 {offsets = [0, 0, 0], sizes = [2, 8, 32], strides = [1, 1, 1]} : vector<2x8x64xf32> to vector<2x8x32xf32>
    %30 = vector.extract_strided_slice %28 {offsets = [0, 0, 32], sizes = [2, 8, 32], strides = [1, 1, 1]} : vector<2x8x64xf32> to vector<2x8x32xf32>
    "tpu.trace_start"() <{level = 10 : i32, message = "bqd,bkd->bqk"}> : () -> ()
    %cst_27 = arith.constant dense<0.000000e+00> : vector<2x8x8xf32>
    %31 = tpu.matmul %23, %29, %cst_27 {dimension_numbers = #tpu.dot_dimension_numbers<[2], [2], [1], [1], [0, 0, 0, 1, 1, 1], [0], [0]>} : vector<2x8x32xf32>, vector<2x8x32xf32>, vector<2x8x8xf32> -> vector<2x8x8xf32>
    "tpu.trace_stop"() : () -> ()
    %cst_28 = arith.constant 0.176776692 : f32
    %32 = vector.broadcast %cst_28 : f32 to vector<2x8x8xf32>
    %33 = arith.mulf %31, %32 : vector<2x8x8xf32>
    %cst_29 = arith.constant dense<0xFF800000> : vector<2x8xf32>
    %34 = vector.multi_reduction <maximumf>, %33, %cst_29 [2] : vector<2x8x8xf32> to vector<2x8xf32>
    %35 = vector.shape_cast %34 : vector<2x8xf32> to vector<2x8x1xf32>
    %36 = vector.broadcast %35 : vector<2x8x1xf32> to vector<2x8x8xf32>
    %37 = arith.subf %33, %36 : vector<2x8x8xf32>
    %38 = math.exp %37 : vector<2x8x8xf32>
    %cst_30 = arith.constant dense<0.000000e+00> : vector<2x8xf32>
    %39 = vector.multi_reduction <add>, %38, %cst_30 [2] : vector<2x8x8xf32> to vector<2x8xf32>
    %40 = vector.shape_cast %39 : vector<2x8xf32> to vector<2x8x1xf32>
    %41 = tpu.reciprocal %40 {approx = true} : vector<2x8x1xf32> -> vector<2x8x1xf32>
    %42 = vector.broadcast %41 : vector<2x8x1xf32> to vector<2x8x8xf32>
    %43 = arith.mulf %38, %42 : vector<2x8x8xf32>
    "tpu.trace_start"() <{level = 10 : i32, message = "bqk,bkd->bqd"}> : () -> ()
    %cst_31 = arith.constant dense<0.000000e+00> : vector<2x8x32xf32>
    %44 = tpu.matmul %43, %30, %cst_31 {dimension_numbers = #tpu.dot_dimension_numbers<[2], [1], [1], [2], [0, 0, 0, 1, 1, 2], [0], [0]>} : vector<2x8x8xf32>, vector<2x8x32xf32>, vector<2x8x32xf32> -> vector<2x8x32xf32>
    "tpu.trace_stop"() : () -> ()
    %45 = arith.addf %23, %44 : vector<2x8x32xf32>
    %46 = vector.shape_cast %45 : vector<2x8x32xf32> to vector<16x32xf32>
    %47 = arith.truncf %46 : vector<16x32xf32> to vector<16x32xbf16>
    %cst_32 = arith.constant dense<0.000000e+00> : vector<16x32xf32>
    %48 = tpu.matmul %47, %16, %cst_32 {dimension_numbers = #tpu.dot_dimension_numbers<[1], [0], [0], [1], [0, 0, 1, 1], [], []>} : vector<16x32xbf16>, vector<32x32xbf16>, vector<16x32xf32> -> vector<16x32xf32>
    %49 = vector.broadcast %14 : vector<1x32xf32> to vector<16x32xf32>
    %50 = arith.addf %48, %49 : vector<16x32xf32>
    %cst_33 = arith.constant 0.000000e+00 : f32
    %51 = vector.broadcast %cst_33 : f32 to vector<16x32xf32>
    %52 = arith.maximumf %50, %51 : vector<16x32xf32>
    %53 = arith.addf %46, %52 : vector<16x32xf32>
    %54 = vector.shape_cast %53 : vector<16x32xf32> to vector<2x8x32xf32>
    %c0_34 = arith.constant 0 : index
    %c0_35 = arith.constant 0 : index
    %55 = vector.load %arg4[%c0_34, %c0_35] : memref<32x32xbf16, #tpu.memory_space<vmem>>, vector<32x32xbf16>
    %c0_36 = arith.constant 0 : index
    %c0_37 = arith.constant 0 : index
    %c0_38 = arith.constant 0 : index
    %56 = vector.load %arg6[%c0_36, %c0_37, %c0_38] : memref<4x32x64xbf16, #tpu.memory_space<vmem>>, vector<1x32x64xbf16>
    %57 = vector.shape_cast %56 : vector<1x32x64xbf16> to vector<32x64xbf16>
    %c1_39 = arith.constant 1 : index
    %c0_40 = arith.constant 0 : index
    %c0_41 = arith.constant 0 : index
    %58 = vector.load %arg8[%c1_39, %c0_40, %c0_41] : memref<5x1x32xf32, #tpu.memory_space<vmem>>, vector<1x1x32xf32>
    %59 = vector.shape_cast %58 : vector<1x1x32xf32> to vector<1x32xf32>
    %c1_42 = arith.constant 1 : index
    %c0_43 = arith.constant 0 : index
    %c0_44 = arith.constant 0 : index
    %60 = vector.load %arg9[%c1_42, %c0_43, %c0_44] : memref<5x1x64xf32, #tpu.memory_space<vmem>>, vector<1x1x64xf32>
    %61 = vector.shape_cast %60 : vector<1x1x64xf32> to vector<1x64xf32>
    %c1_45 = arith.constant 1 : index
    %c0_46 = arith.constant 0 : index
    %c0_47 = arith.constant 0 : index
    %62 = vector.load %arg10[%c1_45, %c0_46, %c0_47] : memref<5x1x32xf32, #tpu.memory_space<vmem>>, vector<1x1x32xf32>
    %63 = vector.shape_cast %62 : vector<1x1x32xf32> to vector<1x32xf32>
    %c1_48 = arith.constant 1 : index
    %c0_49 = arith.constant 0 : index
    %c0_50 = arith.constant 0 : index
    %64 = vector.load %arg7[%c1_48, %c0_49, %c0_50] : memref<5x32x32xbf16, #tpu.memory_space<vmem>>, vector<1x32x32xbf16>
    %65 = vector.shape_cast %64 : vector<1x32x32xbf16> to vector<32x32xbf16>
    %66 = vector.shape_cast %0 : vector<2x8x32xbf16> to vector<16x32xbf16>
    %cst_51 = arith.constant dense<0.000000e+00> : vector<16x32xf32>
    %67 = tpu.matmul %66, %55, %cst_51 {dimension_numbers = #tpu.dot_dimension_numbers<[1], [0], [0], [1], [0, 0, 1, 1], [], []>} : vector<16x32xbf16>, vector<32x32xbf16>, vector<16x32xf32> -> vector<16x32xf32>
    %68 = vector.broadcast %59 : vector<1x32xf32> to vector<16x32xf32>
    %69 = arith.addf %67, %68 : vector<16x32xf32>
    %70 = vector.shape_cast %69 : vector<16x32xf32> to vector<2x8x32xf32>
    %71 = vector.shape_cast %54 : vector<2x8x32xf32> to vector<16x32xf32>
    %72 = arith.truncf %71 : vector<16x32xf32> to vector<16x32xbf16>
    %cst_52 = arith.constant dense<0.000000e+00> : vector<16x64xf32>
    %73 = tpu.matmul %72, %57, %cst_52 {dimension_numbers = #tpu.dot_dimension_numbers<[1], [0], [0], [1], [0, 0, 1, 1], [], []>} : vector<16x32xbf16>, vector<32x64xbf16>, vector<16x64xf32> -> vector<16x64xf32>
    %74 = vector.broadcast %61 : vector<1x64xf32> to vector<16x64xf32>
    %75 = arith.addf %73, %74 : vector<16x64xf32>
    %76 = vector.shape_cast %75 : vector<16x64xf32> to vector<2x8x64xf32>
    %77 = vector.extract_strided_slice %76 {offsets = [0, 0, 0], sizes = [2, 8, 32], strides = [1, 1, 1]} : vector<2x8x64xf32> to vector<2x8x32xf32>
    %78 = vector.extract_strided_slice %76 {offsets = [0, 0, 32], sizes = [2, 8, 32], strides = [1, 1, 1]} : vector<2x8x64xf32> to vector<2x8x32xf32>
    "tpu.trace_start"() <{level = 10 : i32, message = "bqd,bkd->bqk"}> : () -> ()
    %cst_53 = arith.constant dense<0.000000e+00> : vector<2x8x8xf32>
    %79 = tpu.matmul %70, %77, %cst_53 {dimension_numbers = #tpu.dot_dimension_numbers<[2], [2], [1], [1], [0, 0, 0, 1, 1, 1], [0], [0]>} : vector<2x8x32xf32>, vector<2x8x32xf32>, vector<2x8x8xf32> -> vector<2x8x8xf32>
    "tpu.trace_stop"() : () -> ()
    %cst_54 = arith.constant 0.176776692 : f32
    %80 = vector.broadcast %cst_54 : f32 to vector<2x8x8xf32>
    %81 = arith.mulf %79, %80 : vector<2x8x8xf32>
    %cst_55 = arith.constant dense<0xFF800000> : vector<2x8xf32>
    %82 = vector.multi_reduction <maximumf>, %81, %cst_55 [2] : vector<2x8x8xf32> to vector<2x8xf32>
    %83 = vector.shape_cast %82 : vector<2x8xf32> to vector<2x8x1xf32>
    %84 = vector.broadcast %83 : vector<2x8x1xf32> to vector<2x8x8xf32>
    %85 = arith.subf %81, %84 : vector<2x8x8xf32>
    %86 = math.exp %85 : vector<2x8x8xf32>
    %cst_56 = arith.constant dense<0.000000e+00> : vector<2x8xf32>
    %87 = vector.multi_reduction <add>, %86, %cst_56 [2] : vector<2x8x8xf32> to vector<2x8xf32>
    %88 = vector.shape_cast %87 : vector<2x8xf32> to vector<2x8x1xf32>
    %89 = tpu.reciprocal %88 {approx = true} : vector<2x8x1xf32> -> vector<2x8x1xf32>
    %90 = vector.broadcast %89 : vector<2x8x1xf32> to vector<2x8x8xf32>
    %91 = arith.mulf %86, %90 : vector<2x8x8xf32>
    "tpu.trace_start"() <{level = 10 : i32, message = "bqk,bkd->bqd"}> : () -> ()
    %cst_57 = arith.constant dense<0.000000e+00> : vector<2x8x32xf32>
    %92 = tpu.matmul %91, %78, %cst_57 {dimension_numbers = #tpu.dot_dimension_numbers<[2], [1], [1], [2], [0, 0, 0, 1, 1, 2], [0], [0]>} : vector<2x8x8xf32>, vector<2x8x32xf32>, vector<2x8x32xf32> -> vector<2x8x32xf32>
    "tpu.trace_stop"() : () -> ()
    %93 = arith.addf %70, %92 : vector<2x8x32xf32>
    %94 = vector.shape_cast %93 : vector<2x8x32xf32> to vector<16x32xf32>
    %95 = arith.truncf %94 : vector<16x32xf32> to vector<16x32xbf16>
    %cst_58 = arith.constant dense<0.000000e+00> : vector<16x32xf32>
    %96 = tpu.matmul %95, %65, %cst_58 {dimension_numbers = #tpu.dot_dimension_numbers<[1], [0], [0], [1], [0, 0, 1, 1], [], []>} : vector<16x32xbf16>, vector<32x32xbf16>, vector<16x32xf32> -> vector<16x32xf32>
    %97 = vector.broadcast %63 : vector<1x32xf32> to vector<16x32xf32>
    %98 = arith.addf %96, %97 : vector<16x32xf32>
    %cst_59 = arith.constant 0.000000e+00 : f32
    %99 = vector.broadcast %cst_59 : f32 to vector<16x32xf32>
    %100 = arith.maximumf %98, %99 : vector<16x32xf32>
    %101 = arith.addf %94, %100 : vector<16x32xf32>
    %102 = vector.shape_cast %101 : vector<16x32xf32> to vector<2x8x32xf32>
    %c1_60 = arith.constant 1 : index
    %c0_61 = arith.constant 0 : index
    %c0_62 = arith.constant 0 : index
    %103 = vector.load %arg5[%c1_60, %c0_61, %c0_62] : memref<4x32x32xbf16, #tpu.memory_space<vmem>>, vector<1x32x32xbf16>
    %104 = vector.shape_cast %103 : vector<1x32x32xbf16> to vector<32x32xbf16>
    %c1_63 = arith.constant 1 : index
    %c0_64 = arith.constant 0 : index
    %c0_65 = arith.constant 0 : index
    %105 = vector.load %arg6[%c1_63, %c0_64, %c0_65] : memref<4x32x64xbf16, #tpu.memory_space<vmem>>, vector<1x32x64xbf16>
    %106 = vector.shape_cast %105 : vector<1x32x64xbf16> to vector<32x64xbf16>
    %c2 = arith.constant 2 : index
    %c0_66 = arith.constant 0 : index
    %c0_67 = arith.constant 0 : index
    %107 = vector.load %arg8[%c2, %c0_66, %c0_67] : memref<5x1x32xf32, #tpu.memory_space<vmem>>, vector<1x1x32xf32>
    %108 = vector.shape_cast %107 : vector<1x1x32xf32> to vector<1x32xf32>
    %c2_68 = arith.constant 2 : index
    %c0_69 = arith.constant 0 : index
    %c0_70 = arith.constant 0 : index
    %109 = vector.load %arg9[%c2_68, %c0_69, %c0_70] : memref<5x1x64xf32, #tpu.memory_space<vmem>>, vector<1x1x64xf32>
    %110 = vector.shape_cast %109 : vector<1x1x64xf32> to vector<1x64xf32>
    %c2_71 = arith.constant 2 : index
    %c0_72 = arith.constant 0 : index
    %c0_73 = arith.constant 0 : index
    %111 = vector.load %arg10[%c2_71, %c0_72, %c0_73] : memref<5x1x32xf32, #tpu.memory_space<vmem>>, vector<1x1x32xf32>
    %112 = vector.shape_cast %111 : vector<1x1x32xf32> to vector<1x32xf32>
    %c2_74 = arith.constant 2 : index
    %c0_75 = arith.constant 0 : index
    %c0_76 = arith.constant 0 : index
    %113 = vector.load %arg7[%c2_74, %c0_75, %c0_76] : memref<5x32x32xbf16, #tpu.memory_space<vmem>>, vector<1x32x32xbf16>
    %114 = vector.shape_cast %113 : vector<1x32x32xbf16> to vector<32x32xbf16>
    %115 = arith.truncf %4 : vector<8x32xf32> to vector<8x32xbf16>
    %cst_77 = arith.constant dense<0.000000e+00> : vector<8x32xf32>
    %116 = tpu.matmul %115, %104, %cst_77 {dimension_numbers = #tpu.dot_dimension_numbers<[1], [0], [0], [1], [0, 0, 1, 1], [], []>} : vector<8x32xbf16>, vector<32x32xbf16>, vector<8x32xf32> -> vector<8x32xf32>
    %117 = vector.broadcast %108 : vector<1x32xf32> to vector<8x32xf32>
    %118 = arith.addf %116, %117 : vector<8x32xf32>
    %119 = vector.shape_cast %118 : vector<8x32xf32> to vector<1x8x32xf32>
    %120 = vector.shape_cast %119 : vector<1x8x32xf32> to vector<1x8x32xf32>
    %121 = vector.broadcast %120 : vector<1x8x32xf32> to vector<2x8x32xf32>
    %122 = vector.shape_cast %102 : vector<2x8x32xf32> to vector<16x32xf32>
    %123 = arith.truncf %122 : vector<16x32xf32> to vector<16x32xbf16>
    %cst_78 = arith.constant dense<0.000000e+00> : vector<16x64xf32>
    %124 = tpu.matmul %123, %106, %cst_78 {dimension_numbers = #tpu.dot_dimension_numbers<[1], [0], [0], [1], [0, 0, 1, 1], [], []>} : vector<16x32xbf16>, vector<32x64xbf16>, vector<16x64xf32> -> vector<16x64xf32>
    %125 = vector.broadcast %110 : vector<1x64xf32> to vector<16x64xf32>
    %126 = arith.addf %124, %125 : vector<16x64xf32>
    %127 = vector.shape_cast %126 : vector<16x64xf32> to vector<2x8x64xf32>
    %128 = vector.extract_strided_slice %127 {offsets = [0, 0, 0], sizes = [2, 8, 32], strides = [1, 1, 1]} : vector<2x8x64xf32> to vector<2x8x32xf32>
    %129 = vector.extract_strided_slice %127 {offsets = [0, 0, 32], sizes = [2, 8, 32], strides = [1, 1, 1]} : vector<2x8x64xf32> to vector<2x8x32xf32>
    "tpu.trace_start"() <{level = 10 : i32, message = "bqd,bkd->bqk"}> : () -> ()
    %cst_79 = arith.constant dense<0.000000e+00> : vector<2x8x8xf32>
    %130 = tpu.matmul %121, %128, %cst_79 {dimension_numbers = #tpu.dot_dimension_numbers<[2], [2], [1], [1], [0, 0, 0, 1, 1, 1], [0], [0]>} : vector<2x8x32xf32>, vector<2x8x32xf32>, vector<2x8x8xf32> -> vector<2x8x8xf32>
    "tpu.trace_stop"() : () -> ()
    %cst_80 = arith.constant 0.176776692 : f32
    %131 = vector.broadcast %cst_80 : f32 to vector<2x8x8xf32>
    %132 = arith.mulf %130, %131 : vector<2x8x8xf32>
    %cst_81 = arith.constant dense<0xFF800000> : vector<2x8xf32>
    %133 = vector.multi_reduction <maximumf>, %132, %cst_81 [2] : vector<2x8x8xf32> to vector<2x8xf32>
    %134 = vector.shape_cast %133 : vector<2x8xf32> to vector<2x8x1xf32>
    %135 = vector.broadcast %134 : vector<2x8x1xf32> to vector<2x8x8xf32>
    %136 = arith.subf %132, %135 : vector<2x8x8xf32>
    %137 = math.exp %136 : vector<2x8x8xf32>
    %cst_82 = arith.constant dense<0.000000e+00> : vector<2x8xf32>
    %138 = vector.multi_reduction <add>, %137, %cst_82 [2] : vector<2x8x8xf32> to vector<2x8xf32>
    %139 = vector.shape_cast %138 : vector<2x8xf32> to vector<2x8x1xf32>
    %140 = tpu.reciprocal %139 {approx = true} : vector<2x8x1xf32> -> vector<2x8x1xf32>
    %141 = vector.broadcast %140 : vector<2x8x1xf32> to vector<2x8x8xf32>
    %142 = arith.mulf %137, %141 : vector<2x8x8xf32>
    "tpu.trace_start"() <{level = 10 : i32, message = "bqk,bkd->bqd"}> : () -> ()
    %cst_83 = arith.constant dense<0.000000e+00> : vector<2x8x32xf32>
    %143 = tpu.matmul %142, %129, %cst_83 {dimension_numbers = #tpu.dot_dimension_numbers<[2], [1], [1], [2], [0, 0, 0, 1, 1, 2], [0], [0]>} : vector<2x8x8xf32>, vector<2x8x32xf32>, vector<2x8x32xf32> -> vector<2x8x32xf32>
    "tpu.trace_stop"() : () -> ()
    %144 = arith.addf %121, %143 : vector<2x8x32xf32>
    %145 = vector.shape_cast %144 : vector<2x8x32xf32> to vector<16x32xf32>
    %146 = arith.truncf %145 : vector<16x32xf32> to vector<16x32xbf16>
    %cst_84 = arith.constant dense<0.000000e+00> : vector<16x32xf32>
    %147 = tpu.matmul %146, %114, %cst_84 {dimension_numbers = #tpu.dot_dimension_numbers<[1], [0], [0], [1], [0, 0, 1, 1], [], []>} : vector<16x32xbf16>, vector<32x32xbf16>, vector<16x32xf32> -> vector<16x32xf32>
    %148 = vector.broadcast %112 : vector<1x32xf32> to vector<16x32xf32>
    %149 = arith.addf %147, %148 : vector<16x32xf32>
    %cst_85 = arith.constant 0.000000e+00 : f32
    %150 = vector.broadcast %cst_85 : f32 to vector<16x32xf32>
    %151 = arith.maximumf %149, %150 : vector<16x32xf32>
    %152 = arith.addf %145, %151 : vector<16x32xf32>
    %153 = vector.shape_cast %152 : vector<16x32xf32> to vector<2x8x32xf32>
    %c2_86 = arith.constant 2 : index
    %c0_87 = arith.constant 0 : index
    %c0_88 = arith.constant 0 : index
    %154 = vector.load %arg5[%c2_86, %c0_87, %c0_88] : memref<4x32x32xbf16, #tpu.memory_space<vmem>>, vector<1x32x32xbf16>
    %155 = vector.shape_cast %154 : vector<1x32x32xbf16> to vector<32x32xbf16>
    %c2_89 = arith.constant 2 : index
    %c0_90 = arith.constant 0 : index
    %c0_91 = arith.constant 0 : index
    %156 = vector.load %arg6[%c2_89, %c0_90, %c0_91] : memref<4x32x64xbf16, #tpu.memory_space<vmem>>, vector<1x32x64xbf16>
    %157 = vector.shape_cast %156 : vector<1x32x64xbf16> to vector<32x64xbf16>
    %c3 = arith.constant 3 : index
    %c0_92 = arith.constant 0 : index
    %c0_93 = arith.constant 0 : index
    %158 = vector.load %arg8[%c3, %c0_92, %c0_93] : memref<5x1x32xf32, #tpu.memory_space<vmem>>, vector<1x1x32xf32>
    %159 = vector.shape_cast %158 : vector<1x1x32xf32> to vector<1x32xf32>
    %c3_94 = arith.constant 3 : index
    %c0_95 = arith.constant 0 : index
    %c0_96 = arith.constant 0 : index
    %160 = vector.load %arg9[%c3_94, %c0_95, %c0_96] : memref<5x1x64xf32, #tpu.memory_space<vmem>>, vector<1x1x64xf32>
    %161 = vector.shape_cast %160 : vector<1x1x64xf32> to vector<1x64xf32>
    %c3_97 = arith.constant 3 : index
    %c0_98 = arith.constant 0 : index
    %c0_99 = arith.constant 0 : index
    %162 = vector.load %arg10[%c3_97, %c0_98, %c0_99] : memref<5x1x32xf32, #tpu.memory_space<vmem>>, vector<1x1x32xf32>
    %163 = vector.shape_cast %162 : vector<1x1x32xf32> to vector<1x32xf32>
    %c3_100 = arith.constant 3 : index
    %c0_101 = arith.constant 0 : index
    %c0_102 = arith.constant 0 : index
    %164 = vector.load %arg7[%c3_100, %c0_101, %c0_102] : memref<5x32x32xbf16, #tpu.memory_space<vmem>>, vector<1x32x32xbf16>
    %165 = vector.shape_cast %164 : vector<1x32x32xbf16> to vector<32x32xbf16>
    %166 = vector.shape_cast %102 : vector<2x8x32xf32> to vector<16x32xf32>
    %167 = arith.truncf %166 : vector<16x32xf32> to vector<16x32xbf16>
    %cst_103 = arith.constant dense<0.000000e+00> : vector<16x32xf32>
    %168 = tpu.matmul %167, %155, %cst_103 {dimension_numbers = #tpu.dot_dimension_numbers<[1], [0], [0], [1], [0, 0, 1, 1], [], []>} : vector<16x32xbf16>, vector<32x32xbf16>, vector<16x32xf32> -> vector<16x32xf32>
    %169 = vector.broadcast %159 : vector<1x32xf32> to vector<16x32xf32>
    %170 = arith.addf %168, %169 : vector<16x32xf32>
    %171 = vector.shape_cast %170 : vector<16x32xf32> to vector<2x8x32xf32>
    %172 = vector.shape_cast %153 : vector<2x8x32xf32> to vector<16x32xf32>
    %173 = arith.truncf %172 : vector<16x32xf32> to vector<16x32xbf16>
    %cst_104 = arith.constant dense<0.000000e+00> : vector<16x64xf32>
    %174 = tpu.matmul %173, %157, %cst_104 {dimension_numbers = #tpu.dot_dimension_numbers<[1], [0], [0], [1], [0, 0, 1, 1], [], []>} : vector<16x32xbf16>, vector<32x64xbf16>, vector<16x64xf32> -> vector<16x64xf32>
    %175 = vector.broadcast %161 : vector<1x64xf32> to vector<16x64xf32>
    %176 = arith.addf %174, %175 : vector<16x64xf32>
    %177 = vector.shape_cast %176 : vector<16x64xf32> to vector<2x8x64xf32>
    %178 = vector.extract_strided_slice %177 {offsets = [0, 0, 0], sizes = [2, 8, 32], strides = [1, 1, 1]} : vector<2x8x64xf32> to vector<2x8x32xf32>
    %179 = vector.extract_strided_slice %177 {offsets = [0, 0, 32], sizes = [2, 8, 32], strides = [1, 1, 1]} : vector<2x8x64xf32> to vector<2x8x32xf32>
    "tpu.trace_start"() <{level = 10 : i32, message = "bqd,bkd->bqk"}> : () -> ()
    %cst_105 = arith.constant dense<0.000000e+00> : vector<2x8x8xf32>
    %180 = tpu.matmul %171, %178, %cst_105 {dimension_numbers = #tpu.dot_dimension_numbers<[2], [2], [1], [1], [0, 0, 0, 1, 1, 1], [0], [0]>} : vector<2x8x32xf32>, vector<2x8x32xf32>, vector<2x8x8xf32> -> vector<2x8x8xf32>
    "tpu.trace_stop"() : () -> ()
    %cst_106 = arith.constant 0.176776692 : f32
    %181 = vector.broadcast %cst_106 : f32 to vector<2x8x8xf32>
    %182 = arith.mulf %180, %181 : vector<2x8x8xf32>
    %cst_107 = arith.constant dense<0xFF800000> : vector<2x8xf32>
    %183 = vector.multi_reduction <maximumf>, %182, %cst_107 [2] : vector<2x8x8xf32> to vector<2x8xf32>
    %184 = vector.shape_cast %183 : vector<2x8xf32> to vector<2x8x1xf32>
    %185 = vector.broadcast %184 : vector<2x8x1xf32> to vector<2x8x8xf32>
    %186 = arith.subf %182, %185 : vector<2x8x8xf32>
    %187 = math.exp %186 : vector<2x8x8xf32>
    %cst_108 = arith.constant dense<0.000000e+00> : vector<2x8xf32>
    %188 = vector.multi_reduction <add>, %187, %cst_108 [2] : vector<2x8x8xf32> to vector<2x8xf32>
    %189 = vector.shape_cast %188 : vector<2x8xf32> to vector<2x8x1xf32>
    %190 = tpu.reciprocal %189 {approx = true} : vector<2x8x1xf32> -> vector<2x8x1xf32>
    %191 = vector.broadcast %190 : vector<2x8x1xf32> to vector<2x8x8xf32>
    %192 = arith.mulf %187, %191 : vector<2x8x8xf32>
    "tpu.trace_start"() <{level = 10 : i32, message = "bqk,bkd->bqd"}> : () -> ()
    %cst_109 = arith.constant dense<0.000000e+00> : vector<2x8x32xf32>
    %193 = tpu.matmul %192, %179, %cst_109 {dimension_numbers = #tpu.dot_dimension_numbers<[2], [1], [1], [2], [0, 0, 0, 1, 1, 2], [0], [0]>} : vector<2x8x8xf32>, vector<2x8x32xf32>, vector<2x8x32xf32> -> vector<2x8x32xf32>
    "tpu.trace_stop"() : () -> ()
    %194 = arith.addf %171, %193 : vector<2x8x32xf32>
    %195 = vector.shape_cast %194 : vector<2x8x32xf32> to vector<16x32xf32>
    %196 = arith.truncf %195 : vector<16x32xf32> to vector<16x32xbf16>
    %cst_110 = arith.constant dense<0.000000e+00> : vector<16x32xf32>
    %197 = tpu.matmul %196, %165, %cst_110 {dimension_numbers = #tpu.dot_dimension_numbers<[1], [0], [0], [1], [0, 0, 1, 1], [], []>} : vector<16x32xbf16>, vector<32x32xbf16>, vector<16x32xf32> -> vector<16x32xf32>
    %198 = vector.broadcast %163 : vector<1x32xf32> to vector<16x32xf32>
    %199 = arith.addf %197, %198 : vector<16x32xf32>
    %cst_111 = arith.constant 0.000000e+00 : f32
    %200 = vector.broadcast %cst_111 : f32 to vector<16x32xf32>
    %201 = arith.maximumf %199, %200 : vector<16x32xf32>
    %202 = arith.addf %195, %201 : vector<16x32xf32>
    %203 = vector.shape_cast %202 : vector<16x32xf32> to vector<2x8x32xf32>
    %c3_112 = arith.constant 3 : index
    %c0_113 = arith.constant 0 : index
    %c0_114 = arith.constant 0 : index
    %204 = vector.load %arg5[%c3_112, %c0_113, %c0_114] : memref<4x32x32xbf16, #tpu.memory_space<vmem>>, vector<1x32x32xbf16>
    %205 = vector.shape_cast %204 : vector<1x32x32xbf16> to vector<32x32xbf16>
    %c3_115 = arith.constant 3 : index
    %c0_116 = arith.constant 0 : index
    %c0_117 = arith.constant 0 : index
    %206 = vector.load %arg6[%c3_115, %c0_116, %c0_117] : memref<4x32x64xbf16, #tpu.memory_space<vmem>>, vector<1x32x64xbf16>
    %207 = vector.shape_cast %206 : vector<1x32x64xbf16> to vector<32x64xbf16>
    %c4 = arith.constant 4 : index
    %c0_118 = arith.constant 0 : index
    %c0_119 = arith.constant 0 : index
    %208 = vector.load %arg8[%c4, %c0_118, %c0_119] : memref<5x1x32xf32, #tpu.memory_space<vmem>>, vector<1x1x32xf32>
    %209 = vector.shape_cast %208 : vector<1x1x32xf32> to vector<1x32xf32>
    %c4_120 = arith.constant 4 : index
    %c0_121 = arith.constant 0 : index
    %c0_122 = arith.constant 0 : index
    %210 = vector.load %arg9[%c4_120, %c0_121, %c0_122] : memref<5x1x64xf32, #tpu.memory_space<vmem>>, vector<1x1x64xf32>
    %211 = vector.shape_cast %210 : vector<1x1x64xf32> to vector<1x64xf32>
    %c4_123 = arith.constant 4 : index
    %c0_124 = arith.constant 0 : index
    %c0_125 = arith.constant 0 : index
    %212 = vector.load %arg10[%c4_123, %c0_124, %c0_125] : memref<5x1x32xf32, #tpu.memory_space<vmem>>, vector<1x1x32xf32>
    %213 = vector.shape_cast %212 : vector<1x1x32xf32> to vector<1x32xf32>
    %c4_126 = arith.constant 4 : index
    %c0_127 = arith.constant 0 : index
    %c0_128 = arith.constant 0 : index
    %214 = vector.load %arg7[%c4_126, %c0_127, %c0_128] : memref<5x32x32xbf16, #tpu.memory_space<vmem>>, vector<1x32x32xbf16>
    %215 = vector.shape_cast %214 : vector<1x32x32xbf16> to vector<32x32xbf16>
    %216 = arith.truncf %5 : vector<16x32xf32> to vector<16x32xbf16>
    %cst_129 = arith.constant dense<0.000000e+00> : vector<16x32xf32>
    %217 = tpu.matmul %216, %205, %cst_129 {dimension_numbers = #tpu.dot_dimension_numbers<[1], [0], [0], [1], [0, 0, 1, 1], [], []>} : vector<16x32xbf16>, vector<32x32xbf16>, vector<16x32xf32> -> vector<16x32xf32>
    %218 = vector.broadcast %209 : vector<1x32xf32> to vector<16x32xf32>
    %219 = arith.addf %217, %218 : vector<16x32xf32>
    %220 = vector.shape_cast %219 : vector<16x32xf32> to vector<1x16x32xf32>
    %221 = vector.shape_cast %220 : vector<1x16x32xf32> to vector<1x16x32xf32>
    %222 = vector.broadcast %221 : vector<1x16x32xf32> to vector<2x16x32xf32>
    %223 = vector.shape_cast %203 : vector<2x8x32xf32> to vector<16x32xf32>
    %224 = arith.truncf %223 : vector<16x32xf32> to vector<16x32xbf16>
    %cst_130 = arith.constant dense<0.000000e+00> : vector<16x64xf32>
    %225 = tpu.matmul %224, %207, %cst_130 {dimension_numbers = #tpu.dot_dimension_numbers<[1], [0], [0], [1], [0, 0, 1, 1], [], []>} : vector<16x32xbf16>, vector<32x64xbf16>, vector<16x64xf32> -> vector<16x64xf32>
    %226 = vector.broadcast %211 : vector<1x64xf32> to vector<16x64xf32>
    %227 = arith.addf %225, %226 : vector<16x64xf32>
    %228 = vector.shape_cast %227 : vector<16x64xf32> to vector<2x8x64xf32>
    %229 = vector.extract_strided_slice %228 {offsets = [0, 0, 0], sizes = [2, 8, 32], strides = [1, 1, 1]} : vector<2x8x64xf32> to vector<2x8x32xf32>
    %230 = vector.extract_strided_slice %228 {offsets = [0, 0, 32], sizes = [2, 8, 32], strides = [1, 1, 1]} : vector<2x8x64xf32> to vector<2x8x32xf32>
    "tpu.trace_start"() <{level = 10 : i32, message = "bqd,bkd->bqk"}> : () -> ()
    %cst_131 = arith.constant dense<0.000000e+00> : vector<2x16x8xf32>
    %231 = tpu.matmul %222, %229, %cst_131 {dimension_numbers = #tpu.dot_dimension_numbers<[2], [2], [1], [1], [0, 0, 0, 1, 1, 1], [0], [0]>} : vector<2x16x32xf32>, vector<2x8x32xf32>, vector<2x16x8xf32> -> vector<2x16x8xf32>
    "tpu.trace_stop"() : () -> ()
    %cst_132 = arith.constant 0.176776692 : f32
    %232 = vector.broadcast %cst_132 : f32 to vector<2x16x8xf32>
    %233 = arith.mulf %231, %232 : vector<2x16x8xf32>
    %cst_133 = arith.constant dense<0xFF800000> : vector<2x16xf32>
    %234 = vector.multi_reduction <maximumf>, %233, %cst_133 [2] : vector<2x16x8xf32> to vector<2x16xf32>
    %235 = vector.shape_cast %234 : vector<2x16xf32> to vector<2x16x1xf32>
    %236 = vector.broadcast %235 : vector<2x16x1xf32> to vector<2x16x8xf32>
    %237 = arith.subf %233, %236 : vector<2x16x8xf32>
    %238 = math.exp %237 : vector<2x16x8xf32>
    %cst_134 = arith.constant dense<0.000000e+00> : vector<2x16xf32>
    %239 = vector.multi_reduction <add>, %238, %cst_134 [2] : vector<2x16x8xf32> to vector<2x16xf32>
    %240 = vector.shape_cast %239 : vector<2x16xf32> to vector<2x16x1xf32>
    %241 = tpu.reciprocal %240 {approx = true} : vector<2x16x1xf32> -> vector<2x16x1xf32>
    %242 = vector.broadcast %241 : vector<2x16x1xf32> to vector<2x16x8xf32>
    %243 = arith.mulf %238, %242 : vector<2x16x8xf32>
    "tpu.trace_start"() <{level = 10 : i32, message = "bqk,bkd->bqd"}> : () -> ()
    %cst_135 = arith.constant dense<0.000000e+00> : vector<2x16x32xf32>
    %244 = tpu.matmul %243, %230, %cst_135 {dimension_numbers = #tpu.dot_dimension_numbers<[2], [1], [1], [2], [0, 0, 0, 1, 1, 2], [0], [0]>} : vector<2x16x8xf32>, vector<2x8x32xf32>, vector<2x16x32xf32> -> vector<2x16x32xf32>
    "tpu.trace_stop"() : () -> ()
    %245 = arith.addf %222, %244 : vector<2x16x32xf32>
    %246 = vector.shape_cast %245 : vector<2x16x32xf32> to vector<32x32xf32>
    %247 = arith.truncf %246 : vector<32x32xf32> to vector<32x32xbf16>
    %cst_136 = arith.constant dense<0.000000e+00> : vector<32x32xf32>
    %248 = tpu.matmul %247, %215, %cst_136 {dimension_numbers = #tpu.dot_dimension_numbers<[1], [0], [0], [1], [0, 0, 1, 1], [], []>} : vector<32x32xbf16>, vector<32x32xbf16>, vector<32x32xf32> -> vector<32x32xf32>
    %249 = vector.broadcast %213 : vector<1x32xf32> to vector<32x32xf32>
    %250 = arith.addf %248, %249 : vector<32x32xf32>
    %cst_137 = arith.constant 0.000000e+00 : f32
    %251 = vector.broadcast %cst_137 : f32 to vector<32x32xf32>
    %252 = arith.maximumf %250, %251 : vector<32x32xf32>
    %253 = arith.addf %246, %252 : vector<32x32xf32>
    %254 = vector.shape_cast %253 : vector<32x32xf32> to vector<2x16x32xf32>
    %255 = vector.shape_cast %254 : vector<2x16x32xf32> to vector<32x32xf32>
    %c0_138 = arith.constant 0 : index
    %c0_139 = arith.constant 0 : index
    %256 = vector.load %arg13[%c0_138, %c0_139] : memref<32x32xbf16, #tpu.memory_space<vmem>>, vector<32x32xbf16>
    %257 = arith.truncf %255 : vector<32x32xf32> to vector<32x32xbf16>
    %cst_140 = arith.constant dense<0.000000e+00> : vector<32x32xf32>
    %258 = tpu.matmul %257, %256, %cst_140 {dimension_numbers = #tpu.dot_dimension_numbers<[1], [0], [0], [1], [0, 0, 1, 1], [], []>} : vector<32x32xbf16>, vector<32x32xbf16>, vector<32x32xf32> -> vector<32x32xf32>
    %c0_141 = arith.constant 0 : index
    %c0_142 = arith.constant 0 : index
    %259 = vector.load %arg14[%c0_141, %c0_142] : memref<1x32xf32, #tpu.memory_space<vmem>>, vector<1x32xf32>
    %260 = vector.broadcast %259 : vector<1x32xf32> to vector<32x32xf32>
    %261 = arith.addf %258, %260 : vector<32x32xf32>
    %262 = vector.shape_cast %261 : vector<32x32xf32> to vector<2x16x32xf32>
    %263 = arith.cmpf one, %262, %262 : vector<2x16x32xf32>
    %264 = arith.extui %263 : vector<2x16x32xi1> to vector<2x16x32xi32>
    %265 = arith.sitofp %264 : vector<2x16x32xi32> to vector<2x16x32xf32>
    %cst_143 = arith.constant dense<0xFF800000> : vector<2x16xf32>
    %266 = vector.multi_reduction <maximumf>, %265, %cst_143 [2] : vector<2x16x32xf32> to vector<2x16xf32>
    %267 = vector.shape_cast %266 : vector<2x16xf32> to vector<2x16x1xf32>
    %cst_144 = arith.constant dense<0xFF800000> : vector<2x1xf32>
    %268 = vector.multi_reduction <maximumf>, %267, %cst_144 [1] : vector<2x16x1xf32> to vector<2x1xf32>
    %269 = vector.shape_cast %268 : vector<2x1xf32> to vector<2x1x1xf32>
    %cst_145 = arith.constant dense<0xFF800000> : vector<1x1xf32>
    %270 = vector.multi_reduction <maximumf>, %269, %cst_145 [0] : vector<2x1x1xf32> to vector<1x1xf32>
    %271 = vector.shape_cast %270 : vector<1x1xf32> to vector<1x1x1xf32>
    %c0_146 = arith.constant 0 : index
    %c0_147 = arith.constant 0 : index
    %c0_148 = arith.constant 0 : index
    %272 = vector.load %arg21[%c0_146, %c0_147, %c0_148] : memref<1x1x1xf32, #tpu.memory_space<vmem>>, vector<1x1x1xf32>
    tpu.vector_store %arg21[%c0_146, %c0_147, %c0_148], %271 {strides = array<i32>} : memref<1x1x1xf32, #tpu.memory_space<vmem>>, vector<1x1x1xf32>,
    %cst_149 = arith.constant dense<0xFF800000> : vector<2x32xf32>
    %273 = vector.multi_reduction <maximumf>, %262, %cst_149 [1] : vector<2x16x32xf32> to vector<2x32xf32>
    %c0_150 = arith.constant 0 : index
    %c0_151 = arith.constant 0 : index
    %274 = vector.load %arg15[%c0_150, %c0_151] : memref<1x32xf32, #tpu.memory_space<vmem>>, vector<1x32xf32>
    %275 = vector.shape_cast %274 : vector<1x32xf32> to vector<1x1x32xf32>
    %276 = vector.shape_cast %275 : vector<1x1x32xf32> to vector<1x1x32xf32>
    %277 = vector.broadcast %276 : vector<1x1x32xf32> to vector<2x1x32xf32>
    "tpu.trace_start"() <{level = 10 : i32, message = "bod,bkd->bok"}> : () -> ()
    %cst_152 = arith.constant dense<0.000000e+00> : vector<2x1x16xf32>
    %278 = tpu.matmul %277, %262, %cst_152 {dimension_numbers = #tpu.dot_dimension_numbers<[2], [2], [1], [1], [0, 0, 0, 1, 1, 1], [0], [0]>} : vector<2x1x32xf32>, vector<2x16x32xf32>, vector<2x1x16xf32> -> vector<2x1x16xf32>
    "tpu.trace_stop"() : () -> ()
    %c0_153 = arith.constant 0 : index
    %c0_154 = arith.constant 0 : index
    %279 = vector.load %arg16[%c0_153, %c0_154] : memref<1x16xf32, #tpu.memory_space<vmem>>, vector<1x16xf32>
    %280 = vector.shape_cast %279 : vector<1x16xf32> to vector<1x1x16xf32>
    %281 = vector.broadcast %280 : vector<1x1x16xf32> to vector<2x1x16xf32>
    %282 = arith.addf %278, %281 : vector<2x1x16xf32>
    %283 = math.tanh %282 : vector<2x1x16xf32>
    %284 = math.exp %283 : vector<2x1x16xf32>
    %c0_155 = arith.constant 0 : index
    %c0_156 = arith.constant 0 : index
    %c0_157 = arith.constant 0 : index
    %285 = vector.load %arg2[%c0_155, %c0_156, %c0_157] : memref<2x1x16xf32, #tpu.memory_space<vmem>>, vector<2x1x16xf32>
    %286 = arith.mulf %284, %285 : vector<2x1x16xf32>
    %cst_158 = arith.constant dense<0.000000e+00> : vector<2x1xf32>
    %287 = vector.multi_reduction <add>, %286, %cst_158 [2] : vector<2x1x16xf32> to vector<2x1xf32>
    %288 = vector.shape_cast %287 : vector<2x1xf32> to vector<2x1x1xf32>
    %289 = tpu.reciprocal %288 {approx = true} : vector<2x1x1xf32> -> vector<2x1x1xf32>
    %290 = vector.broadcast %289 : vector<2x1x1xf32> to vector<2x1x16xf32>
    %291 = arith.mulf %286, %290 : vector<2x1x16xf32>
    %cst_159 = arith.constant 1.000000e-10 : f32
    %292 = vector.broadcast %cst_159 : f32 to vector<2x1x16xf32>
    %293 = arith.addf %291, %292 : vector<2x1x16xf32>
    "tpu.trace_start"() <{level = 10 : i32, message = "bqk,bkd->bqd"}> : () -> ()
    %cst_160 = arith.constant dense<0.000000e+00> : vector<2x1x32xf32>
    %294 = tpu.matmul %293, %262, %cst_160 {dimension_numbers = #tpu.dot_dimension_numbers<[2], [1], [1], [2], [0, 0, 0, 1, 1, 2], [0], [0]>} : vector<2x1x16xf32>, vector<2x16x32xf32>, vector<2x1x32xf32> -> vector<2x1x32xf32>
    "tpu.trace_stop"() : () -> ()
    %295 = vector.shape_cast %294 : vector<2x1x32xf32> to vector<2x32xf32>
    %c0_161 = arith.constant 0 : index
    %c0_162 = arith.constant 0 : index
    %296 = vector.load %arg17[%c0_161, %c0_162] : memref<32x640xbf16, #tpu.memory_space<vmem>>, vector<32x640xbf16>
    %297 = arith.truncf %273 : vector<2x32xf32> to vector<2x32xbf16>
    %cst_163 = arith.constant dense<0.000000e+00> : vector<2x640xf32>
    %298 = tpu.matmul %297, %296, %cst_163 {dimension_numbers = #tpu.dot_dimension_numbers<[1], [0], [0], [1], [0, 0, 1, 1], [], []>} : vector<2x32xbf16>, vector<32x640xbf16>, vector<2x640xf32> -> vector<2x640xf32>
    %c0_164 = arith.constant 0 : index
    %c0_165 = arith.constant 0 : index
    %299 = vector.load %arg18[%c0_164, %c0_165] : memref<32x640xbf16, #tpu.memory_space<vmem>>, vector<32x640xbf16>
    %300 = arith.truncf %295 : vector<2x32xf32> to vector<2x32xbf16>
    %cst_166 = arith.constant dense<0.000000e+00> : vector<2x640xf32>
    %301 = tpu.matmul %300, %299, %cst_166 {dimension_numbers = #tpu.dot_dimension_numbers<[1], [0], [0], [1], [0, 0, 1, 1], [], []>} : vector<2x32xbf16>, vector<32x640xbf16>, vector<2x640xf32> -> vector<2x640xf32>
    %302 = arith.addf %298, %301 : vector<2x640xf32>
    %c0_167 = arith.constant 0 : index
    %c0_168 = arith.constant 0 : index
    %303 = vector.load %arg19[%c0_167, %c0_168] : memref<1x640xf32, #tpu.memory_space<vmem>>, vector<1x640xf32>
    %304 = vector.broadcast %303 : vector<1x640xf32> to vector<2x640xf32>
    %305 = arith.addf %302, %304 : vector<2x640xf32>
    %306 = vector.shape_cast %305 : vector<2x640xf32> to vector<2x1x640xf32>
    %c0_169 = arith.constant 0 : index
    %c0_170 = arith.constant 0 : index
    %c0_171 = arith.constant 0 : index
    %307 = vector.load %arg20[%c0_169, %c0_170, %c0_171] : memref<2x1x640xf32, #tpu.memory_space<vmem>>, vector<2x1x640xf32>
    tpu.vector_store %arg20[%c0_169, %c0_170, %c0_171], %306 {strides = array<i32>} : memref<2x1x640xf32, #tpu.memory_space<vmem>>, vector<2x1x640xf32>,
    return
  }
  func.func @transform_0(%arg0: i32) -> (i32, i32, i32) {
    %c0_i32 = arith.constant 0 : i32
    %c0_i32_0 = arith.constant 0 : i32
    %c0_i32_1 = arith.constant 0 : i32
    return %arg0, %c0_i32, %c0_i32_0 : i32, i32, i32
  }
  func.func @transform_1(%arg0: i32) -> (i32, i32, i32) {
    %c0_i32 = arith.constant 0 : i32
    %c0_i32_0 = arith.constant 0 : i32
    %c0_i32_1 = arith.constant 0 : i32
    return %arg0, %c0_i32, %c0_i32_0 : i32, i32, i32
  }
  func.func @transform_2(%arg0: i32) -> (i32, i32) {
    %c0_i32 = arith.constant 0 : i32
    %c0_i32_0 = arith.constant 0 : i32
    %c0_i32_1 = arith.constant 0 : i32
    return %c0_i32, %c0_i32_0 : i32, i32
  }
  func.func @transform_3(%arg0: i32) -> (i32, i32) {
    %c0_i32 = arith.constant 0 : i32
    %c0_i32_0 = arith.constant 0 : i32
    %c0_i32_1 = arith.constant 0 : i32
    return %c0_i32, %c0_i32_0 : i32, i32
  }
  func.func @transform_4(%arg0: i32) -> (i32, i32, i32) {
    %c0_i32 = arith.constant 0 : i32
    %c0_i32_0 = arith.constant 0 : i32
    %c0_i32_1 = arith.constant 0 : i32
    %c0_i32_2 = arith.constant 0 : i32
    return %c0_i32, %c0_i32_0, %c0_i32_1 : i32, i32, i32
  }
  func.func @transform_5(%arg0: i32) -> (i32, i32, i32) {
    %c0_i32 = arith.constant 0 : i32
    %c0_i32_0 = arith.constant 0 : i32
    %c0_i32_1 = arith.constant 0 : i32
    %c0_i32_2 = arith.constant 0 : i32
    return %c0_i32, %c0_i32_0, %c0_i32_1 : i32, i32, i32
  }
  func.func @transform_6(%arg0: i32) -> (i32, i32, i32) {
    %c0_i32 = arith.constant 0 : i32
    %c0_i32_0 = arith.constant 0 : i32
    %c0_i32_1 = arith.constant 0 : i32
    %c0_i32_2 = arith.constant 0 : i32
    return %c0_i32, %c0_i32_0, %c0_i32_1 : i32, i32, i32
  }
  func.func @transform_7(%arg0: i32) -> (i32, i32, i32) {
    %c0_i32 = arith.constant 0 : i32
    %c0_i32_0 = arith.constant 0 : i32
    %c0_i32_1 = arith.constant 0 : i32
    %c0_i32_2 = arith.constant 0 : i32
    return %c0_i32, %c0_i32_0, %c0_i32_1 : i32, i32, i32
  }
  func.func @transform_8(%arg0: i32) -> (i32, i32, i32) {
    %c0_i32 = arith.constant 0 : i32
    %c0_i32_0 = arith.constant 0 : i32
    %c0_i32_1 = arith.constant 0 : i32
    %c0_i32_2 = arith.constant 0 : i32
    return %c0_i32, %c0_i32_0, %c0_i32_1 : i32, i32, i32
  }
  func.func @transform_9(%arg0: i32) -> (i32, i32, i32) {
    %c0_i32 = arith.constant 0 : i32
    %c0_i32_0 = arith.constant 0 : i32
    %c0_i32_1 = arith.constant 0 : i32
    %c0_i32_2 = arith.constant 0 : i32
    return %c0_i32, %c0_i32_0, %c0_i32_1 : i32, i32, i32
  }
  func.func @transform_10(%arg0: i32) -> (i32, i32, i32) {
    %c0_i32 = arith.constant 0 : i32
    %c0_i32_0 = arith.constant 0 : i32
    %c0_i32_1 = arith.constant 0 : i32
    %c0_i32_2 = arith.constant 0 : i32
    return %c0_i32, %c0_i32_0, %c0_i32_1 : i32, i32, i32
  }
  func.func @transform_11(%arg0: i32) -> (i32, i32) {
    %c0_i32 = arith.constant 0 : i32
    %c0_i32_0 = arith.constant 0 : i32
    %c0_i32_1 = arith.constant 0 : i32
    return %c0_i32, %c0_i32_0 : i32, i32
  }
  func.func @transform_12(%arg0: i32) -> (i32, i32) {
    %c0_i32 = arith.constant 0 : i32
    %c0_i32_0 = arith.constant 0 : i32
    %c0_i32_1 = arith.constant 0 : i32
    return %c0_i32, %c0_i32_0 : i32, i32
  }
  func.func @transform_13(%arg0: i32) -> (i32, i32) {
    %c0_i32 = arith.constant 0 : i32
    %c0_i32_0 = arith.constant 0 : i32
    %c0_i32_1 = arith.constant 0 : i32
    return %c0_i32, %c0_i32_0 : i32, i32
  }
  func.func @transform_14(%arg0: i32) -> (i32, i32) {
    %c0_i32 = arith.constant 0 : i32
    %c0_i32_0 = arith.constant 0 : i32
    %c0_i32_1 = arith.constant 0 : i32
    return %c0_i32, %c0_i32_0 : i32, i32
  }
  func.func @transform_15(%arg0: i32) -> (i32, i32) {
    %c0_i32 = arith.constant 0 : i32
    %c0_i32_0 = arith.constant 0 : i32
    %c0_i32_1 = arith.constant 0 : i32
    return %c0_i32, %c0_i32_0 : i32, i32
  }
  func.func @transform_16(%arg0: i32) -> (i32, i32) {
    %c0_i32 = arith.constant 0 : i32
    %c0_i32_0 = arith.constant 0 : i32
    %c0_i32_1 = arith.constant 0 : i32
    return %c0_i32, %c0_i32_0 : i32, i32
  }
  func.func @transform_17(%arg0: i32) -> (i32, i32) {
    %c0_i32 = arith.constant 0 : i32
    %c0_i32_0 = arith.constant 0 : i32
    %c0_i32_1 = arith.constant 0 : i32
    return %c0_i32, %c0_i32_0 : i32, i32
  }
  func.func @transform_18(%arg0: i32) -> (i32, i32) {
    %c0_i32 = arith.constant 0 : i32
    %c0_i32_0 = arith.constant 0 : i32
    %c0_i32_1 = arith.constant 0 : i32
    return %c0_i32, %c0_i32_0 : i32, i32
  }
  func.func @transform_19(%arg0: i32) -> (i32, i32, i32) {
    %c0_i32 = arith.constant 0 : i32
    %c0_i32_0 = arith.constant 0 : i32
    %c0_i32_1 = arith.constant 0 : i32
    return %arg0, %c0_i32, %c0_i32_0 : i32, i32, i32
  }
  func.func @transform_20(%arg0: i32) -> (i32, i32, i32) {
    %c0_i32 = arith.constant 0 : i32
    %c0_i32_0 = arith.constant 0 : i32
    %c0_i32_1 = arith.constant 0 : i32
    return %arg0, %c0_i32, %c0_i32_0 : i32, i32, i32
  }
}

</mosaic_0001>

<llo_original>
// kernel: tpu_custom_call.1
$region0: #{tpu_custom_call.1}
  #allocation0 [shape = 'u32[]', space=smem, size = 0x4, offset = 0x4, fixed_abs, tag = 'smem constant byte address 0x4 - core index']
  #allocation1 [shape = 'u32[144,128]{1,0:T(1,128)}', space=vmem, size = 0x12000, scoped, tag = 'internal scratch']
  %s0 = inlined_call_operand.hbm [shape: bf16[4,8,32], index: 0, kind: input, shape index: {}]
  %s1 = inlined_call_operand.hbm [shape: f32[4,1,16], index: 1, kind: input, shape index: {}]
  %s2 = inlined_call_operand.hbm [shape: bf16[32,64], index: 2, kind: input, shape index: {}]
  %s3 = inlined_call_operand.hbm [shape: bf16[32,32], index: 3, kind: input, shape index: {}]
  %s4 = inlined_call_operand.hbm [shape: bf16[4,32,32], index: 4, kind: input, shape index: {}]
  %s5 = inlined_call_operand.hbm [shape: bf16[4,32,64], index: 5, kind: input, shape index: {}]
  %s6 = inlined_call_operand.hbm [shape: bf16[5,32,32], index: 6, kind: input, shape index: {}]
  %s7 = inlined_call_operand.hbm [shape: f32[5,1,32], index: 7, kind: input, shape index: {}]
  %s8 = inlined_call_operand.hbm [shape: f32[5,1,64], index: 8, kind: input, shape index: {}]
  %s9 = inlined_call_operand.hbm [shape: f32[5,1,32], index: 9, kind: input, shape index: {}]
  %s10 = inlined_call_operand.vmem [shape: f32[2,8,32], index: 10, kind: input, shape index: {}]
  %s11 = inlined_call_operand.hbm [shape: f32[16,32], index: 11, kind: input, shape index: {}]
  %s12 = inlined_call_operand.hbm [shape: bf16[32,32], index: 12, kind: input, shape index: {}]
  %s13 = inlined_call_operand.vmem [shape: f32[1,32], index: 13, kind: input, shape index: {}]
  %s14 = inlined_call_operand.vmem [shape: f32[1,32], index: 14, kind: input, shape index: {}]
  %s15 = inlined_call_operand.vmem [shape: f32[1,16], index: 15, kind: input, shape index: {}]
  %s16 = inlined_call_operand.hbm [shape: bf16[32,640], index: 16, kind: input, shape index: {}]
  %s17 = inlined_call_operand.hbm [shape: bf16[32,640], index: 17, kind: input, shape index: {}]
  %s18 = inlined_call_operand.vmem [shape: f32[1,640], index: 18, kind: input, shape index: {}]
  %s19 = inlined_call_operand.hbm [shape: f32[4,1,640], index: 19, kind: output, shape index: {0}]
  %s20 = inlined_call_operand.vmem [shape: f32[2,1,1], index: 20, kind: output, shape index: {1}]
  %21 = xla_tuple %s19, %s20
  %s22 = sld [smem:[#allocation0]]
  $region173: #{tpu_custom_call.1} parent=0
    _
  %s24 = ssub.s32 1, %s22
  %s25 = scalar_select 0, %s24, %s22
  $region1: #{tpu_custom_call.1} parent=0
    #allocation2 [shape = 'u8[8192]{0}', space=vmem, size = 0x2000, scoped, tag = 'input window, operand 0']
    #allocation3 [shape = 's32[2]{0}', space=sflag, size = 0x8, scoped, tag = 'scoped memory for tpu_custom_call.1']
    #allocation4 [shape = 's32[2]{0}', space=sflag, size = 0x8, scoped, tag = 'scoped memory for tpu_custom_call.1']
    #allocation5 [shape = 'u8[2048]{0}', space=vmem, size = 0x800, scoped, tag = 'input window, operand 1']
    #allocation6 [shape = 's32[2]{0}', space=sflag, size = 0x8, scoped, tag = 'scoped memory for tpu_custom_call.1']
    #allocation7 [shape = 'u8[8192]{0}', space=vmem, size = 0x2000, scoped, tag = 'input window, operand 2, single buffered']
    #allocation8 [shape = 'u8[8192]{0}', space=vmem, size = 0x2000, scoped, tag = 'input window, operand 3, single buffered']
    #allocation9 [shape = 's32[1]{0}', space=sflag, size = 0x4, scoped, tag = 'scoped memory for tpu_custom_call.1']
    #allocation10 [shape = 'u8[32768]{0}', space=vmem, size = 0x8000, scoped, tag = 'input window, operand 4, single buffered']
    #allocation11 [shape = 'u8[32768]{0}', space=vmem, size = 0x8000, scoped, tag = 'input window, operand 5, single buffered']
    #allocation12 [shape = 's32[1]{0}', space=sflag, size = 0x4, scoped, tag = 'scoped memory for tpu_custom_call.1']
    #allocation13 [shape = 'u8[40960]{0}', space=vmem, size = 0xa000, scoped, tag = 'input window, operand 6, single buffered']
    #allocation14 [shape = 'u8[2560]{0}', space=vmem, size = 0xc00, scoped, tag = 'input window, operand 7, single buffered']
    #allocation15 [shape = 's32[1]{0}', space=sflag, size = 0x4, scoped, tag = 'scoped memory for tpu_custom_call.1']
    #allocation16 [shape = 'u8[2560]{0}', space=vmem, size = 0xc00, scoped, tag = 'input window, operand 8, single buffered']
    #allocation17 [shape = 'u8[2560]{0}', space=vmem, size = 0xc00, scoped, tag = 'input window, operand 9, single buffered']
    #allocation18 [shape = 's32[1]{0}', space=sflag, size = 0x4, scoped, tag = 'scoped memory for tpu_custom_call.1']
    #allocation19 [shape = 'u8[8192]{0}', space=vmem, size = 0x2000, scoped, tag = 'input window, operand 11, single buffered']
    #allocation20 [shape = 'u8[8192]{0}', space=vmem, size = 0x2000, scoped, tag = 'input window, operand 12, single buffered']
    #allocation21 [shape = 's32[1]{0}', space=sflag, size = 0x4, scoped, tag = 'scoped memory for tpu_custom_call.1']
    #allocation22 [shape = 'u8[40960]{0}', space=vmem, size = 0xa000, scoped, tag = 'input window, operand 16, single buffered']
    #allocation23 [shape = 'u8[40960]{0}', space=vmem, size = 0xa000, scoped, tag = 'input window, operand 17, single buffered']
    #allocation24 [shape = 's32[1]{0}', space=sflag, size = 0x4, scoped, tag = 'scoped memory for tpu_custom_call.1']
    #allocation25 [shape = 'u8[10240]{0}', space=vmem, size = 0x2800, scoped, tag = 'output window, operand 0']
    %26 = vsyncpa [#allocation3], 0
    %s27 = scalar_lea.sflag [#allocation3], 1
    %28 = vsyncpa %s27, 0
    %29 = vsyncpa [#allocation6], 0
    %s30 = scalar_lea.sflag [#allocation6], 1
    %31 = vsyncpa %s30, 0
    %32 = vsyncpa [#allocation9], 0
    %33 = vsyncpa [#allocation12], 0
    %34 = vsyncpa [#allocation15], 0
    %35 = vsyncpa [#allocation18], 0
    %36 = vsyncpa [#allocation21], 0
    %37 = vsyncpa [#allocation24], 0
    %38 = vsyncpa [#allocation4], 0
    %s39 = scalar_lea.sflag [#allocation4], 1
    %40 = vsyncpa %s39, 0
    loop: start=0, step=1, limit=4
    $region2: #{tpu_custom_call.1} parent=1 // loop_pre_header
      _
    $region3: #{tpu_custom_call.1} parent=1 // loop_header
      %s42 = sphi 0, %s46
      %p43 = scmp.ge.s32.totalorder %s42, 4
      %s52 = sphi 0, %s54
      %s55 = sphi 0, %s52
      %s56 = sphi 0, %s55
      %s72 = sphi 0, %s56
      %s78 = sphi 0, %s80
      %s81 = sphi 0, %s78
      %s82 = sphi 0, %s81
      %s98 = sphi 0, %s82
      %s102 = sphi 0, %s102
      %s104 = sphi 0, %s102
      %s105 = sphi 0, %s104
      %s119 = sphi 0, %s105
      %s123 = sphi 0, %s123
      %s125 = sphi 0, %s123
      %s126 = sphi 0, %s125
      %s140 = sphi 0, %s126
      %s144 = sphi 0, %s144
      %s146 = sphi 0, %s144
      %s147 = sphi 0, %s146
      %s161 = sphi 0, %s147
      %s165 = sphi 0, %s165
      %s167 = sphi 0, %s165
      %s168 = sphi 0, %s167
      %s182 = sphi 0, %s168
      %s186 = sphi 0, %s186
      %s188 = sphi 0, %s186
      %s189 = sphi 0, %s188
      %s203 = sphi 0, %s189
      %s207 = sphi 0, %s207
      %s209 = sphi 0, %s207
      %s210 = sphi 0, %s209
      %s224 = sphi 0, %s210
      %s228 = sphi 0, %s228
      %s230 = sphi 0, %s228
      %s231 = sphi 0, %s230
      %s245 = sphi 0, %s231
      %s249 = sphi 0, %s249
      %s251 = sphi 0, %s249
      %s252 = sphi 0, %s251
      %s266 = sphi 0, %s252
      %s270 = sphi 0, %s270
      %s272 = sphi 0, %s270
      %s273 = sphi 0, %s272
      %s287 = sphi 0, %s273
      %s291 = sphi 0, %s291
      %s293 = sphi 0, %s291
      %s294 = sphi 0, %s293
      %s308 = sphi 0, %s294
      %s312 = sphi 0, %s312
      %s314 = sphi 0, %s312
      %s315 = sphi 0, %s314
      %s329 = sphi 0, %s315
      %s333 = sphi 0, %s333
      %s335 = sphi 0, %s333
      %s336 = sphi 0, %s335
      %s350 = sphi 0, %s336
      %s354 = sphi 0, %s354
      %s356 = sphi 0, %s354
      %s357 = sphi 0, %s356
      %s371 = sphi 0, %s357
      %s375 = sphi 0, %s375
      %s377 = sphi 0, %s375
      %s378 = sphi 0, %s377
      %s392 = sphi 0, %s378
      %s396 = sphi 0, %s396
      %s398 = sphi 0, %s396
      %s399 = sphi 0, %s398
      %s413 = sphi 0, %s399
      %s417 = sphi 0, %s417
      %s419 = sphi 0, %s417
      %s420 = sphi 0, %s419
      %s434 = sphi 0, %s420
      %s438 = sphi 0, %s438
      %s440 = sphi 0, %s438
      %s441 = sphi 0, %s440
      %s455 = sphi 0, %s441
      %s461 = sphi 0, %s463
      %s464 = sphi 0, %s461
      %s465 = sphi 0, %s464
      %s481 = sphi 0, %s465
      %s487 = sphi 0, %s489
      %s490 = sphi 0, %s487
      %s491 = sphi 0, %s490
      %s507 = sphi 0, %s491
    $region4: #{tpu_custom_call.1} parent=1 // loop_header_branch
      %45 = sbr.rel (%p43) target = $region8
    $region5: #{tpu_custom_call.1} parent=1 // loop_body
      %s47 = ssub.s32 %s42, 1
      %s48 = ssub.s32 %s42, 2
      %s49 = sadd.s32 %s42, 1
      %s50 = ssub.s32 %s42, %s49
      %p51 = scmp.eq.s32.totalorder %s50, 0
      %s53 = sadd.s32 %s52, 1
      %s54 = scalar_select %p51, %s52, %s53
      %p57 = pneg %p51
      %p58 = scmp.eq.s32.totalorder %s42, 1
      %p59 = por %p57, %p58
      %p60 = scmp.ne.s32.totalorder %s52, %s55
      %p61 = scmp.eq.s32.totalorder %s42, 0
      %p62 = por %p60, %p61
      %p63 = scmp.ne.s32.totalorder %s52, %s55
      %p64 = scmp.eq.s32.totalorder %s47, 1
      %p65 = por %p63, %p64
      %p66 = scmp.ne.s32.totalorder %s55, %s56
      %p67 = scmp.eq.s32.totalorder %s47, 0
      %p68 = por %p66, %p67
      %p69 = scmp.ne.s32.totalorder %s55, %s56
      %p70 = scmp.eq.s32.totalorder %s48, 1
      %p71 = por %p69, %p70
      %p73 = scmp.ne.s32.totalorder %s56, %s72
      %p74 = scmp.eq.s32.totalorder %s48, 0
      %p75 = por %p73, %p74
      %s76 = ssub.s32 %s42, %s49
      %p77 = scmp.eq.s32.totalorder %s76, 0
      %s79 = sadd.s32 %s78, 1
      %s80 = scalar_select %p77, %s78, %s79
      %p83 = pneg %p77
      %p84 = scmp.eq.s32.totalorder %s42, 1
      %p85 = por %p83, %p84
      %p86 = scmp.ne.s32.totalorder %s78, %s81
      %p87 = scmp.eq.s32.totalorder %s42, 0
      %p88 = por %p86, %p87
      %p89 = scmp.ne.s32.totalorder %s78, %s81
      %p90 = scmp.eq.s32.totalorder %s47, 1
      %p91 = por %p89, %p90
      %p92 = scmp.ne.s32.totalorder %s81, %s82
      %p93 = scmp.eq.s32.totalorder %s47, 0
      %p94 = por %p92, %p93
      %p95 = scmp.ne.s32.totalorder %s81, %s82
      %p96 = scmp.eq.s32.totalorder %s48, 1
      %p97 = por %p95, %p96
      %p99 = scmp.ne.s32.totalorder %s82, %s98
      %p100 = scmp.eq.s32.totalorder %s48, 0
      %p101 = por %p99, %p100
      %s103 = sadd.s32 %s102, 1
      %p106 = scmp.eq.s32.totalorder %s42, 1
      %p107 = scmp.ne.s32.totalorder %s102, %s104
      %p108 = scmp.eq.s32.totalorder %s42, 0
      %p109 = por %p107, %p108
      %p110 = scmp.ne.s32.totalorder %s102, %s104
      %p111 = scmp.eq.s32.totalorder %s47, 1
      %p112 = por %p110, %p111
      %p113 = scmp.ne.s32.totalorder %s104, %s105
      %p114 = scmp.eq.s32.totalorder %s47, 0
      %p115 = por %p113, %p114
      %p116 = scmp.ne.s32.totalorder %s104, %s105
      %p117 = scmp.eq.s32.totalorder %s48, 1
      %p118 = por %p116, %p117
      %p120 = scmp.ne.s32.totalorder %s105, %s119
      %p121 = scmp.eq.s32.totalorder %s48, 0
      %p122 = por %p120, %p121
      %s124 = sadd.s32 %s123, 1
      %p127 = scmp.eq.s32.totalorder %s42, 1
      %p128 = scmp.ne.s32.totalorder %s123, %s125
      %p129 = scmp.eq.s32.totalorder %s42, 0
      %p130 = por %p128, %p129
      %p131 = scmp.ne.s32.totalorder %s123, %s125
      %p132 = scmp.eq.s32.totalorder %s47, 1
      %p133 = por %p131, %p132
      %p134 = scmp.ne.s32.totalorder %s125, %s126
      %p135 = scmp.eq.s32.totalorder %s47, 0
      %p136 = por %p134, %p135
      %p137 = scmp.ne.s32.totalorder %s125, %s126
      %p138 = scmp.eq.s32.totalorder %s48, 1
      %p139 = por %p137, %p138
      %p141 = scmp.ne.s32.totalorder %s126, %s140
      %p142 = scmp.eq.s32.totalorder %s48, 0
      %p143 = por %p141, %p142
      %s145 = sadd.s32 %s144, 1
      %p148 = scmp.eq.s32.totalorder %s42, 1
      %p149 = scmp.ne.s32.totalorder %s144, %s146
      %p150 = scmp.eq.s32.totalorder %s42, 0
      %p151 = por %p149, %p150
      %p152 = scmp.ne.s32.totalorder %s144, %s146
      %p153 = scmp.eq.s32.totalorder %s47, 1
      %p154 = por %p152, %p153
      %p155 = scmp.ne.s32.totalorder %s146, %s147
      %p156 = scmp.eq.s32.totalorder %s47, 0
      %p157 = por %p155, %p156
      %p158 = scmp.ne.s32.totalorder %s146, %s147
      %p159 = scmp.eq.s32.totalorder %s48, 1
      %p160 = por %p158, %p159
      %p162 = scmp.ne.s32.totalorder %s147, %s161
      %p163 = scmp.eq.s32.totalorder %s48, 0
      %p164 = por %p162, %p163
      %s166 = sadd.s32 %s165, 1
      %p169 = scmp.eq.s32.totalorder %s42, 1
      %p170 = scmp.ne.s32.totalorder %s165, %s167
      %p171 = scmp.eq.s32.totalorder %s42, 0
      %p172 = por %p170, %p171
      %p173 = scmp.ne.s32.totalorder %s165, %s167
      %p174 = scmp.eq.s32.totalorder %s47, 1
      %p175 = por %p173, %p174
      %p176 = scmp.ne.s32.totalorder %s167, %s168
      %p177 = scmp.eq.s32.totalorder %s47, 0
      %p178 = por %p176, %p177
      %p179 = scmp.ne.s32.totalorder %s167, %s168
      %p180 = scmp.eq.s32.totalorder %s48, 1
      %p181 = por %p179, %p180
      %p183 = scmp.ne.s32.totalorder %s168, %s182
      %p184 = scmp.eq.s32.totalorder %s48, 0
      %p185 = por %p183, %p184
      %s187 = sadd.s32 %s186, 1
      %p190 = scmp.eq.s32.totalorder %s42, 1
      %p191 = scmp.ne.s32.totalorder %s186, %s188
      %p192 = scmp.eq.s32.totalorder %s42, 0
      %p193 = por %p191, %p192
      %p194 = scmp.ne.s32.totalorder %s186, %s188
      %p195 = scmp.eq.s32.totalorder %s47, 1
      %p196 = por %p194, %p195
      %p197 = scmp.ne.s32.totalorder %s188, %s189
      %p198 = scmp.eq.s32.totalorder %s47, 0
      %p199 = por %p197, %p198
      %p200 = scmp.ne.s32.totalorder %s188, %s189
      %p201 = scmp.eq.s32.totalorder %s48, 1
      %p202 = por %p200, %p201
      %p204 = scmp.ne.s32.totalorder %s189, %s203
      %p205 = scmp.eq.s32.totalorder %s48, 0
      %p206 = por %p204, %p205
      %s208 = sadd.s32 %s207, 1
      %p211 = scmp.eq.s32.totalorder %s42, 1
      %p212 = scmp.ne.s32.totalorder %s207, %s209
      %p213 = scmp.eq.s32.totalorder %s42, 0
      %p214 = por %p212, %p213
      %p215 = scmp.ne.s32.totalorder %s207, %s209
      %p216 = scmp.eq.s32.totalorder %s47, 1
      %p217 = por %p215, %p216
      %p218 = scmp.ne.s32.totalorder %s209, %s210
      %p219 = scmp.eq.s32.totalorder %s47, 0
      %p220 = por %p218, %p219
      %p221 = scmp.ne.s32.totalorder %s209, %s210
      %p222 = scmp.eq.s32.totalorder %s48, 1
      %p223 = por %p221, %p222
      %p225 = scmp.ne.s32.totalorder %s210, %s224
      %p226 = scmp.eq.s32.totalorder %s48, 0
      %p227 = por %p225, %p226
      %s229 = sadd.s32 %s228, 1
      %p232 = scmp.eq.s32.totalorder %s42, 1
      %p233 = scmp.ne.s32.totalorder %s228, %s230
      %p234 = scmp.eq.s32.totalorder %s42, 0
      %p235 = por %p233, %p234
      %p236 = scmp.ne.s32.totalorder %s228, %s230
      %p237 = scmp.eq.s32.totalorder %s47, 1
      %p238 = por %p236, %p237
      %p239 = scmp.ne.s32.totalorder %s230, %s231
      %p240 = scmp.eq.s32.totalorder %s47, 0
      %p241 = por %p239, %p240
      %p242 = scmp.ne.s32.totalorder %s230, %s231
      %p243 = scmp.eq.s32.totalorder %s48, 1
      %p244 = por %p242, %p243
      %p246 = scmp.ne.s32.totalorder %s231, %s245
      %p247 = scmp.eq.s32.totalorder %s48, 0
      %p248 = por %p246, %p247
      %s250 = sadd.s32 %s249, 1
      %p253 = scmp.eq.s32.totalorder %s42, 1
      %p254 = scmp.ne.s32.totalorder %s249, %s251
      %p255 = scmp.eq.s32.totalorder %s42, 0
      %p256 = por %p254, %p255
      %p257 = scmp.ne.s32.totalorder %s249, %s251
      %p258 = scmp.eq.s32.totalorder %s47, 1
      %p259 = por %p257, %p258
      %p260 = scmp.ne.s32.totalorder %s251, %s252
      %p261 = scmp.eq.s32.totalorder %s47, 0
      %p262 = por %p260, %p261
      %p263 = scmp.ne.s32.totalorder %s251, %s252
      %p264 = scmp.eq.s32.totalorder %s48, 1
      %p265 = por %p263, %p264
      %p267 = scmp.ne.s32.totalorder %s252, %s266
      %p268 = scmp.eq.s32.totalorder %s48, 0
      %p269 = por %p267, %p268
      %s271 = sadd.s32 %s270, 1
      %p274 = scmp.eq.s32.totalorder %s42, 1
      %p275 = scmp.ne.s32.totalorder %s270, %s272
      %p276 = scmp.eq.s32.totalorder %s42, 0
      %p277 = por %p275, %p276
      %p278 = scmp.ne.s32.totalorder %s270, %s272
      %p279 = scmp.eq.s32.totalorder %s47, 1
      %p280 = por %p278, %p279
      %p281 = scmp.ne.s32.totalorder %s272, %s273
      %p282 = scmp.eq.s32.totalorder %s47, 0
      %p283 = por %p281, %p282
      %p284 = scmp.ne.s32.totalorder %s272, %s273
      %p285 = scmp.eq.s32.totalorder %s48, 1
      %p286 = por %p284, %p285
      %p288 = scmp.ne.s32.totalorder %s273, %s287
      %p289 = scmp.eq.s32.totalorder %s48, 0
      %p290 = por %p288, %p289
      %s292 = sadd.s32 %s291, 1
      %p295 = scmp.eq.s32.totalorder %s42, 1
      %p296 = scmp.ne.s32.totalorder %s291, %s293
      %p297 = scmp.eq.s32.totalorder %s42, 0
      %p298 = por %p296, %p297
      %p299 = scmp.ne.s32.totalorder %s291, %s293
      %p300 = scmp.eq.s32.totalorder %s47, 1
      %p301 = por %p299, %p300
      %p302 = scmp.ne.s32.totalorder %s293, %s294
      %p303 = scmp.eq.s32.totalorder %s47, 0
      %p304 = por %p302, %p303
      %p305 = scmp.ne.s32.totalorder %s293, %s294
      %p306 = scmp.eq.s32.totalorder %s48, 1
      %p307 = por %p305, %p306
      %p309 = scmp.ne.s32.totalorder %s294, %s308
      %p310 = scmp.eq.s32.totalorder %s48, 0
      %p311 = por %p309, %p310
      %s313 = sadd.s32 %s312, 1
      %p316 = scmp.eq.s32.totalorder %s42, 1
      %p317 = scmp.ne.s32.totalorder %s312, %s314
      %p318 = scmp.eq.s32.totalorder %s42, 0
      %p319 = por %p317, %p318
      %p320 = scmp.ne.s32.totalorder %s312, %s314
      %p321 = scmp.eq.s32.totalorder %s47, 1
      %p322 = por %p320, %p321
      %p323 = scmp.ne.s32.totalorder %s314, %s315
      %p324 = scmp.eq.s32.totalorder %s47, 0
      %p325 = por %p323, %p324
      %p326 = scmp.ne.s32.totalorder %s314, %s315
      %p327 = scmp.eq.s32.totalorder %s48, 1
      %p328 = por %p326, %p327
      %p330 = scmp.ne.s32.totalorder %s315, %s329
      %p331 = scmp.eq.s32.totalorder %s48, 0
      %p332 = por %p330, %p331
      %s334 = sadd.s32 %s333, 1
      %p337 = scmp.eq.s32.totalorder %s42, 1
      %p338 = scmp.ne.s32.totalorder %s333, %s335
      %p339 = scmp.eq.s32.totalorder %s42, 0
      %p340 = por %p338, %p339
      %p341 = scmp.ne.s32.totalorder %s333, %s335
      %p342 = scmp.eq.s32.totalorder %s47, 1
      %p343 = por %p341, %p342
      %p344 = scmp.ne.s32.totalorder %s335, %s336
      %p345 = scmp.eq.s32.totalorder %s47, 0
      %p346 = por %p344, %p345
      %p347 = scmp.ne.s32.totalorder %s335, %s336
      %p348 = scmp.eq.s32.totalorder %s48, 1
      %p349 = por %p347, %p348
      %p351 = scmp.ne.s32.totalorder %s336, %s350
      %p352 = scmp.eq.s32.totalorder %s48, 0
      %p353 = por %p351, %p352
      %s355 = sadd.s32 %s354, 1
      %p358 = scmp.eq.s32.totalorder %s42, 1
      %p359 = scmp.ne.s32.totalorder %s354, %s356
      %p360 = scmp.eq.s32.totalorder %s42, 0
      %p361 = por %p359, %p360
      %p362 = scmp.ne.s32.totalorder %s354, %s356
      %p363 = scmp.eq.s32.totalorder %s47, 1
      %p364 = por %p362, %p363
      %p365 = scmp.ne.s32.totalorder %s356, %s357
      %p366 = scmp.eq.s32.totalorder %s47, 0
      %p367 = por %p365, %p366
      %p368 = scmp.ne.s32.totalorder %s356, %s357
      %p369 = scmp.eq.s32.totalorder %s48, 1
      %p370 = por %p368, %p369
      %p372 = scmp.ne.s32.totalorder %s357, %s371
      %p373 = scmp.eq.s32.totalorder %s48, 0
      %p374 = por %p372, %p373
      %s376 = sadd.s32 %s375, 1
      %p379 = scmp.eq.s32.totalorder %s42, 1
      %p380 = scmp.ne.s32.totalorder %s375, %s377
      %p381 = scmp.eq.s32.totalorder %s42, 0
      %p382 = por %p380, %p381
      %p383 = scmp.ne.s32.totalorder %s375, %s377
      %p384 = scmp.eq.s32.totalorder %s47, 1
      %p385 = por %p383, %p384
      %p386 = scmp.ne.s32.totalorder %s377, %s378
      %p387 = scmp.eq.s32.totalorder %s47, 0
      %p388 = por %p386, %p387
      %p389 = scmp.ne.s32.totalorder %s377, %s378
      %p390 = scmp.eq.s32.totalorder %s48, 1
      %p391 = por %p389, %p390
      %p393 = scmp.ne.s32.totalorder %s378, %s392
      %p394 = scmp.eq.s32.totalorder %s48, 0
      %p395 = por %p393, %p394
      %s397 = sadd.s32 %s396, 1
      %p400 = scmp.eq.s32.totalorder %s42, 1
      %p401 = scmp.ne.s32.totalorder %s396, %s398
      %p402 = scmp.eq.s32.totalorder %s42, 0
      %p403 = por %p401, %p402
      %p404 = scmp.ne.s32.totalorder %s396, %s398
      %p405 = scmp.eq.s32.totalorder %s47, 1
      %p406 = por %p404, %p405
      %p407 = scmp.ne.s32.totalorder %s398, %s399
      %p408 = scmp.eq.s32.totalorder %s47, 0
      %p409 = por %p407, %p408
      %p410 = scmp.ne.s32.totalorder %s398, %s399
      %p411 = scmp.eq.s32.totalorder %s48, 1
      %p412 = por %p410, %p411
      %p414 = scmp.ne.s32.totalorder %s399, %s413
      %p415 = scmp.eq.s32.totalorder %s48, 0
      %p416 = por %p414, %p415
      %s418 = sadd.s32 %s417, 1
      %p421 = scmp.eq.s32.totalorder %s42, 1
      %p422 = scmp.ne.s32.totalorder %s417, %s419
      %p423 = scmp.eq.s32.totalorder %s42, 0
      %p424 = por %p422, %p423
      %p425 = scmp.ne.s32.totalorder %s417, %s419
      %p426 = scmp.eq.s32.totalorder %s47, 1
      %p427 = por %p425, %p426
      %p428 = scmp.ne.s32.totalorder %s419, %s420
      %p429 = scmp.eq.s32.totalorder %s47, 0
      %p430 = por %p428, %p429
      %p431 = scmp.ne.s32.totalorder %s419, %s420
      %p432 = scmp.eq.s32.totalorder %s48, 1
      %p433 = por %p431, %p432
      %p435 = scmp.ne.s32.totalorder %s420, %s434
      %p436 = scmp.eq.s32.totalorder %s48, 0
      %p437 = por %p435, %p436
      %s439 = sadd.s32 %s438, 1
      %p442 = scmp.eq.s32.totalorder %s42, 1
      %p443 = scmp.ne.s32.totalorder %s438, %s440
      %p444 = scmp.eq.s32.totalorder %s42, 0
      %p445 = por %p443, %p444
      %p446 = scmp.ne.s32.totalorder %s438, %s440
      %p447 = scmp.eq.s32.totalorder %s47, 1
      %p448 = por %p446, %p447
      %p449 = scmp.ne.s32.totalorder %s440, %s441
      %p450 = scmp.eq.s32.totalorder %s47, 0
      %p451 = por %p449, %p450
      %p452 = scmp.ne.s32.totalorder %s440, %s441
      %p453 = scmp.eq.s32.totalorder %s48, 1
      %p454 = por %p452, %p453
      %p456 = scmp.ne.s32.totalorder %s441, %s455
      %p457 = scmp.eq.s32.totalorder %s48, 0
      %p458 = por %p456, %p457
      %s459 = ssub.s32 %s42, %s49
      %p460 = scmp.eq.s32.totalorder %s459, 0
      %s462 = sadd.s32 %s461, 1
      %s463 = scalar_select %p460, %s461, %s462
      %p466 = pneg %p460
      %p467 = scmp.eq.s32.totalorder %s42, 1
      %p468 = por %p466, %p467
      %p469 = scmp.ne.s32.totalorder %s461, %s464
      %p470 = scmp.eq.s32.totalorder %s42, 0
      %p471 = por %p469, %p470
      %p472 = scmp.ne.s32.totalorder %s461, %s464
      %p473 = scmp.eq.s32.totalorder %s47, 1
      %p474 = por %p472, %p473
      %p475 = scmp.ne.s32.totalorder %s464, %s465
      %p476 = scmp.eq.s32.totalorder %s47, 0
      %p477 = por %p475, %p476
      %p478 = scmp.ne.s32.totalorder %s464, %s465
      %p479 = scmp.eq.s32.totalorder %s48, 1
      %p480 = por %p478, %p479
      %p482 = scmp.ne.s32.totalorder %s465, %s481
      %p483 = scmp.eq.s32.totalorder %s48, 0
      %p484 = por %p482, %p483
      %s485 = ssub.s32 %s42, %s49
      %p486 = scmp.eq.s32.totalorder %s485, 0
      %s488 = sadd.s32 %s487, 1
      %s489 = scalar_select %p486, %s487, %s488
      %p492 = pneg %p486
      %p493 = scmp.eq.s32.totalorder %s42, 1
      %p494 = por %p492, %p493
      %p495 = scmp.ne.s32.totalorder %s487, %s490
      %p496 = scmp.eq.s32.totalorder %s42, 0
      %p497 = por %p495, %p496
      %p498 = scmp.ne.s32.totalorder %s487, %s490
      %p499 = scmp.eq.s32.totalorder %s47, 1
      %p500 = por %p498, %p499
      %p501 = scmp.ne.s32.totalorder %s490, %s491
      %p502 = scmp.eq.s32.totalorder %s47, 0
      %p503 = por %p501, %p502
      %p504 = scmp.ne.s32.totalorder %s490, %s491
      %p505 = scmp.eq.s32.totalorder %s48, 1
      %p506 = por %p504, %p505
      %p508 = scmp.ne.s32.totalorder %s491, %s507
      %p509 = scmp.eq.s32.totalorder %s48, 0
      %p510 = por %p508, %p509
      %p511 = scmp.le.s32.totalorder 1, %s42
      %p512 = scmp.lt.s32.totalorder %s42, 3
      %p513 = pnand %p511, %p512
      %p514 = pneg %p513
      // Predicated region
      $region9: #{tpu_custom_call.1} parent=5 // pred_check
        _
      $region10: #{tpu_custom_call.1} parent=5 // pred_check_branch
        %516 = sbr.rel (%p513) target = $region12
      $region11: #{tpu_custom_call.1} parent=5 // pred_region
        %s517 = ssub.s32 %s42, 1
        // Predicated region
        $region13: #{tpu_custom_call.1} parent=11 // pred_check
          %p518 = pneg %p115
        $region14: #{tpu_custom_call.1} parent=11 // pred_check_branch
          %520 = sbr.rel (%p518) target = $region16
        $region15: #{tpu_custom_call.1} parent=11 // pred_region
          %s522 = ssub.s32 256, 256
          %523 = vsyncadd [#allocation6], %s522
          %s524 = sshll.u32 [#allocation7], 4
          %s525 = int_to_ptr.vmem [resolvable:$true] %s524
          %530 = dma.hbm_to_vmem [thread:$0]  %s2, 256, %s525, [#allocation6], 64, 64, 4
        $region16: #{tpu_custom_call.1} parent=11 // pred_fallthru
          _
        // Predicated region
        $region17: #{tpu_custom_call.1} parent=11 // pred_check
          %p531 = pneg %p136
        $region18: #{tpu_custom_call.1} parent=11 // pred_check_branch
          %533 = sbr.rel (%p531) target = $region20
        $region19: #{tpu_custom_call.1} parent=11 // pred_region
          %s535 = ssub.s32 256, 256
          %536 = vsyncadd [#allocation9], %s535
          %s537 = sshll.u32 [#allocation8], 4
          %s538 = int_to_ptr.vmem [resolvable:$true] %s537
          %543 = dma.hbm_to_vmem [thread:$0]  %s3, 256, %s538, [#allocation9], 64, 64, 4
        $region20: #{tpu_custom_call.1} parent=11 // pred_fallthru
          _
        // Predicated region
        $region21: #{tpu_custom_call.1} parent=11 // pred_check
          %p544 = pneg %p157
        $region22: #{tpu_custom_call.1} parent=11 // pred_check_branch
          %546 = sbr.rel (%p544) target = $region24
        $region23: #{tpu_custom_call.1} parent=11 // pred_region
          %s548 = ssub.s32 1024, 1024
          %549 = vsyncadd [#allocation9], %s548
          %s550 = sshll.u32 [#allocation10], 4
          %s551 = int_to_ptr.vmem [resolvable:$true] %s550
          %556 = dma.hbm_to_vmem [thread:$0]  %s4, 1024, %s551, [#allocation9], 64, 64, 4
        $region24: #{tpu_custom_call.1} parent=11 // pred_fallthru
          _
        // Predicated region
        $region25: #{tpu_custom_call.1} parent=11 // pred_check
          %p557 = pneg %p178
        $region26: #{tpu_custom_call.1} parent=11 // pred_check_branch
          %559 = sbr.rel (%p557) target = $region28
        $region27: #{tpu_custom_call.1} parent=11 // pred_region
          %s561 = ssub.s32 1024, 1024
          %562 = vsyncadd [#allocation12], %s561
          %s563 = sshll.u32 [#allocation11], 4
          %s564 = int_to_ptr.vmem [resolvable:$true] %s563
          %569 = dma.hbm_to_vmem [thread:$0]  %s5, 1024, %s564, [#allocation12], 64, 64, 4
        $region28: #{tpu_custom_call.1} parent=11 // pred_fallthru
          _
        // Predicated region
        $region29: #{tpu_custom_call.1} parent=11 // pred_check
          %p570 = pneg %p199
        $region30: #{tpu_custom_call.1} parent=11 // pred_check_branch
          %572 = sbr.rel (%p570) target = $region32
        $region31: #{tpu_custom_call.1} parent=11 // pred_region
          %s574 = ssub.s32 1280, 1280
          %575 = vsyncadd [#allocation12], %s574
          %s576 = sshll.u32 [#allocation13], 4
          %s577 = int_to_ptr.vmem [resolvable:$true] %s576
          %582 = dma.hbm_to_vmem [thread:$0]  %s6, 1280, %s577, [#allocation12], 64, 64, 4
        $region32: #{tpu_custom_call.1} parent=11 // pred_fallthru
          _
        // Predicated region
        $region33: #{tpu_custom_call.1} parent=11 // pred_check
          %p583 = pneg %p220
        $region34: #{tpu_custom_call.1} parent=11 // pred_check_branch
          %585 = sbr.rel (%p583) target = $region36
        $region35: #{tpu_custom_call.1} parent=11 // pred_region
          %s587 = ssub.s32 80, 80
          %588 = vsyncadd [#allocation15], %s587
          %s589 = sshll.u32 [#allocation14], 4
          %s590 = int_to_ptr.vmem [resolvable:$true] %s589
          %595 = dma.hbm_to_vmem [thread:$0]  %s7, 80, %s590, [#allocation15], 16, 16, 1
        $region36: #{tpu_custom_call.1} parent=11 // pred_fallthru
          _
        // Predicated region
        $region37: #{tpu_custom_call.1} parent=11 // pred_check
          %p596 = pneg %p241
        $region38: #{tpu_custom_call.1} parent=11 // pred_check_branch
          %598 = sbr.rel (%p596) target = $region40
        $region39: #{tpu_custom_call.1} parent=11 // pred_region
          %s600 = ssub.s32 80, 80
          %601 = vsyncadd [#allocation15], %s600
          %s602 = sshll.u32 [#allocation16], 4
          %s603 = int_to_ptr.vmem [resolvable:$true] %s602
          %608 = dma.hbm_to_vmem [thread:$0]  %s8, 80, %s603, [#allocation15], 16, 16, 1
        $region40: #{tpu_custom_call.1} parent=11 // pred_fallthru
          _
        // Predicated region
        $region41: #{tpu_custom_call.1} parent=11 // pred_check
          %p609 = pneg %p262
        $region42: #{tpu_custom_call.1} parent=11 // pred_check_branch
          %611 = sbr.rel (%p609) target = $region44
        $region43: #{tpu_custom_call.1} parent=11 // pred_region
          %s613 = ssub.s32 80, 80
          %614 = vsyncadd [#allocation18], %s613
          %s615 = sshll.u32 [#allocation17], 4
          %s616 = int_to_ptr.vmem [resolvable:$true] %s615
          %621 = dma.hbm_to_vmem [thread:$0]  %s9, 80, %s616, [#allocation18], 16, 16, 1
        $region44: #{tpu_custom_call.1} parent=11 // pred_fallthru
          _
        // Predicated region
        $region45: #{tpu_custom_call.1} parent=11 // pred_check
          %p622 = pneg %p283
        $region46: #{tpu_custom_call.1} parent=11 // pred_check_branch
          %624 = sbr.rel (%p622) target = $region48
        $region47: #{tpu_custom_call.1} parent=11 // pred_region
          _
        $region48: #{tpu_custom_call.1} parent=11 // pred_fallthru
          _
        // Predicated region
        $region49: #{tpu_custom_call.1} parent=11 // pred_check
          %p625 = pneg %p304
        $region50: #{tpu_custom_call.1} parent=11 // pred_check_branch
          %627 = sbr.rel (%p625) target = $region52
        $region51: #{tpu_custom_call.1} parent=11 // pred_region
          %s629 = ssub.s32 256, 256
          %630 = vsyncadd [#allocation18], %s629
          %s631 = sshll.u32 [#allocation19], 4
          %s632 = int_to_ptr.vmem [resolvable:$true] %s631
          %637 = dma.hbm_to_vmem [thread:$0]  %s11, 256, %s632, [#allocation18], 128, 128, 8
        $region52: #{tpu_custom_call.1} parent=11 // pred_fallthru
          _
        // Predicated region
        $region53: #{tpu_custom_call.1} parent=11 // pred_check
          %p638 = pneg %p325
        $region54: #{tpu_custom_call.1} parent=11 // pred_check_branch
          %640 = sbr.rel (%p638) target = $region56
        $region55: #{tpu_custom_call.1} parent=11 // pred_region
          %s642 = ssub.s32 256, 256
          %643 = vsyncadd [#allocation21], %s642
          %s644 = sshll.u32 [#allocation20], 4
          %s645 = int_to_ptr.vmem [resolvable:$true] %s644
          %650 = dma.hbm_to_vmem [thread:$0]  %s12, 256, %s645, [#allocation21], 64, 64, 4
        $region56: #{tpu_custom_call.1} parent=11 // pred_fallthru
          _
        // Predicated region
        $region57: #{tpu_custom_call.1} parent=11 // pred_check
          %p651 = pneg %p346
        $region58: #{tpu_custom_call.1} parent=11 // pred_check_branch
          %653 = sbr.rel (%p651) target = $region60
        $region59: #{tpu_custom_call.1} parent=11 // pred_region
          _
        $region60: #{tpu_custom_call.1} parent=11 // pred_fallthru
          _
        // Predicated region
        $region61: #{tpu_custom_call.1} parent=11 // pred_check
          %p654 = pneg %p367
        $region62: #{tpu_custom_call.1} parent=11 // pred_check_branch
          %656 = sbr.rel (%p654) target = $region64
        $region63: #{tpu_custom_call.1} parent=11 // pred_region
          _
        $region64: #{tpu_custom_call.1} parent=11 // pred_fallthru
          _
        // Predicated region
        $region65: #{tpu_custom_call.1} parent=11 // pred_check
          %p657 = pneg %p388
        $region66: #{tpu_custom_call.1} parent=11 // pred_check_branch
          %659 = sbr.rel (%p657) target = $region68
        $region67: #{tpu_custom_call.1} parent=11 // pred_region
          _
        $region68: #{tpu_custom_call.1} parent=11 // pred_fallthru
          _
        // Predicated region
        $region69: #{tpu_custom_call.1} parent=11 // pred_check
          %p660 = pneg %p409
        $region70: #{tpu_custom_call.1} parent=11 // pred_check_branch
          %662 = sbr.rel (%p660) target = $region72
        $region71: #{tpu_custom_call.1} parent=11 // pred_region
          %s664 = ssub.s32 1280, 1280
          %665 = vsyncadd [#allocation21], %s664
          %s666 = sshll.u32 [#allocation22], 4
          %s667 = int_to_ptr.vmem [resolvable:$true] %s666
          %672 = dma.hbm_to_vmem [thread:$0]  %s16, 1280, %s667, [#allocation21], 320, 320, 20
        $region72: #{tpu_custom_call.1} parent=11 // pred_fallthru
          _
        // Predicated region
        $region73: #{tpu_custom_call.1} parent=11 // pred_check
          %p673 = pneg %p430
        $region74: #{tpu_custom_call.1} parent=11 // pred_check_branch
          %675 = sbr.rel (%p673) target = $region76
        $region75: #{tpu_custom_call.1} parent=11 // pred_region
          %s677 = ssub.s32 1280, 1280
          %678 = vsyncadd [#allocation24], %s677
          %s679 = sshll.u32 [#allocation23], 4
          %s680 = int_to_ptr.vmem [resolvable:$true] %s679
          %685 = dma.hbm_to_vmem [thread:$0]  %s17, 1280, %s680, [#allocation24], 320, 320, 20
        $region76: #{tpu_custom_call.1} parent=11 // pred_fallthru
          _
        // Predicated region
        $region77: #{tpu_custom_call.1} parent=11 // pred_check
          %p686 = pneg %p451
        $region78: #{tpu_custom_call.1} parent=11 // pred_check_branch
          %688 = sbr.rel (%p686) target = $region80
        $region79: #{tpu_custom_call.1} parent=11 // pred_region
          _
        $region80: #{tpu_custom_call.1} parent=11 // pred_fallthru
          _
      $region12: #{tpu_custom_call.1} parent=5 // pred_fallthru
        _
      %p689 = scmp.lt.s32.totalorder %s42, 2
      // Predicated region
      $region81: #{tpu_custom_call.1} parent=5 // pred_check
        %p690 = pneg %p689
      $region82: #{tpu_custom_call.1} parent=5 // pred_check_branch
        %692 = sbr.rel (%p690) target = $region84
      $region83: #{tpu_custom_call.1} parent=5 // pred_region
        // Predicated region
        $region85: #{tpu_custom_call.1} parent=83 // pred_check
          %p693 = pneg %p62
        $region86: #{tpu_custom_call.1} parent=83 // pred_check_branch
          %695 = sbr.rel (%p693) target = $region88
        $region87: #{tpu_custom_call.1} parent=83 // pred_region
          %s696 = sand.u32 %s52, 1
          %s697 = scalar_lea.sflag [#allocation3], %s696
          %s698 = sand.u32 %s52, 1
          %s699 = smul.addr %s698, 8
          %s700 = scalar_lea.vmem [#allocation2], %s699
          %s701 = smul.u32 2, %s42
          %s703 = ssub.s32 128, 128
          %704 = vsyncadd %s697, %s703
          %s705 = smul.addr %s701, 64
          %s706 = scalar_lea.hbm %s0, %s705
          %s707 = sshll.u32 %s700, 4
          %s708 = int_to_ptr.vmem [resolvable:$true] %s707
          %713 = dma.hbm_to_vmem [thread:$0]  %s706, 128, %s708, %s697, 64, 64, 4
        $region88: #{tpu_custom_call.1} parent=83 // pred_fallthru
          _
        // Predicated region
        $region89: #{tpu_custom_call.1} parent=83 // pred_check
          %p714 = pneg %p88
        $region90: #{tpu_custom_call.1} parent=83 // pred_check_branch
          %716 = sbr.rel (%p714) target = $region92
        $region91: #{tpu_custom_call.1} parent=83 // pred_region
          %s717 = sand.u32 %s42, 1
          %s718 = scalar_lea.sflag [#allocation6], %s717
          %s719 = sand.u32 %s78, 1
          %s720 = smul.addr %s719, 2
          %s721 = scalar_lea.vmem [#allocation5], %s720
          %s722 = smul.u32 2, %s42
          %s724 = ssub.s32 32, 32
          %725 = vsyncadd %s718, %s724
          %s726 = smul.addr %s722, 16
          %s727 = scalar_lea.hbm %s1, %s726
          %s728 = sshll.u32 %s721, 4
          %s729 = int_to_ptr.vmem [resolvable:$true] %s728
          %734 = dma.hbm_to_vmem [thread:$0]  %s727, 32, %s729, %s718, 16, 16, 1
        $region92: #{tpu_custom_call.1} parent=83 // pred_fallthru
          _
      $region84: #{tpu_custom_call.1} parent=5 // pred_fallthru
        _
      %p735 = scmp.le.s32.totalorder 1, %s42
      %p736 = scmp.lt.s32.totalorder %s42, 3
      %p737 = pnand %p735, %p736
      %p738 = pneg %p737
      // Predicated region
      $region93: #{tpu_custom_call.1} parent=5 // pred_check
        _
      $region94: #{tpu_custom_call.1} parent=5 // pred_check_branch
        %740 = sbr.rel (%p737) target = $region96
      $region95: #{tpu_custom_call.1} parent=5 // pred_region
        %s741 = ssub.s32 %s42, 1
        %s742 = sand.u32 %s55, 1
        %s743 = scalar_lea.sflag [#allocation3], %s742
        %s744 = sand.u32 %s55, 1
        %s745 = smul.addr %s744, 8
        %s746 = scalar_lea.vmem [#allocation2], %s745
        // Predicated region
        $region97: #{tpu_custom_call.1} parent=95 // pred_check
          %p747 = pneg %p68
        $region98: #{tpu_custom_call.1} parent=95 // pred_check_branch
          %749 = sbr.rel (%p747) target = $region100
        $region99: #{tpu_custom_call.1} parent=95 // pred_region
          %750 = dma.done %s743, 128
        $region100: #{tpu_custom_call.1} parent=95 // pred_fallthru
          _
        %s751 = sand.u32 %s47, 1
        %s752 = scalar_lea.sflag [#allocation6], %s751
        %s753 = sand.u32 %s81, 1
        %s754 = smul.addr %s753, 2
        %s755 = scalar_lea.vmem [#allocation5], %s754
        // Predicated region
        $region101: #{tpu_custom_call.1} parent=95 // pred_check
          %p756 = pneg %p94
        $region102: #{tpu_custom_call.1} parent=95 // pred_check_branch
          %758 = sbr.rel (%p756) target = $region104
        $region103: #{tpu_custom_call.1} parent=95 // pred_region
          %759 = dma.done %s752, 32
        $region104: #{tpu_custom_call.1} parent=95 // pred_fallthru
          _
        // Predicated region
        $region105: #{tpu_custom_call.1} parent=95 // pred_check
          %p760 = pneg %p115
        $region106: #{tpu_custom_call.1} parent=95 // pred_check_branch
          %762 = sbr.rel (%p760) target = $region108
        $region107: #{tpu_custom_call.1} parent=95 // pred_region
          %763 = dma.done [#allocation6], 256
        $region108: #{tpu_custom_call.1} parent=95 // pred_fallthru
          _
        // Predicated region
        $region109: #{tpu_custom_call.1} parent=95 // pred_check
          %p764 = pneg %p136
        $region110: #{tpu_custom_call.1} parent=95 // pred_check_branch
          %766 = sbr.rel (%p764) target = $region112
        $region111: #{tpu_custom_call.1} parent=95 // pred_region
          %767 = dma.done [#allocation9], 256
        $region112: #{tpu_custom_call.1} parent=95 // pred_fallthru
          _
        // Predicated region
        $region113: #{tpu_custom_call.1} parent=95 // pred_check
          %p768 = pneg %p157
        $region114: #{tpu_custom_call.1} parent=95 // pred_check_branch
          %770 = sbr.rel (%p768) target = $region116
        $region115: #{tpu_custom_call.1} parent=95 // pred_region
          %771 = dma.done [#allocation9], 1024
        $region116: #{tpu_custom_call.1} parent=95 // pred_fallthru
          _
        // Predicated region
        $region117: #{tpu_custom_call.1} parent=95 // pred_check
          %p772 = pneg %p178
        $region118: #{tpu_custom_call.1} parent=95 // pred_check_branch
          %774 = sbr.rel (%p772) target = $region120
        $region119: #{tpu_custom_call.1} parent=95 // pred_region
          %775 = dma.done [#allocation12], 1024
        $region120: #{tpu_custom_call.1} parent=95 // pred_fallthru
          _
        // Predicated region
        $region121: #{tpu_custom_call.1} parent=95 // pred_check
          %p776 = pneg %p199
        $region122: #{tpu_custom_call.1} parent=95 // pred_check_branch
          %778 = sbr.rel (%p776) target = $region124
        $region123: #{tpu_custom_call.1} parent=95 // pred_region
          %779 = dma.done [#allocation12], 1280
        $region124: #{tpu_custom_call.1} parent=95 // pred_fallthru
          _
        // Predicated region
        $region125: #{tpu_custom_call.1} parent=95 // pred_check
          %p780 = pneg %p220
        $region126: #{tpu_custom_call.1} parent=95 // pred_check_branch
          %782 = sbr.rel (%p780) target = $region128
        $region127: #{tpu_custom_call.1} parent=95 // pred_region
          %783 = dma.done [#allocation15], 80
        $region128: #{tpu_custom_call.1} parent=95 // pred_fallthru
          _
        // Predicated region
        $region129: #{tpu_custom_call.1} parent=95 // pred_check
          %p784 = pneg %p241
        $region130: #{tpu_custom_call.1} parent=95 // pred_check_branch
          %786 = sbr.rel (%p784) target = $region132
        $region131: #{tpu_custom_call.1} parent=95 // pred_region
          %787 = dma.done [#allocation15], 80
        $region132: #{tpu_custom_call.1} parent=95 // pred_fallthru
          _
        // Predicated region
        $region133: #{tpu_custom_call.1} parent=95 // pred_check
          %p788 = pneg %p262
        $region134: #{tpu_custom_call.1} parent=95 // pred_check_branch
          %790 = sbr.rel (%p788) target = $region136
        $region135: #{tpu_custom_call.1} parent=95 // pred_region
          %791 = dma.done [#allocation18], 80
        $region136: #{tpu_custom_call.1} parent=95 // pred_fallthru
          _
        // Predicated region
        $region137: #{tpu_custom_call.1} parent=95 // pred_check
          %p792 = pneg %p304
        $region138: #{tpu_custom_call.1} parent=95 // pred_check_branch
          %794 = sbr.rel (%p792) target = $region140
        $region139: #{tpu_custom_call.1} parent=95 // pred_region
          %795 = dma.done [#allocation18], 256
        $region140: #{tpu_custom_call.1} parent=95 // pred_fallthru
          _
        // Predicated region
        $region141: #{tpu_custom_call.1} parent=95 // pred_check
          %p796 = pneg %p325
        $region142: #{tpu_custom_call.1} parent=95 // pred_check_branch
          %798 = sbr.rel (%p796) target = $region144
        $region143: #{tpu_custom_call.1} parent=95 // pred_region
          %799 = dma.done [#allocation21], 256
        $region144: #{tpu_custom_call.1} parent=95 // pred_fallthru
          _
        // Predicated region
        $region145: #{tpu_custom_call.1} parent=95 // pred_check
          %p800 = pneg %p409
        $region146: #{tpu_custom_call.1} parent=95 // pred_check_branch
          %802 = sbr.rel (%p800) target = $region148
        $region147: #{tpu_custom_call.1} parent=95 // pred_region
          %803 = dma.done [#allocation21], 1280
        $region148: #{tpu_custom_call.1} parent=95 // pred_fallthru
          _
        // Predicated region
        $region149: #{tpu_custom_call.1} parent=95 // pred_check
          %p804 = pneg %p430
        $region150: #{tpu_custom_call.1} parent=95 // pred_check_branch
          %806 = sbr.rel (%p804) target = $region152
        $region151: #{tpu_custom_call.1} parent=95 // pred_region
          %807 = dma.done [#allocation24], 1280
        $region152: #{tpu_custom_call.1} parent=95 // pred_fallthru
          _
        %s808 = sand.u32 %s55, 1
        %s809 = scalar_lea.sflag [#allocation3], %s808
        %s810 = sand.u32 %s55, 1
        %s811 = smul.addr %s810, 8
        %s812 = scalar_lea.vmem [#allocation2], %s811
        %p813 = pneg %p68
        %p814 = pneg %p65
        %s815 = sand.u32 %s47, 1
        %s816 = scalar_lea.sflag [#allocation6], %s815
        %s817 = sand.u32 %s81, 1
        %s818 = smul.addr %s817, 2
        %s819 = scalar_lea.vmem [#allocation5], %s818
        %p820 = pneg %p94
        %p821 = pneg %p91
        %p822 = pneg %p115
        %p823 = pneg %p112
        %p824 = pneg %p136
        %p825 = pneg %p133
        %p826 = pneg %p157
        %p827 = pneg %p154
        %p828 = pneg %p178
        %p829 = pneg %p175
        %p830 = pneg %p199
        %p831 = pneg %p196
        %p832 = pneg %p220
        %p833 = pneg %p217
        %p834 = pneg %p241
        %p835 = pneg %p238
        %p836 = pneg %p262
        %p837 = pneg %p259
        %p838 = pneg %p283
        %p839 = pneg %p280
        %p840 = pneg %p304
        %p841 = pneg %p301
        %p842 = pneg %p325
        %p843 = pneg %p322
        %p844 = pneg %p346
        %p845 = pneg %p343
        %p846 = pneg %p367
        %p847 = pneg %p364
        %p848 = pneg %p388
        %p849 = pneg %p385
        %p850 = pneg %p409
        %p851 = pneg %p406
        %p852 = pneg %p430
        %p853 = pneg %p427
        %p854 = pneg %p451
        %p855 = pneg %p448
        %p856 = pneg %p477
        %p857 = pneg %p474
        %s858 = sand.u32 %s464, 1
        %s859 = scalar_lea.sflag [#allocation4], %s858
        %s860 = sand.u32 %s464, 1
        %s861 = smul.addr %s860, 10
        %s862 = scalar_lea.vmem [#allocation25], %s861
        %p863 = pneg %p503
        %p864 = pneg %p500
        %p865 = scmp.lt.s32.totalorder %s47, 1
        %s866 = scalar_select %p865, %s47, 1
        %s867 = scalar_lea.vmem %s20, %s866
        %s868 = smul.u32 2, %s47
        %s869 = smul.u32 2, %s47
        %s870 = smul.u32 2, %s47
        %p871 = scmp.lt.s32.totalorder %s47, 1
        %s872 = scalar_select %p871, %s47, 1
        %s873 = scalar_lea.vmem %s20, %s872
        %v875 = vld [vmem:[%s746] sm:$0xf]
        %v876 = vld [vmem:[%s746 + $0x4] sm:$0xf]
        %v877 = vld [vmem:[%s10] sm:$0xff]
        %s878 = scalar_lea.vmem %s10, 8
        %v879 = vld [vmem:[%s878] sm:$0xff]
        %v880 = vld [vmem:[#allocation19] sm:$0xff]
        %v881 = vld [vmem:[#allocation19 + $0x8] sm:$0xff]
        %v882 = vld [vmem:[#allocation10] sm:$0xf]
        %v883 = vld [vmem:[#allocation10 + $0x4] sm:$0xf]
        %v884 = vld [vmem:[#allocation10 + $0x8] sm:$0xf]
        %v885 = vld [vmem:[#allocation10 + $0xc] sm:$0xf]
        %v886 = vld [vmem:[#allocation7] sm:$0xf]
        %v887 = vld [vmem:[#allocation7 + $0x4] sm:$0xf]
        %v888 = vld [vmem:[#allocation7 + $0x8] sm:$0xf]
        %v889 = vld [vmem:[#allocation7 + $0xc] sm:$0xf]
        %v890 = vld [vmem:[#allocation14] sm:$0x1]
        %v891 = vld [vmem:[#allocation16] sm:$0x1]
        %v892 = vld [vmem:[#allocation17] sm:$0x1]
        %v893 = vld [vmem:[#allocation13] sm:$0xf]
        %v894 = vld [vmem:[#allocation13 + $0x4] sm:$0xf]
        %v895 = vld [vmem:[#allocation13 + $0x8] sm:$0xf]
        %v896 = vld [vmem:[#allocation13 + $0xc] sm:$0xf]
        %v897 = vpack.c.bf16 %v877, %v877
        %v899 = vlaneseq
        %v900 = vshrl.u32 %v899, 7
        %v901 = vsub.s32 0, %v900
        %v902 = vrot.slane %v890, %v901
        %v908 = vunpack.c.l.b16 %v882
        %v909 = vunpack.c.l.b16 %v883
        %v910 = vunpack.c.l.b16 %v884
        %v911 = vunpack.c.l.b16 %v885
        %v912 = vpack.c.b16 %v909, %v908
        %v913 = vpack.c.b16 %v911, %v910
        %vm916 = vcmask 261120
        %v918 = vsel %vm916, %v897, 0
        %920 = vmatprep.subr.bf16.mxu0 0
        %921 = vmatpush1.bf16.msra.mxu0 0
        %922 = vmatprep.subr.bf16.mxu0 0
        %923 = vmatpush1.bf16.msra.mxu0 0
        %924 = vmatprep.subr.bf16.mxu0 0
        %925 = vmatpush1.bf16.msra.mxu0 0
        %926 = vmatprep.subr.bf16.mxu0 0
        %927 = vmatpush1.bf16.msra.mxu0 0
        %928 = vmatprep.subr.bf16.mxu0 0
        %929 = vmatpush1.bf16.msra.mxu0 0
        %930 = vmatprep.subr.bf16.mxu0 0
        %931 = vmatpush1.bf16.msra.mxu0 0
        %932 = vmatprep.subr.bf16.mxu0 0
        %933 = vmatpush1.bf16.msra.mxu0 %v913
        %934 = vmatprep.subr.bf16.mxu0 0
        %935 = vmatpush1.bf16.msra.mxu0 %v912
        %936 = vmatprep.subr.bf16.mxu0 0
        %937 = vmatpush2.bf16.msra.mxu0 0
        %938 = vmatprep.subr.bf16.mxu0 0
        %939 = vmatpush2.bf16.msra.mxu0 0
        %940 = vmatprep.subr.bf16.mxu0 0
        %941 = vmatpush2.bf16.msra.mxu0 0
        %942 = vmatprep.subr.bf16.mxu0 0
        %943 = vmatpush2.bf16.msra.mxu0 0
        %944 = vmatprep.subr.bf16.mxu0 0
        %945 = vmatpush2.bf16.msra.mxu0 0
        %946 = vmatprep.subr.bf16.mxu0 0
        %947 = vmatpush2.bf16.msra.mxu0 0
        %948 = vmatprep.subr.bf16.mxu0 0
        %949 = vmatpush2.bf16.msra.mxu0 0
        %950 = vmatprep.subr.bf16.mxu0 0
        %951 = vmatpush2.bf16.msra.mxu0 0
        %952 = vmatprep.mubr.bf16.mxu0 0
        %953 = vmatmul.mubr.bf16.gmra.mxu0 %v918
        %v954 = vpop.f32.mrf.mxu0
        %v955 = vadd.f32 %v902, %v954
        %v956 = vpop.f32.mrf.mxu0
        %v957 = vpop.f32.mrf.mxu0
        %v958 = vpop.f32.mrf.mxu0
        %959 = vdwg.mxu0
        %v961 = vlaneseq
        %v962 = vshrl.u32 %v961, 7
        %v963 = vsub.s32 0, %v962
        %v964 = vrot.slane %v891, %v963
        %v968 = vunpack.c.l.b16 %v875
        %v969 = vunpack.c.l.b16 %v876
        %v970 = vpack.c.b16 %v969, %v968
        %v975 = vunpack.c.l.b16 %v886
        %v976 = vunpack.c.l.b16 %v887
        %v977 = vunpack.c.l.b16 %v888
        %v978 = vunpack.c.l.b16 %v889
        %v979 = vpack.c.b16 %v976, %v975
        %v980 = vpack.c.b16 %v978, %v977
        %v984 = vsel %vm916, %v970, 0
        %986 = vmatprep.subr.bf16.mxu0 0
        %987 = vmatpush1.bf16.msra.mxu0 0
        %988 = vmatprep.subr.bf16.mxu0 0
        %989 = vmatpush1.bf16.msra.mxu0 0
        %990 = vmatprep.subr.bf16.mxu0 0
        %991 = vmatpush1.bf16.msra.mxu0 0
        %992 = vmatprep.subr.bf16.mxu0 0
        %993 = vmatpush1.bf16.msra.mxu0 0
        %994 = vmatprep.subr.bf16.mxu0 0
        %995 = vmatpush1.bf16.msra.mxu0 0
        %996 = vmatprep.subr.bf16.mxu0 0
        %997 = vmatpush1.bf16.msra.mxu0 0
        %998 = vmatprep.subr.bf16.mxu0 0
        %999 = vmatpush1.bf16.msra.mxu0 %v980
        %1000 = vmatprep.subr.bf16.mxu0 0
        %1001 = vmatpush1.bf16.msra.mxu0 %v979
        %1002 = vmatprep.subr.bf16.mxu0 0
        %1003 = vmatpush2.bf16.msra.mxu0 0
        %1004 = vmatprep.subr.bf16.mxu0 0
        %1005 = vmatpush2.bf16.msra.mxu0 0
        %1006 = vmatprep.subr.bf16.mxu0 0
        %1007 = vmatpush2.bf16.msra.mxu0 0
        %1008 = vmatprep.subr.bf16.mxu0 0
        %1009 = vmatpush2.bf16.msra.mxu0 0
        %1010 = vmatprep.subr.bf16.mxu0 0
        %1011 = vmatpush2.bf16.msra.mxu0 0
        %1012 = vmatprep.subr.bf16.mxu0 0
        %1013 = vmatpush2.bf16.msra.mxu0 0
        %1014 = vmatprep.subr.bf16.mxu0 0
        %1015 = vmatpush2.bf16.msra.mxu0 0
        %1016 = vmatprep.subr.bf16.mxu0 0
        %1017 = vmatpush2.bf16.msra.mxu0 0
        %1018 = vmatprep.mubr.bf16.mxu0 0
        %1019 = vmatmul.mubr.bf16.gmra.mxu0 %v984
        %v1020 = vpop.f32.mrf.mxu0
        %v1021 = vadd.f32 %v964, %v1020
        %v1022 = vpop.f32.mrf.mxu0
        %v1023 = vpop.f32.mrf.mxu0
        %v1024 = vadd.f32 %v964, %v1023
        %v1025 = vpop.f32.mrf.mxu0
        %1026 = vdwg.mxu0
        %v1028 = vsel %vm916, %v955, 0
        %v1031 = vsel %vm916, %v1021, 0
        %1033 = vmatprep.subr.mxu0 0.0
        %1034 = vmatpush1.xpose.msra.mxu0 0.0
        %1035 = vmatprep.subr.mxu0 0.0
        %1036 = vmatpush1.xpose.msra.mxu0 0.0
        %1037 = vmatprep.subr.mxu0 0.0
        %1038 = vmatpush1.xpose.msra.mxu0 0.0
        %1039 = vmatprep.subr.mxu0 0.0
        %1040 = vmatpush1.xpose.msra.mxu0 0.0
        %1041 = vmatprep.subr.mxu0 0.0
        %1042 = vmatpush1.xpose.msra.mxu0 0.0
        %1043 = vmatprep.subr.mxu0 0.0
        %1044 = vmatpush1.xpose.msra.mxu0 0.0
        %1045 = vmatprep.subr.mxu0 0.0
        %1046 = vmatpush1.xpose.msra.mxu0 0.0
        %1047 = vmatprep.subr.mxu0 0.0
        %1048 = vmatpush1.xpose.msra.mxu0 0.0
        %1049 = vmatprep.subr.mxu0 0.0
        %1050 = vmatpush1.xpose.msra.mxu0 0.0
        %1051 = vmatprep.subr.mxu0 0.0
        %1052 = vmatpush1.xpose.msra.mxu0 0.0
        %1053 = vmatprep.subr.mxu0 0.0
        %1054 = vmatpush1.xpose.msra.mxu0 0.0
        %1055 = vmatprep.subr.mxu0 0.0
        %1056 = vmatpush1.xpose.msra.mxu0 0.0
        %1057 = vmatprep.subr.mxu0 0.0
        %1058 = vmatpush1.xpose.msra.mxu0 0.0
        %1059 = vmatprep.subr.mxu0 0.0
        %1060 = vmatpush1.xpose.msra.mxu0 0.0
        %1061 = vmatprep.subr.mxu0 0.0
        %1062 = vmatpush1.xpose.msra.mxu0 0.0
        %1063 = vmatprep.subr.mxu0 0.0
        %1064 = vmatpush1.xpose.msra.mxu0 %v1031
        %1065 = vmatprep.subr.mxu0 0.0
        %1066 = vmatpush2.xpose.msra.mxu0 0.0
        %1067 = vmatprep.subr.mxu0 0.0
        %1068 = vmatpush2.xpose.msra.mxu0 0.0
        %1069 = vmatprep.subr.mxu0 0.0
        %1070 = vmatpush2.xpose.msra.mxu0 0.0
        %1071 = vmatprep.subr.mxu0 0.0
        %1072 = vmatpush2.xpose.msra.mxu0 0.0
        %1073 = vmatprep.subr.mxu0 0.0
        %1074 = vmatpush2.xpose.msra.mxu0 0.0
        %1075 = vmatprep.subr.mxu0 0.0
        %1076 = vmatpush2.xpose.msra.mxu0 0.0
        %1077 = vmatprep.subr.mxu0 0.0
        %1078 = vmatpush2.xpose.msra.mxu0 0.0
        %1079 = vmatprep.subr.mxu0 0.0
        %1080 = vmatpush2.xpose.msra.mxu0 0.0
        %1081 = vmatprep.subr.mxu0 0.0
        %1082 = vmatpush2.xpose.msra.mxu0 0.0
        %1083 = vmatprep.subr.mxu0 0.0
        %1084 = vmatpush2.xpose.msra.mxu0 0.0
        %1085 = vmatprep.subr.mxu0 0.0
        %1086 = vmatpush2.xpose.msra.mxu0 0.0
        %1087 = vmatprep.subr.mxu0 0.0
        %1088 = vmatpush2.xpose.msra.mxu0 0.0
        %1089 = vmatprep.subr.mxu0 0.0
        %1090 = vmatpush2.xpose.msra.mxu0 0.0
        %1091 = vmatprep.subr.mxu0 0.0
        %1092 = vmatpush2.xpose.msra.mxu0 0.0
        %1093 = vmatprep.subr.mxu0 0.0
        %1094 = vmatpush2.xpose.msra.mxu0 0.0
        %1095 = vmatprep.subr.mxu0 0.0
        %1096 = vmatpush2.xpose.msra.mxu0 0.0
        %1097 = vmatprep.mubr.f32.mxu0 0.0
        %1098 = vmatmul.mubr.f32.gmra.mxu0 %v1028
        %v1099 = vpop.f32.mrf.mxu0
        %v1100 = vadd.f32 0.0, %v1099
        %v1101 = vpop.f32.mrf.mxu0
        %1102 = vdwg.mxu0
        %v1104 = vsel %vm916, %v1024, 0
        %1106 = vmatprep.subr.mxu0 0.0
        %1107 = vmatpush1.xpose.msra.mxu0 0.0
        %1108 = vmatprep.subr.mxu0 0.0
        %1109 = vmatpush1.xpose.msra.mxu0 0.0
        %1110 = vmatprep.subr.mxu0 0.0
        %1111 = vmatpush1.xpose.msra.mxu0 0.0
        %1112 = vmatprep.subr.mxu0 0.0
        %1113 = vmatpush1.xpose.msra.mxu0 0.0
        %1114 = vmatprep.subr.mxu0 0.0
        %1115 = vmatpush1.xpose.msra.mxu0 0.0
        %1116 = vmatprep.subr.mxu0 0.0
        %1117 = vmatpush1.xpose.msra.mxu0 0.0
        %1118 = vmatprep.subr.mxu0 0.0
        %1119 = vmatpush1.xpose.msra.mxu0 0.0
        %1120 = vmatprep.subr.mxu0 0.0
        %1121 = vmatpush1.xpose.msra.mxu0 0.0
        %1122 = vmatprep.subr.mxu0 0.0
        %1123 = vmatpush1.xpose.msra.mxu0 0.0
        %1124 = vmatprep.subr.mxu0 0.0
        %1125 = vmatpush1.xpose.msra.mxu0 0.0
        %1126 = vmatprep.subr.mxu0 0.0
        %1127 = vmatpush1.xpose.msra.mxu0 0.0
        %1128 = vmatprep.subr.mxu0 0.0
        %1129 = vmatpush1.xpose.msra.mxu0 0.0
        %1130 = vmatprep.subr.mxu0 0.0
        %1131 = vmatpush1.xpose.msra.mxu0 0.0
        %1132 = vmatprep.subr.mxu0 0.0
        %1133 = vmatpush1.xpose.msra.mxu0 0.0
        %1134 = vmatprep.subr.mxu0 0.0
        %1135 = vmatpush1.xpose.msra.mxu0 0.0
        %1136 = vmatprep.subr.mxu0 0.0
        %1137 = vmatpush1.xpose.msra.mxu0 %v1104
        %1138 = vmatprep.subr.mxu0 0.0
        %1139 = vmatpush2.xpose.msra.mxu0 0.0
        %1140 = vmatprep.subr.mxu0 0.0
        %1141 = vmatpush2.xpose.msra.mxu0 0.0
        %1142 = vmatprep.subr.mxu0 0.0
        %1143 = vmatpush2.xpose.msra.mxu0 0.0
        %1144 = vmatprep.subr.mxu0 0.0
        %1145 = vmatpush2.xpose.msra.mxu0 0.0
        %1146 = vmatprep.subr.mxu0 0.0
        %1147 = vmatpush2.xpose.msra.mxu0 0.0
        %1148 = vmatprep.subr.mxu0 0.0
        %1149 = vmatpush2.xpose.msra.mxu0 0.0
        %1150 = vmatprep.subr.mxu0 0.0
        %1151 = vmatpush2.xpose.msra.mxu0 0.0
        %1152 = vmatprep.subr.mxu0 0.0
        %1153 = vmatpush2.xpose.msra.mxu0 0.0
        %1154 = vmatprep.subr.mxu0 0.0
        %1155 = vmatpush2.xpose.msra.mxu0 0.0
        %1156 = vmatprep.subr.mxu0 0.0
        %1157 = vmatpush2.xpose.msra.mxu0 0.0
        %1158 = vmatprep.subr.mxu0 0.0
        %1159 = vmatpush2.xpose.msra.mxu0 0.0
        %1160 = vmatprep.subr.mxu0 0.0
        %1161 = vmatpush2.xpose.msra.mxu0 0.0
        %1162 = vmatprep.subr.mxu0 0.0
        %1163 = vmatpush2.xpose.msra.mxu0 0.0
        %1164 = vmatprep.subr.mxu0 0.0
        %1165 = vmatpush2.xpose.msra.mxu0 0.0
        %1166 = vmatprep.subr.mxu0 0.0
        %1167 = vmatpush2.xpose.msra.mxu0 0.0
        %1168 = vmatprep.subr.mxu0 0.0
        %1169 = vmatpush2.xpose.msra.mxu0 0.0
        %1170 = vmatprep.mubr.f32.mxu0 0.0
        %1171 = vmatmul.mubr.f32.gmra.mxu0 %v1028
        %v1172 = vpop.f32.mrf.mxu0
        %v1173 = vadd.f32 0.0, %v1172
        %v1174 = vpop.f32.mrf.mxu0
        %1175 = vdwg.mxu0
        %v1176 = vmul.f32 %v1100, 0.17677669
        %v1177 = vmul.f32 %v1173, 0.17677669
        %vm1178 = vcmask 64512
        %v1179 = vsel %vm1178, %v1176, -inf
        %1180 = vmax.xlane.f32.xlu0 %v1179
        %v1181 = vpop.xlane.xlu0 %1180
        %v1182 = vsel %vm1178, %v1177, -inf
        %1183 = vmax.xlane.f32.xlu0 %v1182
        %v1184 = vpop.xlane.xlu0 %1183
        %v1185 = vsub.f32 %v1176, %v1181
        %v1186 = vsub.f32 %v1177, %v1184
        %v1187 = vmul.f32 %v1185, 1.442695
        %v1188 = vpow.pop %v1187
        %v1189 = vmul.f32 %v1186, 1.442695
        %v1190 = vpow.pop %v1189
        %v1191 = vsel %vm1178, %v1188, 0.0
        %1192 = vadd.xlane.f32.xlu0 %v1191
        %v1193 = vpop.xlane.xlu0 %1192
        %v1194 = vsel %vm1178, %v1190, 0.0
        %1195 = vadd.xlane.f32.xlu0 %v1194
        %v1196 = vpop.xlane.xlu0 %1195
        %v1197 = vrcp.pop %v1193
        %v1198 = vrcp.pop %v1196
        %v1199 = vmul.f32 %v1188, %v1197
        %v1200 = vmul.f32 %v1190, %v1198
        %1201 = vrot.lane.b32.xlu0 %v1021, 96
        %v1202 = vpop.permute.xlu0 %1201
        %v1205 = vsel %vm1178, %v1199, 0
        %1207 = vmatprep.subr.mxu0 0.0
        %1208 = vmatpush1.msra.mxu0 0.0
        %1209 = vmatprep.subr.mxu0 0.0
        %1210 = vmatpush1.msra.mxu0 0.0
        %1211 = vmatprep.subr.mxu0 0.0
        %1212 = vmatpush1.msra.mxu0 0.0
        %1213 = vmatprep.subr.mxu0 0.0
        %1214 = vmatpush1.msra.mxu0 0.0
        %1215 = vmatprep.subr.mxu0 0.0
        %1216 = vmatpush1.msra.mxu0 0.0
        %1217 = vmatprep.subr.mxu0 0.0
        %1218 = vmatpush1.msra.mxu0 0.0
        %1219 = vmatprep.subr.mxu0 0.0
        %1220 = vmatpush1.msra.mxu0 0.0
        %1221 = vmatprep.subr.mxu0 0.0
        %1222 = vmatpush1.msra.mxu0 0.0
        %1223 = vmatprep.subr.mxu0 0.0
        %1224 = vmatpush1.msra.mxu0 0.0
        %1225 = vmatprep.subr.mxu0 0.0
        %1226 = vmatpush1.msra.mxu0 0.0
        %1227 = vmatprep.subr.mxu0 0.0
        %1228 = vmatpush1.msra.mxu0 0.0
        %1229 = vmatprep.subr.mxu0 0.0
        %1230 = vmatpush1.msra.mxu0 0.0
        %1231 = vmatprep.subr.mxu0 0.0
        %1232 = vmatpush1.msra.mxu0 0.0
        %1233 = vmatprep.subr.mxu0 0.0
        %1234 = vmatpush1.msra.mxu0 0.0
        %1235 = vmatprep.subr.mxu0 0.0
        %1236 = vmatpush1.msra.mxu0 0.0
        %1237 = vmatprep.subr.mxu0 0.0
        %1238 = vmatpush1.msra.mxu0 %v1202
        %1239 = vmatprep.subr.mxu0 0.0
        %1240 = vmatpush2.msra.mxu0 0.0
        %1241 = vmatprep.subr.mxu0 0.0
        %1242 = vmatpush2.msra.mxu0 0.0
        %1243 = vmatprep.subr.mxu0 0.0
        %1244 = vmatpush2.msra.mxu0 0.0
        %1245 = vmatprep.subr.mxu0 0.0
        %1246 = vmatpush2.msra.mxu0 0.0
        %1247 = vmatprep.subr.mxu0 0.0
        %1248 = vmatpush2.msra.mxu0 0.0
        %1249 = vmatprep.subr.mxu0 0.0
        %1250 = vmatpush2.msra.mxu0 0.0
        %1251 = vmatprep.subr.mxu0 0.0
        %1252 = vmatpush2.msra.mxu0 0.0
        %1253 = vmatprep.subr.mxu0 0.0
        %1254 = vmatpush2.msra.mxu0 0.0
        %1255 = vmatprep.subr.mxu0 0.0
        %1256 = vmatpush2.msra.mxu0 0.0
        %1257 = vmatprep.subr.mxu0 0.0
        %1258 = vmatpush2.msra.mxu0 0.0
        %1259 = vmatprep.subr.mxu0 0.0
        %1260 = vmatpush2.msra.mxu0 0.0
        %1261 = vmatprep.subr.mxu0 0.0
        %1262 = vmatpush2.msra.mxu0 0.0
        %1263 = vmatprep.subr.mxu0 0.0
        %1264 = vmatpush2.msra.mxu0 0.0
        %1265 = vmatprep.subr.mxu0 0.0
        %1266 = vmatpush2.msra.mxu0 0.0
        %1267 = vmatprep.subr.mxu0 0.0
        %1268 = vmatpush2.msra.mxu0 0.0
        %1269 = vmatprep.subr.mxu0 0.0
        %1270 = vmatpush2.msra.mxu0 0.0
        %1271 = vmatprep.mubr.f32.mxu0 0.0
        %1272 = vmatmul.mubr.f32.gmra.mxu0 %v1205
        %v1273 = vpop.f32.mrf.mxu0
        %v1274 = vadd.f32 0.0, %v1273
        %v1275 = vpop.f32.mrf.mxu0
        %1276 = vdwg.mxu0
        %1277 = vrot.lane.b32.xlu0 %v1024, 96
        %v1278 = vpop.permute.xlu0 %1277
        %v1281 = vsel %vm1178, %v1200, 0
        %1283 = vmatprep.subr.mxu0 0.0
        %1284 = vmatpush1.msra.mxu0 0.0
        %1285 = vmatprep.subr.mxu0 0.0
        %1286 = vmatpush1.msra.mxu0 0.0
        %1287 = vmatprep.subr.mxu0 0.0
        %1288 = vmatpush1.msra.mxu0 0.0
        %1289 = vmatprep.subr.mxu0 0.0
        %1290 = vmatpush1.msra.mxu0 0.0
        %1291 = vmatprep.subr.mxu0 0.0
        %1292 = vmatpush1.msra.mxu0 0.0
        %1293 = vmatprep.subr.mxu0 0.0
        %1294 = vmatpush1.msra.mxu0 0.0
        %1295 = vmatprep.subr.mxu0 0.0
        %1296 = vmatpush1.msra.mxu0 0.0
        %1297 = vmatprep.subr.mxu0 0.0
        %1298 = vmatpush1.msra.mxu0 0.0
        %1299 = vmatprep.subr.mxu0 0.0
        %1300 = vmatpush1.msra.mxu0 0.0
        %1301 = vmatprep.subr.mxu0 0.0
        %1302 = vmatpush1.msra.mxu0 0.0
        %1303 = vmatprep.subr.mxu0 0.0
        %1304 = vmatpush1.msra.mxu0 0.0
        %1305 = vmatprep.subr.mxu0 0.0
        %1306 = vmatpush1.msra.mxu0 0.0
        %1307 = vmatprep.subr.mxu0 0.0
        %1308 = vmatpush1.msra.mxu0 0.0
        %1309 = vmatprep.subr.mxu0 0.0
        %1310 = vmatpush1.msra.mxu0 0.0
        %1311 = vmatprep.subr.mxu0 0.0
        %1312 = vmatpush1.msra.mxu0 0.0
        %1313 = vmatprep.subr.mxu0 0.0
        %1314 = vmatpush1.msra.mxu0 %v1278
        %1315 = vmatprep.subr.mxu0 0.0
        %1316 = vmatpush2.msra.mxu0 0.0
        %1317 = vmatprep.subr.mxu0 0.0
        %1318 = vmatpush2.msra.mxu0 0.0
        %1319 = vmatprep.subr.mxu0 0.0
        %1320 = vmatpush2.msra.mxu0 0.0
        %1321 = vmatprep.subr.mxu0 0.0
        %1322 = vmatpush2.msra.mxu0 0.0
        %1323 = vmatprep.subr.mxu0 0.0
        %1324 = vmatpush2.msra.mxu0 0.0
        %1325 = vmatprep.subr.mxu0 0.0
        %1326 = vmatpush2.msra.mxu0 0.0
        %1327 = vmatprep.subr.mxu0 0.0
        %1328 = vmatpush2.msra.mxu0 0.0
        %1329 = vmatprep.subr.mxu0 0.0
        %1330 = vmatpush2.msra.mxu0 0.0
        %1331 = vmatprep.subr.mxu0 0.0
        %1332 = vmatpush2.msra.mxu0 0.0
        %1333 = vmatprep.subr.mxu0 0.0
        %1334 = vmatpush2.msra.mxu0 0.0
        %1335 = vmatprep.subr.mxu0 0.0
        %1336 = vmatpush2.msra.mxu0 0.0
        %1337 = vmatprep.subr.mxu0 0.0
        %1338 = vmatpush2.msra.mxu0 0.0
        %1339 = vmatprep.subr.mxu0 0.0
        %1340 = vmatpush2.msra.mxu0 0.0
        %1341 = vmatprep.subr.mxu0 0.0
        %1342 = vmatpush2.msra.mxu0 0.0
        %1343 = vmatprep.subr.mxu0 0.0
        %1344 = vmatpush2.msra.mxu0 0.0
        %1345 = vmatprep.subr.mxu0 0.0
        %1346 = vmatpush2.msra.mxu0 0.0
        %1347 = vmatprep.mubr.f32.mxu0 0.0
        %1348 = vmatmul.mubr.f32.gmra.mxu0 %v1281
        %v1349 = vpop.f32.mrf.mxu0
        %v1350 = vadd.f32 0.0, %v1349
        %v1351 = vpop.f32.mrf.mxu0
        %1352 = vdwg.mxu0
        %v1353 = vadd.f32 %v955, %v1274
        %v1354 = vadd.f32 %v955, %v1350
        %v1355 = vpack.c.bf16 %v1354, %v1353
        %v1357 = vlaneseq
        %v1358 = vshrl.u32 %v1357, 7
        %v1359 = vsub.s32 0, %v1358
        %v1360 = vrot.slane %v892, %v1359
        %v1366 = vunpack.c.l.b16 %v893
        %v1367 = vunpack.c.l.b16 %v894
        %v1368 = vunpack.c.l.b16 %v895
        %v1369 = vunpack.c.l.b16 %v896
        %v1370 = vpack.c.b16 %v1367, %v1366
        %v1371 = vpack.c.b16 %v1369, %v1368
        %v1375 = vsel %vm916, %v1355, 0
        %1377 = vmatprep.subr.bf16.mxu0 0
        %1378 = vmatpush1.bf16.msra.mxu0 0
        %1379 = vmatprep.subr.bf16.mxu0 0
        %1380 = vmatpush1.bf16.msra.mxu0 0
        %1381 = vmatprep.subr.bf16.mxu0 0
        %1382 = vmatpush1.bf16.msra.mxu0 0
        %1383 = vmatprep.subr.bf16.mxu0 0
        %1384 = vmatpush1.bf16.msra.mxu0 0
        %1385 = vmatprep.subr.bf16.mxu0 0
        %1386 = vmatpush1.bf16.msra.mxu0 0
        %1387 = vmatprep.subr.bf16.mxu0 0
        %1388 = vmatpush1.bf16.msra.mxu0 0
        %1389 = vmatprep.subr.bf16.mxu0 0
        %1390 = vmatpush1.bf16.msra.mxu0 %v1371
        %1391 = vmatprep.subr.bf16.mxu0 0
        %1392 = vmatpush1.bf16.msra.mxu0 %v1370
        %1393 = vmatprep.subr.bf16.mxu0 0
        %1394 = vmatpush2.bf16.msra.mxu0 0
        %1395 = vmatprep.subr.bf16.mxu0 0
        %1396 = vmatpush2.bf16.msra.mxu0 0
        %1397 = vmatprep.subr.bf16.mxu0 0
        %1398 = vmatpush2.bf16.msra.mxu0 0
        %1399 = vmatprep.subr.bf16.mxu0 0
        %1400 = vmatpush2.bf16.msra.mxu0 0
        %1401 = vmatprep.subr.bf16.mxu0 0
        %1402 = vmatpush2.bf16.msra.mxu0 0
        %1403 = vmatprep.subr.bf16.mxu0 0
        %1404 = vmatpush2.bf16.msra.mxu0 0
        %1405 = vmatprep.subr.bf16.mxu0 0
        %1406 = vmatpush2.bf16.msra.mxu0 0
        %1407 = vmatprep.subr.bf16.mxu0 0
        %1408 = vmatpush2.bf16.msra.mxu0 0
        %1409 = vmatprep.mubr.bf16.mxu0 0
        %1410 = vmatmul.mubr.bf16.gmra.mxu0 %v1375
        %v1411 = vpop.f32.mrf.mxu0
        %v1412 = vadd.f32 %v1360, %v1411
        %v1413 = vpop.f32.mrf.mxu0
        %v1414 = vpop.f32.mrf.mxu0
        %v1415 = vadd.f32 %v1360, %v1414
        %v1416 = vpop.f32.mrf.mxu0
        %1417 = vdwg.mxu0
        %v1418 = vmax.f32 %v1412, 0.0
        %v1419 = vmax.f32 %v1415, 0.0
        %v1420 = vadd.f32 %v1353, %v1418
        %v1421 = vadd.f32 %v1354, %v1419
        %v1422 = vld [vmem:[#allocation8] sm:$0xf]
        %v1423 = vld [vmem:[#allocation8 + $0x4] sm:$0xf]
        %v1424 = vld [vmem:[#allocation8 + $0x8] sm:$0xf]
        %v1425 = vld [vmem:[#allocation8 + $0xc] sm:$0xf]
        %v1426 = vld [vmem:[#allocation11] sm:$0xf]
        %v1427 = vld [vmem:[#allocation11 + $0x4] sm:$0xf]
        %v1428 = vld [vmem:[#allocation11 + $0x8] sm:$0xf]
        %v1429 = vld [vmem:[#allocation11 + $0xc] sm:$0xf]
        %s1430 = scalar_lea.vmem [#allocation14], 1
        %v1431 = vld [vmem:[%s1430] sm:$0x1]
        %s1432 = scalar_lea.vmem [#allocation16], 1
        %v1433 = vld [vmem:[%s1432] sm:$0x1]
        %s1434 = scalar_lea.vmem [#allocation17], 1
        %v1435 = vld [vmem:[%s1434] sm:$0x1]
        %s1436 = scalar_lea.vmem [#allocation13], 16
        %v1437 = vld [vmem:[%s1436] sm:$0xf]
        %v1438 = vld [vmem:[%s1436 + $0x4] sm:$0xf]
        %v1439 = vld [vmem:[%s1436 + $0x8] sm:$0xf]
        %v1440 = vld [vmem:[%s1436 + $0xc] sm:$0xf]
        %v1442 = vlaneseq
        %v1443 = vshrl.u32 %v1442, 7
        %v1444 = vsub.s32 0, %v1443
        %v1445 = vrot.slane %v1431, %v1444
        %v1451 = vunpack.c.l.b16 %v1422
        %v1452 = vunpack.c.l.b16 %v1423
        %v1453 = vunpack.c.l.b16 %v1424
        %v1454 = vunpack.c.l.b16 %v1425
        %v1455 = vpack.c.b16 %v1452, %v1451
        %v1456 = vpack.c.b16 %v1454, %v1453
        %1459 = vmatprep.subr.bf16.mxu0 0
        %1460 = vmatpush1.bf16.msra.mxu0 0
        %1461 = vmatprep.subr.bf16.mxu0 0
        %1462 = vmatpush1.bf16.msra.mxu0 0
        %1463 = vmatprep.subr.bf16.mxu0 0
        %1464 = vmatpush1.bf16.msra.mxu0 0
        %1465 = vmatprep.subr.bf16.mxu0 0
        %1466 = vmatpush1.bf16.msra.mxu0 0
        %1467 = vmatprep.subr.bf16.mxu0 0
        %1468 = vmatpush1.bf16.msra.mxu0 0
        %1469 = vmatprep.subr.bf16.mxu0 0
        %1470 = vmatpush1.bf16.msra.mxu0 0
        %1471 = vmatprep.subr.bf16.mxu0 0
        %1472 = vmatpush1.bf16.msra.mxu0 %v1456
        %1473 = vmatprep.subr.bf16.mxu0 0
        %1474 = vmatpush1.bf16.msra.mxu0 %v1455
        %1475 = vmatprep.subr.bf16.mxu0 0
        %1476 = vmatpush2.bf16.msra.mxu0 0
        %1477 = vmatprep.subr.bf16.mxu0 0
        %1478 = vmatpush2.bf16.msra.mxu0 0
        %1479 = vmatprep.subr.bf16.mxu0 0
        %1480 = vmatpush2.bf16.msra.mxu0 0
        %1481 = vmatprep.subr.bf16.mxu0 0
        %1482 = vmatpush2.bf16.msra.mxu0 0
        %1483 = vmatprep.subr.bf16.mxu0 0
        %1484 = vmatpush2.bf16.msra.mxu0 0
        %1485 = vmatprep.subr.bf16.mxu0 0
        %1486 = vmatpush2.bf16.msra.mxu0 0
        %1487 = vmatprep.subr.bf16.mxu0 0
        %1488 = vmatpush2.bf16.msra.mxu0 0
        %1489 = vmatprep.subr.bf16.mxu0 0
        %1490 = vmatpush2.bf16.msra.mxu0 0
        %1491 = vmatprep.mubr.bf16.mxu0 0
        %1492 = vmatmul.mubr.bf16.gmra.mxu0 %v984
        %v1493 = vpop.f32.mrf.mxu0
        %v1494 = vadd.f32 %v1445, %v1493
        %v1495 = vpop.f32.mrf.mxu0
        %v1496 = vpop.f32.mrf.mxu0
        %v1497 = vadd.f32 %v1445, %v1496
        %v1498 = vpop.f32.mrf.mxu0
        %1499 = vdwg.mxu0
        %v1500 = vpack.c.bf16 %v1421, %v1420
        %v1502 = vlaneseq
        %v1503 = vshrl.u32 %v1502, 7
        %v1504 = vsub.s32 0, %v1503
        %v1505 = vrot.slane %v1433, %v1504
        %v1511 = vunpack.c.l.b16 %v1426
        %v1512 = vunpack.c.l.b16 %v1427
        %v1513 = vunpack.c.l.b16 %v1428
        %v1514 = vunpack.c.l.b16 %v1429
        %v1515 = vpack.c.b16 %v1512, %v1511
        %v1516 = vpack.c.b16 %v1514, %v1513
        %v1520 = vsel %vm916, %v1500, 0
        %1522 = vmatprep.subr.bf16.mxu0 0
        %1523 = vmatpush1.bf16.msra.mxu0 0
        %1524 = vmatprep.subr.bf16.mxu0 0
        %1525 = vmatpush1.bf16.msra.mxu0 0
        %1526 = vmatprep.subr.bf16.mxu0 0
        %1527 = vmatpush1.bf16.msra.mxu0 0
        %1528 = vmatprep.subr.bf16.mxu0 0
        %1529 = vmatpush1.bf16.msra.mxu0 0
        %1530 = vmatprep.subr.bf16.mxu0 0
        %1531 = vmatpush1.bf16.msra.mxu0 0
        %1532 = vmatprep.subr.bf16.mxu0 0
        %1533 = vmatpush1.bf16.msra.mxu0 0
        %1534 = vmatprep.subr.bf16.mxu0 0
        %1535 = vmatpush1.bf16.msra.mxu0 %v1516
        %1536 = vmatprep.subr.bf16.mxu0 0
        %1537 = vmatpush1.bf16.msra.mxu0 %v1515
        %1538 = vmatprep.subr.bf16.mxu0 0
        %1539 = vmatpush2.bf16.msra.mxu0 0
        %1540 = vmatprep.subr.bf16.mxu0 0
        %1541 = vmatpush2.bf16.msra.mxu0 0
        %1542 = vmatprep.subr.bf16.mxu0 0
        %1543 = vmatpush2.bf16.msra.mxu0 0
        %1544 = vmatprep.subr.bf16.mxu0 0
        %1545 = vmatpush2.bf16.msra.mxu0 0
        %1546 = vmatprep.subr.bf16.mxu0 0
        %1547 = vmatpush2.bf16.msra.mxu0 0
        %1548 = vmatprep.subr.bf16.mxu0 0
        %1549 = vmatpush2.bf16.msra.mxu0 0
        %1550 = vmatprep.subr.bf16.mxu0 0
        %1551 = vmatpush2.bf16.msra.mxu0 0
        %1552 = vmatprep.subr.bf16.mxu0 0
        %1553 = vmatpush2.bf16.msra.mxu0 0
        %1554 = vmatprep.mubr.bf16.mxu0 0
        %1555 = vmatmul.mubr.bf16.gmra.mxu0 %v1520
        %v1556 = vpop.f32.mrf.mxu0
        %v1557 = vadd.f32 %v1505, %v1556
        %v1558 = vpop.f32.mrf.mxu0
        %v1559 = vpop.f32.mrf.mxu0
        %v1560 = vadd.f32 %v1505, %v1559
        %v1561 = vpop.f32.mrf.mxu0
        %1562 = vdwg.mxu0
        %v1564 = vsel %vm916, %v1494, 0
        %v1567 = vsel %vm916, %v1557, 0
        %1569 = vmatprep.subr.mxu0 0.0
        %1570 = vmatpush1.xpose.msra.mxu0 0.0
        %1571 = vmatprep.subr.mxu0 0.0
        %1572 = vmatpush1.xpose.msra.mxu0 0.0
        %1573 = vmatprep.subr.mxu0 0.0
        %1574 = vmatpush1.xpose.msra.mxu0 0.0
        %1575 = vmatprep.subr.mxu0 0.0
        %1576 = vmatpush1.xpose.msra.mxu0 0.0
        %1577 = vmatprep.subr.mxu0 0.0
        %1578 = vmatpush1.xpose.msra.mxu0 0.0
        %1579 = vmatprep.subr.mxu0 0.0
        %1580 = vmatpush1.xpose.msra.mxu0 0.0
        %1581 = vmatprep.subr.mxu0 0.0
        %1582 = vmatpush1.xpose.msra.mxu0 0.0
        %1583 = vmatprep.subr.mxu0 0.0
        %1584 = vmatpush1.xpose.msra.mxu0 0.0
        %1585 = vmatprep.subr.mxu0 0.0
        %1586 = vmatpush1.xpose.msra.mxu0 0.0
        %1587 = vmatprep.subr.mxu0 0.0
        %1588 = vmatpush1.xpose.msra.mxu0 0.0
        %1589 = vmatprep.subr.mxu0 0.0
        %1590 = vmatpush1.xpose.msra.mxu0 0.0
        %1591 = vmatprep.subr.mxu0 0.0
        %1592 = vmatpush1.xpose.msra.mxu0 0.0
        %1593 = vmatprep.subr.mxu0 0.0
        %1594 = vmatpush1.xpose.msra.mxu0 0.0
        %1595 = vmatprep.subr.mxu0 0.0
        %1596 = vmatpush1.xpose.msra.mxu0 0.0
        %1597 = vmatprep.subr.mxu0 0.0
        %1598 = vmatpush1.xpose.msra.mxu0 0.0
        %1599 = vmatprep.subr.mxu0 0.0
        %1600 = vmatpush1.xpose.msra.mxu0 %v1567
        %1601 = vmatprep.subr.mxu0 0.0
        %1602 = vmatpush2.xpose.msra.mxu0 0.0
        %1603 = vmatprep.subr.mxu0 0.0
        %1604 = vmatpush2.xpose.msra.mxu0 0.0
        %1605 = vmatprep.subr.mxu0 0.0
        %1606 = vmatpush2.xpose.msra.mxu0 0.0
        %1607 = vmatprep.subr.mxu0 0.0
        %1608 = vmatpush2.xpose.msra.mxu0 0.0
        %1609 = vmatprep.subr.mxu0 0.0
        %1610 = vmatpush2.xpose.msra.mxu0 0.0
        %1611 = vmatprep.subr.mxu0 0.0
        %1612 = vmatpush2.xpose.msra.mxu0 0.0
        %1613 = vmatprep.subr.mxu0 0.0
        %1614 = vmatpush2.xpose.msra.mxu0 0.0
        %1615 = vmatprep.subr.mxu0 0.0
        %1616 = vmatpush2.xpose.msra.mxu0 0.0
        %1617 = vmatprep.subr.mxu0 0.0
        %1618 = vmatpush2.xpose.msra.mxu0 0.0
        %1619 = vmatprep.subr.mxu0 0.0
        %1620 = vmatpush2.xpose.msra.mxu0 0.0
        %1621 = vmatprep.subr.mxu0 0.0
        %1622 = vmatpush2.xpose.msra.mxu0 0.0
        %1623 = vmatprep.subr.mxu0 0.0
        %1624 = vmatpush2.xpose.msra.mxu0 0.0
        %1625 = vmatprep.subr.mxu0 0.0
        %1626 = vmatpush2.xpose.msra.mxu0 0.0
        %1627 = vmatprep.subr.mxu0 0.0
        %1628 = vmatpush2.xpose.msra.mxu0 0.0
        %1629 = vmatprep.subr.mxu0 0.0
        %1630 = vmatpush2.xpose.msra.mxu0 0.0
        %1631 = vmatprep.subr.mxu0 0.0
        %1632 = vmatpush2.xpose.msra.mxu0 0.0
        %1633 = vmatprep.mubr.f32.mxu0 0.0
        %1634 = vmatmul.mubr.f32.gmra.mxu0 %v1564
        %v1635 = vpop.f32.mrf.mxu0
        %v1636 = vadd.f32 0.0, %v1635
        %v1637 = vpop.f32.mrf.mxu0
        %1638 = vdwg.mxu0
        %v1640 = vsel %vm916, %v1497, 0
        %v1643 = vsel %vm916, %v1560, 0
        %1645 = vmatprep.subr.mxu0 0.0
        %1646 = vmatpush1.xpose.msra.mxu0 0.0
        %1647 = vmatprep.subr.mxu0 0.0
        %1648 = vmatpush1.xpose.msra.mxu0 0.0
        %1649 = vmatprep.subr.mxu0 0.0
        %1650 = vmatpush1.xpose.msra.mxu0 0.0
        %1651 = vmatprep.subr.mxu0 0.0
        %1652 = vmatpush1.xpose.msra.mxu0 0.0
        %1653 = vmatprep.subr.mxu0 0.0
        %1654 = vmatpush1.xpose.msra.mxu0 0.0
        %1655 = vmatprep.subr.mxu0 0.0
        %1656 = vmatpush1.xpose.msra.mxu0 0.0
        %1657 = vmatprep.subr.mxu0 0.0
        %1658 = vmatpush1.xpose.msra.mxu0 0.0
        %1659 = vmatprep.subr.mxu0 0.0
        %1660 = vmatpush1.xpose.msra.mxu0 0.0
        %1661 = vmatprep.subr.mxu0 0.0
        %1662 = vmatpush1.xpose.msra.mxu0 0.0
        %1663 = vmatprep.subr.mxu0 0.0
        %1664 = vmatpush1.xpose.msra.mxu0 0.0
        %1665 = vmatprep.subr.mxu0 0.0
        %1666 = vmatpush1.xpose.msra.mxu0 0.0
        %1667 = vmatprep.subr.mxu0 0.0
        %1668 = vmatpush1.xpose.msra.mxu0 0.0
        %1669 = vmatprep.subr.mxu0 0.0
        %1670 = vmatpush1.xpose.msra.mxu0 0.0
        %1671 = vmatprep.subr.mxu0 0.0
        %1672 = vmatpush1.xpose.msra.mxu0 0.0
        %1673 = vmatprep.subr.mxu0 0.0
        %1674 = vmatpush1.xpose.msra.mxu0 0.0
        %1675 = vmatprep.subr.mxu0 0.0
        %1676 = vmatpush1.xpose.msra.mxu0 %v1643
        %1677 = vmatprep.subr.mxu0 0.0
        %1678 = vmatpush2.xpose.msra.mxu0 0.0
        %1679 = vmatprep.subr.mxu0 0.0
        %1680 = vmatpush2.xpose.msra.mxu0 0.0
        %1681 = vmatprep.subr.mxu0 0.0
        %1682 = vmatpush2.xpose.msra.mxu0 0.0
        %1683 = vmatprep.subr.mxu0 0.0
        %1684 = vmatpush2.xpose.msra.mxu0 0.0
        %1685 = vmatprep.subr.mxu0 0.0
        %1686 = vmatpush2.xpose.msra.mxu0 0.0
        %1687 = vmatprep.subr.mxu0 0.0
        %1688 = vmatpush2.xpose.msra.mxu0 0.0
        %1689 = vmatprep.subr.mxu0 0.0
        %1690 = vmatpush2.xpose.msra.mxu0 0.0
        %1691 = vmatprep.subr.mxu0 0.0
        %1692 = vmatpush2.xpose.msra.mxu0 0.0
        %1693 = vmatprep.subr.mxu0 0.0
        %1694 = vmatpush2.xpose.msra.mxu0 0.0
        %1695 = vmatprep.subr.mxu0 0.0
        %1696 = vmatpush2.xpose.msra.mxu0 0.0
        %1697 = vmatprep.subr.mxu0 0.0
        %1698 = vmatpush2.xpose.msra.mxu0 0.0
        %1699 = vmatprep.subr.mxu0 0.0
        %1700 = vmatpush2.xpose.msra.mxu0 0.0
        %1701 = vmatprep.subr.mxu0 0.0
        %1702 = vmatpush2.xpose.msra.mxu0 0.0
        %1703 = vmatprep.subr.mxu0 0.0
        %1704 = vmatpush2.xpose.msra.mxu0 0.0
        %1705 = vmatprep.subr.mxu0 0.0
        %1706 = vmatpush2.xpose.msra.mxu0 0.0
        %1707 = vmatprep.subr.mxu0 0.0
        %1708 = vmatpush2.xpose.msra.mxu0 0.0
        %1709 = vmatprep.mubr.f32.mxu0 0.0
        %1710 = vmatmul.mubr.f32.gmra.mxu0 %v1640
        %v1711 = vpop.f32.mrf.mxu0
        %v1712 = vadd.f32 0.0, %v1711
        %v1713 = vpop.f32.mrf.mxu0
        %1714 = vdwg.mxu0
        %v1715 = vmul.f32 %v1636, 0.17677669
        %v1716 = vmul.f32 %v1712, 0.17677669
        %v1717 = vsel %vm1178, %v1715, -inf
        %1718 = vmax.xlane.f32.xlu0 %v1717
        %v1719 = vpop.xlane.xlu0 %1718
        %v1720 = vsel %vm1178, %v1716, -inf
        %1721 = vmax.xlane.f32.xlu0 %v1720
        %v1722 = vpop.xlane.xlu0 %1721
        %v1723 = vsub.f32 %v1715, %v1719
        %v1724 = vsub.f32 %v1716, %v1722
        %v1725 = vmul.f32 %v1723, 1.442695
        %v1726 = vpow.pop %v1725
        %v1727 = vmul.f32 %v1724, 1.442695
        %v1728 = vpow.pop %v1727
        %v1729 = vsel %vm1178, %v1726, 0.0
        %1730 = vadd.xlane.f32.xlu0 %v1729
        %v1731 = vpop.xlane.xlu0 %1730
        %v1732 = vsel %vm1178, %v1728, 0.0
        %1733 = vadd.xlane.f32.xlu0 %v1732
        %v1734 = vpop.xlane.xlu0 %1733
        %v1735 = vrcp.pop %v1731
        %v1736 = vrcp.pop %v1734
        %v1737 = vmul.f32 %v1726, %v1735
        %v1738 = vmul.f32 %v1728, %v1736
        %1739 = vrot.lane.b32.xlu0 %v1557, 96
        %v1740 = vpop.permute.xlu0 %1739
        %v1743 = vsel %vm1178, %v1737, 0
        %1745 = vmatprep.subr.mxu0 0.0
        %1746 = vmatpush1.msra.mxu0 0.0
        %1747 = vmatprep.subr.mxu0 0.0
        %1748 = vmatpush1.msra.mxu0 0.0
        %1749 = vmatprep.subr.mxu0 0.0
        %1750 = vmatpush1.msra.mxu0 0.0
        %1751 = vmatprep.subr.mxu0 0.0
        %1752 = vmatpush1.msra.mxu0 0.0
        %1753 = vmatprep.subr.mxu0 0.0
        %1754 = vmatpush1.msra.mxu0 0.0
        %1755 = vmatprep.subr.mxu0 0.0
        %1756 = vmatpush1.msra.mxu0 0.0
        %1757 = vmatprep.subr.mxu0 0.0
        %1758 = vmatpush1.msra.mxu0 0.0
        %1759 = vmatprep.subr.mxu0 0.0
        %1760 = vmatpush1.msra.mxu0 0.0
        %1761 = vmatprep.subr.mxu0 0.0
        %1762 = vmatpush1.msra.mxu0 0.0
        %1763 = vmatprep.subr.mxu0 0.0
        %1764 = vmatpush1.msra.mxu0 0.0
        %1765 = vmatprep.subr.mxu0 0.0
        %1766 = vmatpush1.msra.mxu0 0.0
        %1767 = vmatprep.subr.mxu0 0.0
        %1768 = vmatpush1.msra.mxu0 0.0
        %1769 = vmatprep.subr.mxu0 0.0
        %1770 = vmatpush1.msra.mxu0 0.0
        %1771 = vmatprep.subr.mxu0 0.0
        %1772 = vmatpush1.msra.mxu0 0.0
        %1773 = vmatprep.subr.mxu0 0.0
        %1774 = vmatpush1.msra.mxu0 0.0
        %1775 = vmatprep.subr.mxu0 0.0
        %1776 = vmatpush1.msra.mxu0 %v1740
        %1777 = vmatprep.subr.mxu0 0.0
        %1778 = vmatpush2.msra.mxu0 0.0
        %1779 = vmatprep.subr.mxu0 0.0
        %1780 = vmatpush2.msra.mxu0 0.0
        %1781 = vmatprep.subr.mxu0 0.0
        %1782 = vmatpush2.msra.mxu0 0.0
        %1783 = vmatprep.subr.mxu0 0.0
        %1784 = vmatpush2.msra.mxu0 0.0
        %1785 = vmatprep.subr.mxu0 0.0
        %1786 = vmatpush2.msra.mxu0 0.0
        %1787 = vmatprep.subr.mxu0 0.0
        %1788 = vmatpush2.msra.mxu0 0.0
        %1789 = vmatprep.subr.mxu0 0.0
        %1790 = vmatpush2.msra.mxu0 0.0
        %1791 = vmatprep.subr.mxu0 0.0
        %1792 = vmatpush2.msra.mxu0 0.0
        %1793 = vmatprep.subr.mxu0 0.0
        %1794 = vmatpush2.msra.mxu0 0.0
        %1795 = vmatprep.subr.mxu0 0.0
        %1796 = vmatpush2.msra.mxu0 0.0
        %1797 = vmatprep.subr.mxu0 0.0
        %1798 = vmatpush2.msra.mxu0 0.0
        %1799 = vmatprep.subr.mxu0 0.0
        %1800 = vmatpush2.msra.mxu0 0.0
        %1801 = vmatprep.subr.mxu0 0.0
        %1802 = vmatpush2.msra.mxu0 0.0
        %1803 = vmatprep.subr.mxu0 0.0
        %1804 = vmatpush2.msra.mxu0 0.0
        %1805 = vmatprep.subr.mxu0 0.0
        %1806 = vmatpush2.msra.mxu0 0.0
        %1807 = vmatprep.subr.mxu0 0.0
        %1808 = vmatpush2.msra.mxu0 0.0
        %1809 = vmatprep.mubr.f32.mxu0 0.0
        %1810 = vmatmul.mubr.f32.gmra.mxu0 %v1743
        %v1811 = vpop.f32.mrf.mxu0
        %v1812 = vadd.f32 0.0, %v1811
        %v1813 = vpop.f32.mrf.mxu0
        %1814 = vdwg.mxu0
        %1815 = vrot.lane.b32.xlu0 %v1560, 96
        %v1816 = vpop.permute.xlu0 %1815
        %v1819 = vsel %vm1178, %v1738, 0
        %1821 = vmatprep.subr.mxu0 0.0
        %1822 = vmatpush1.msra.mxu0 0.0
        %1823 = vmatprep.subr.mxu0 0.0
        %1824 = vmatpush1.msra.mxu0 0.0
        %1825 = vmatprep.subr.mxu0 0.0
        %1826 = vmatpush1.msra.mxu0 0.0
        %1827 = vmatprep.subr.mxu0 0.0
        %1828 = vmatpush1.msra.mxu0 0.0
        %1829 = vmatprep.subr.mxu0 0.0
        %1830 = vmatpush1.msra.mxu0 0.0
        %1831 = vmatprep.subr.mxu0 0.0
        %1832 = vmatpush1.msra.mxu0 0.0
        %1833 = vmatprep.subr.mxu0 0.0
        %1834 = vmatpush1.msra.mxu0 0.0
        %1835 = vmatprep.subr.mxu0 0.0
        %1836 = vmatpush1.msra.mxu0 0.0
        %1837 = vmatprep.subr.mxu0 0.0
        %1838 = vmatpush1.msra.mxu0 0.0
        %1839 = vmatprep.subr.mxu0 0.0
        %1840 = vmatpush1.msra.mxu0 0.0
        %1841 = vmatprep.subr.mxu0 0.0
        %1842 = vmatpush1.msra.mxu0 0.0
        %1843 = vmatprep.subr.mxu0 0.0
        %1844 = vmatpush1.msra.mxu0 0.0
        %1845 = vmatprep.subr.mxu0 0.0
        %1846 = vmatpush1.msra.mxu0 0.0
        %1847 = vmatprep.subr.mxu0 0.0
        %1848 = vmatpush1.msra.mxu0 0.0
        %1849 = vmatprep.subr.mxu0 0.0
        %1850 = vmatpush1.msra.mxu0 0.0
        %1851 = vmatprep.subr.mxu0 0.0
        %1852 = vmatpush1.msra.mxu0 %v1816
        %1853 = vmatprep.subr.mxu0 0.0
        %1854 = vmatpush2.msra.mxu0 0.0
        %1855 = vmatprep.subr.mxu0 0.0
        %1856 = vmatpush2.msra.mxu0 0.0
        %1857 = vmatprep.subr.mxu0 0.0
        %1858 = vmatpush2.msra.mxu0 0.0
        %1859 = vmatprep.subr.mxu0 0.0
        %1860 = vmatpush2.msra.mxu0 0.0
        %1861 = vmatprep.subr.mxu0 0.0
        %1862 = vmatpush2.msra.mxu0 0.0
        %1863 = vmatprep.subr.mxu0 0.0
        %1864 = vmatpush2.msra.mxu0 0.0
        %1865 = vmatprep.subr.mxu0 0.0
        %1866 = vmatpush2.msra.mxu0 0.0
        %1867 = vmatprep.subr.mxu0 0.0
        %1868 = vmatpush2.msra.mxu0 0.0
        %1869 = vmatprep.subr.mxu0 0.0
        %1870 = vmatpush2.msra.mxu0 0.0
        %1871 = vmatprep.subr.mxu0 0.0
        %1872 = vmatpush2.msra.mxu0 0.0
        %1873 = vmatprep.subr.mxu0 0.0
        %1874 = vmatpush2.msra.mxu0 0.0
        %1875 = vmatprep.subr.mxu0 0.0
        %1876 = vmatpush2.msra.mxu0 0.0
        %1877 = vmatprep.subr.mxu0 0.0
        %1878 = vmatpush2.msra.mxu0 0.0
        %1879 = vmatprep.subr.mxu0 0.0
        %1880 = vmatpush2.msra.mxu0 0.0
        %1881 = vmatprep.subr.mxu0 0.0
        %1882 = vmatpush2.msra.mxu0 0.0
        %1883 = vmatprep.subr.mxu0 0.0
        %1884 = vmatpush2.msra.mxu0 0.0
        %1885 = vmatprep.mubr.f32.mxu0 0.0
        %1886 = vmatmul.mubr.f32.gmra.mxu0 %v1819
        %v1887 = vpop.f32.mrf.mxu0
        %v1888 = vadd.f32 0.0, %v1887
        %v1889 = vpop.f32.mrf.mxu0
        %1890 = vdwg.mxu0
        %v1891 = vadd.f32 %v1494, %v1812
        %v1892 = vadd.f32 %v1497, %v1888
        %v1893 = vpack.c.bf16 %v1892, %v1891
        %v1895 = vlaneseq
        %v1896 = vshrl.u32 %v1895, 7
        %v1897 = vsub.s32 0, %v1896
        %v1898 = vrot.slane %v1435, %v1897
        %v1904 = vunpack.c.l.b16 %v1437
        %v1905 = vunpack.c.l.b16 %v1438
        %v1906 = vunpack.c.l.b16 %v1439
        %v1907 = vunpack.c.l.b16 %v1440
        %v1908 = vpack.c.b16 %v1905, %v1904
        %v1909 = vpack.c.b16 %v1907, %v1906
        %v1913 = vsel %vm916, %v1893, 0
        %1915 = vmatprep.subr.bf16.mxu0 0
        %1916 = vmatpush1.bf16.msra.mxu0 0
        %1917 = vmatprep.subr.bf16.mxu0 0
        %1918 = vmatpush1.bf16.msra.mxu0 0
        %1919 = vmatprep.subr.bf16.mxu0 0
        %1920 = vmatpush1.bf16.msra.mxu0 0
        %1921 = vmatprep.subr.bf16.mxu0 0
        %1922 = vmatpush1.bf16.msra.mxu0 0
        %1923 = vmatprep.subr.bf16.mxu0 0
        %1924 = vmatpush1.bf16.msra.mxu0 0
        %1925 = vmatprep.subr.bf16.mxu0 0
        %1926 = vmatpush1.bf16.msra.mxu0 0
        %1927 = vmatprep.subr.bf16.mxu0 0
        %1928 = vmatpush1.bf16.msra.mxu0 %v1909
        %1929 = vmatprep.subr.bf16.mxu0 0
        %1930 = vmatpush1.bf16.msra.mxu0 %v1908
        %1931 = vmatprep.subr.bf16.mxu0 0
        %1932 = vmatpush2.bf16.msra.mxu0 0
        %1933 = vmatprep.subr.bf16.mxu0 0
        %1934 = vmatpush2.bf16.msra.mxu0 0
        %1935 = vmatprep.subr.bf16.mxu0 0
        %1936 = vmatpush2.bf16.msra.mxu0 0
        %1937 = vmatprep.subr.bf16.mxu0 0
        %1938 = vmatpush2.bf16.msra.mxu0 0
        %1939 = vmatprep.subr.bf16.mxu0 0
        %1940 = vmatpush2.bf16.msra.mxu0 0
        %1941 = vmatprep.subr.bf16.mxu0 0
        %1942 = vmatpush2.bf16.msra.mxu0 0
        %1943 = vmatprep.subr.bf16.mxu0 0
        %1944 = vmatpush2.bf16.msra.mxu0 0
        %1945 = vmatprep.subr.bf16.mxu0 0
        %1946 = vmatpush2.bf16.msra.mxu0 0
        %1947 = vmatprep.mubr.bf16.mxu0 0
        %1948 = vmatmul.mubr.bf16.gmra.mxu0 %v1913
        %v1949 = vpop.f32.mrf.mxu0
        %v1950 = vadd.f32 %v1898, %v1949
        %v1951 = vpop.f32.mrf.mxu0
        %v1952 = vpop.f32.mrf.mxu0
        %v1953 = vadd.f32 %v1898, %v1952
        %v1954 = vpop.f32.mrf.mxu0
        %1955 = vdwg.mxu0
        %v1956 = vmax.f32 %v1950, 0.0
        %v1957 = vmax.f32 %v1953, 0.0
        %v1958 = vadd.f32 %v1891, %v1956
        %v1959 = vadd.f32 %v1892, %v1957
        %s1960 = scalar_lea.vmem [#allocation10], 16
        %v1961 = vld [vmem:[%s1960] sm:$0xf]
        %v1962 = vld [vmem:[%s1960 + $0x4] sm:$0xf]
        %v1963 = vld [vmem:[%s1960 + $0x8] sm:$0xf]
        %v1964 = vld [vmem:[%s1960 + $0xc] sm:$0xf]
        %s1965 = scalar_lea.vmem [#allocation11], 16
        %v1966 = vld [vmem:[%s1965] sm:$0xf]
        %v1967 = vld [vmem:[%s1965 + $0x4] sm:$0xf]
        %v1968 = vld [vmem:[%s1965 + $0x8] sm:$0xf]
        %v1969 = vld [vmem:[%s1965 + $0xc] sm:$0xf]
        %s1970 = scalar_lea.vmem [#allocation14], 2
        %v1971 = vld [vmem:[%s1970] sm:$0x1]
        %s1972 = scalar_lea.vmem [#allocation16], 2
        %v1973 = vld [vmem:[%s1972] sm:$0x1]
        %s1974 = scalar_lea.vmem [#allocation17], 2
        %v1975 = vld [vmem:[%s1974] sm:$0x1]
        %s1976 = scalar_lea.vmem [#allocation13], 32
        %v1977 = vld [vmem:[%s1976] sm:$0xf]
        %v1978 = vld [vmem:[%s1976 + $0x4] sm:$0xf]
        %v1979 = vld [vmem:[%s1976 + $0x8] sm:$0xf]
        %v1980 = vld [vmem:[%s1976 + $0xc] sm:$0xf]
        %v1981 = vpack.c.bf16 %v879, %v879
        %v1983 = vlaneseq
        %v1984 = vshrl.u32 %v1983, 7
        %v1985 = vsub.s32 0, %v1984
        %v1986 = vrot.slane %v1971, %v1985
        %v1992 = vunpack.c.l.b16 %v1961
        %v1993 = vunpack.c.l.b16 %v1962
        %v1994 = vunpack.c.l.b16 %v1963
        %v1995 = vunpack.c.l.b16 %v1964
        %v1996 = vpack.c.b16 %v1993, %v1992
        %v1997 = vpack.c.b16 %v1995, %v1994
        %v2001 = vsel %vm916, %v1981, 0
        %2003 = vmatprep.subr.bf16.mxu0 0
        %2004 = vmatpush1.bf16.msra.mxu0 0
        %2005 = vmatprep.subr.bf16.mxu0 0
        %2006 = vmatpush1.bf16.msra.mxu0 0
        %2007 = vmatprep.subr.bf16.mxu0 0
        %2008 = vmatpush1.bf16.msra.mxu0 0
        %2009 = vmatprep.subr.bf16.mxu0 0
        %2010 = vmatpush1.bf16.msra.mxu0 0
        %2011 = vmatprep.subr.bf16.mxu0 0
        %2012 = vmatpush1.bf16.msra.mxu0 0
        %2013 = vmatprep.subr.bf16.mxu0 0
        %2014 = vmatpush1.bf16.msra.mxu0 0
        %2015 = vmatprep.subr.bf16.mxu0 0
        %2016 = vmatpush1.bf16.msra.mxu0 %v1997
        %2017 = vmatprep.subr.bf16.mxu0 0
        %2018 = vmatpush1.bf16.msra.mxu0 %v1996
        %2019 = vmatprep.subr.bf16.mxu0 0
        %2020 = vmatpush2.bf16.msra.mxu0 0
        %2021 = vmatprep.subr.bf16.mxu0 0
        %2022 = vmatpush2.bf16.msra.mxu0 0
        %2023 = vmatprep.subr.bf16.mxu0 0
        %2024 = vmatpush2.bf16.msra.mxu0 0
        %2025 = vmatprep.subr.bf16.mxu0 0
        %2026 = vmatpush2.bf16.msra.mxu0 0
        %2027 = vmatprep.subr.bf16.mxu0 0
        %2028 = vmatpush2.bf16.msra.mxu0 0
        %2029 = vmatprep.subr.bf16.mxu0 0
        %2030 = vmatpush2.bf16.msra.mxu0 0
        %2031 = vmatprep.subr.bf16.mxu0 0
        %2032 = vmatpush2.bf16.msra.mxu0 0
        %2033 = vmatprep.subr.bf16.mxu0 0
        %2034 = vmatpush2.bf16.msra.mxu0 0
        %2035 = vmatprep.mubr.bf16.mxu0 0
        %2036 = vmatmul.mubr.bf16.gmra.mxu0 %v2001
        %v2037 = vpop.f32.mrf.mxu0
        %v2038 = vadd.f32 %v1986, %v2037
        %v2039 = vpop.f32.mrf.mxu0
        %v2040 = vpop.f32.mrf.mxu0
        %v2041 = vpop.f32.mrf.mxu0
        %2042 = vdwg.mxu0
        %v2043 = vpack.c.bf16 %v1959, %v1958
        %v2045 = vlaneseq
        %v2046 = vshrl.u32 %v2045, 7
        %v2047 = vsub.s32 0, %v2046
        %v2048 = vrot.slane %v1973, %v2047
        %v2054 = vunpack.c.l.b16 %v1966
        %v2055 = vunpack.c.l.b16 %v1967
        %v2056 = vunpack.c.l.b16 %v1968
        %v2057 = vunpack.c.l.b16 %v1969
        %v2058 = vpack.c.b16 %v2055, %v2054
        %v2059 = vpack.c.b16 %v2057, %v2056
        %v2063 = vsel %vm916, %v2043, 0
        %2065 = vmatprep.subr.bf16.mxu0 0
        %2066 = vmatpush1.bf16.msra.mxu0 0
        %2067 = vmatprep.subr.bf16.mxu0 0
        %2068 = vmatpush1.bf16.msra.mxu0 0
        %2069 = vmatprep.subr.bf16.mxu0 0
        %2070 = vmatpush1.bf16.msra.mxu0 0
        %2071 = vmatprep.subr.bf16.mxu0 0
        %2072 = vmatpush1.bf16.msra.mxu0 0
        %2073 = vmatprep.subr.bf16.mxu0 0
        %2074 = vmatpush1.bf16.msra.mxu0 0
        %2075 = vmatprep.subr.bf16.mxu0 0
        %2076 = vmatpush1.bf16.msra.mxu0 0
        %2077 = vmatprep.subr.bf16.mxu0 0
        %2078 = vmatpush1.bf16.msra.mxu0 %v2059
        %2079 = vmatprep.subr.bf16.mxu0 0
        %2080 = vmatpush1.bf16.msra.mxu0 %v2058
        %2081 = vmatprep.subr.bf16.mxu0 0
        %2082 = vmatpush2.bf16.msra.mxu0 0
        %2083 = vmatprep.subr.bf16.mxu0 0
        %2084 = vmatpush2.bf16.msra.mxu0 0
        %2085 = vmatprep.subr.bf16.mxu0 0
        %2086 = vmatpush2.bf16.msra.mxu0 0
        %2087 = vmatprep.subr.bf16.mxu0 0
        %2088 = vmatpush2.bf16.msra.mxu0 0
        %2089 = vmatprep.subr.bf16.mxu0 0
        %2090 = vmatpush2.bf16.msra.mxu0 0
        %2091 = vmatprep.subr.bf16.mxu0 0
        %2092 = vmatpush2.bf16.msra.mxu0 0
        %2093 = vmatprep.subr.bf16.mxu0 0
        %2094 = vmatpush2.bf16.msra.mxu0 0
        %2095 = vmatprep.subr.bf16.mxu0 0
        %2096 = vmatpush2.bf16.msra.mxu0 0
        %2097 = vmatprep.mubr.bf16.mxu0 0
        %2098 = vmatmul.mubr.bf16.gmra.mxu0 %v2063
        %v2099 = vpop.f32.mrf.mxu0
        %v2100 = vadd.f32 %v2048, %v2099
        %v2101 = vpop.f32.mrf.mxu0
        %v2102 = vpop.f32.mrf.mxu0
        %v2103 = vadd.f32 %v2048, %v2102
        %v2104 = vpop.f32.mrf.mxu0
        %2105 = vdwg.mxu0
        %v2107 = vsel %vm916, %v2038, 0
        %v2110 = vsel %vm916, %v2100, 0
        %2112 = vmatprep.subr.mxu0 0.0
        %2113 = vmatpush1.xpose.msra.mxu0 0.0
        %2114 = vmatprep.subr.mxu0 0.0
        %2115 = vmatpush1.xpose.msra.mxu0 0.0
        %2116 = vmatprep.subr.mxu0 0.0
        %2117 = vmatpush1.xpose.msra.mxu0 0.0
        %2118 = vmatprep.subr.mxu0 0.0
        %2119 = vmatpush1.xpose.msra.mxu0 0.0
        %2120 = vmatprep.subr.mxu0 0.0
        %2121 = vmatpush1.xpose.msra.mxu0 0.0
        %2122 = vmatprep.subr.mxu0 0.0
        %2123 = vmatpush1.xpose.msra.mxu0 0.0
        %2124 = vmatprep.subr.mxu0 0.0
        %2125 = vmatpush1.xpose.msra.mxu0 0.0
        %2126 = vmatprep.subr.mxu0 0.0
        %2127 = vmatpush1.xpose.msra.mxu0 0.0
        %2128 = vmatprep.subr.mxu0 0.0
        %2129 = vmatpush1.xpose.msra.mxu0 0.0
        %2130 = vmatprep.subr.mxu0 0.0
        %2131 = vmatpush1.xpose.msra.mxu0 0.0
        %2132 = vmatprep.subr.mxu0 0.0
        %2133 = vmatpush1.xpose.msra.mxu0 0.0
        %2134 = vmatprep.subr.mxu0 0.0
        %2135 = vmatpush1.xpose.msra.mxu0 0.0
        %2136 = vmatprep.subr.mxu0 0.0
        %2137 = vmatpush1.xpose.msra.mxu0 0.0
        %2138 = vmatprep.subr.mxu0 0.0
        %2139 = vmatpush1.xpose.msra.mxu0 0.0
        %2140 = vmatprep.subr.mxu0 0.0
        %2141 = vmatpush1.xpose.msra.mxu0 0.0
        %2142 = vmatprep.subr.mxu0 0.0
        %2143 = vmatpush1.xpose.msra.mxu0 %v2110
        %2144 = vmatprep.subr.mxu0 0.0
        %2145 = vmatpush2.xpose.msra.mxu0 0.0
        %2146 = vmatprep.subr.mxu0 0.0
        %2147 = vmatpush2.xpose.msra.mxu0 0.0
        %2148 = vmatprep.subr.mxu0 0.0
        %2149 = vmatpush2.xpose.msra.mxu0 0.0
        %2150 = vmatprep.subr.mxu0 0.0
        %2151 = vmatpush2.xpose.msra.mxu0 0.0
        %2152 = vmatprep.subr.mxu0 0.0
        %2153 = vmatpush2.xpose.msra.mxu0 0.0
        %2154 = vmatprep.subr.mxu0 0.0
        %2155 = vmatpush2.xpose.msra.mxu0 0.0
        %2156 = vmatprep.subr.mxu0 0.0
        %2157 = vmatpush2.xpose.msra.mxu0 0.0
        %2158 = vmatprep.subr.mxu0 0.0
        %2159 = vmatpush2.xpose.msra.mxu0 0.0
        %2160 = vmatprep.subr.mxu0 0.0
        %2161 = vmatpush2.xpose.msra.mxu0 0.0
        %2162 = vmatprep.subr.mxu0 0.0
        %2163 = vmatpush2.xpose.msra.mxu0 0.0
        %2164 = vmatprep.subr.mxu0 0.0
        %2165 = vmatpush2.xpose.msra.mxu0 0.0
        %2166 = vmatprep.subr.mxu0 0.0
        %2167 = vmatpush2.xpose.msra.mxu0 0.0
        %2168 = vmatprep.subr.mxu0 0.0
        %2169 = vmatpush2.xpose.msra.mxu0 0.0
        %2170 = vmatprep.subr.mxu0 0.0
        %2171 = vmatpush2.xpose.msra.mxu0 0.0
        %2172 = vmatprep.subr.mxu0 0.0
        %2173 = vmatpush2.xpose.msra.mxu0 0.0
        %2174 = vmatprep.subr.mxu0 0.0
        %2175 = vmatpush2.xpose.msra.mxu0 0.0
        %2176 = vmatprep.mubr.f32.mxu0 0.0
        %2177 = vmatmul.mubr.f32.gmra.mxu0 %v2107
        %v2178 = vpop.f32.mrf.mxu0
        %v2179 = vadd.f32 0.0, %v2178
        %v2180 = vpop.f32.mrf.mxu0
        %2181 = vdwg.mxu0
        %v2183 = vsel %vm916, %v2103, 0
        %2185 = vmatprep.subr.mxu0 0.0
        %2186 = vmatpush1.xpose.msra.mxu0 0.0
        %2187 = vmatprep.subr.mxu0 0.0
        %2188 = vmatpush1.xpose.msra.mxu0 0.0
        %2189 = vmatprep.subr.mxu0 0.0
        %2190 = vmatpush1.xpose.msra.mxu0 0.0
        %2191 = vmatprep.subr.mxu0 0.0
        %2192 = vmatpush1.xpose.msra.mxu0 0.0
        %2193 = vmatprep.subr.mxu0 0.0
        %2194 = vmatpush1.xpose.msra.mxu0 0.0
        %2195 = vmatprep.subr.mxu0 0.0
        %2196 = vmatpush1.xpose.msra.mxu0 0.0
        %2197 = vmatprep.subr.mxu0 0.0
        %2198 = vmatpush1.xpose.msra.mxu0 0.0
        %2199 = vmatprep.subr.mxu0 0.0
        %2200 = vmatpush1.xpose.msra.mxu0 0.0
        %2201 = vmatprep.subr.mxu0 0.0
        %2202 = vmatpush1.xpose.msra.mxu0 0.0
        %2203 = vmatprep.subr.mxu0 0.0
        %2204 = vmatpush1.xpose.msra.mxu0 0.0
        %2205 = vmatprep.subr.mxu0 0.0
        %2206 = vmatpush1.xpose.msra.mxu0 0.0
        %2207 = vmatprep.subr.mxu0 0.0
        %2208 = vmatpush1.xpose.msra.mxu0 0.0
        %2209 = vmatprep.subr.mxu0 0.0
        %2210 = vmatpush1.xpose.msra.mxu0 0.0
        %2211 = vmatprep.subr.mxu0 0.0
        %2212 = vmatpush1.xpose.msra.mxu0 0.0
        %2213 = vmatprep.subr.mxu0 0.0
        %2214 = vmatpush1.xpose.msra.mxu0 0.0
        %2215 = vmatprep.subr.mxu0 0.0
        %2216 = vmatpush1.xpose.msra.mxu0 %v2183
        %2217 = vmatprep.subr.mxu0 0.0
        %2218 = vmatpush2.xpose.msra.mxu0 0.0
        %2219 = vmatprep.subr.mxu0 0.0
        %2220 = vmatpush2.xpose.msra.mxu0 0.0
        %2221 = vmatprep.subr.mxu0 0.0
        %2222 = vmatpush2.xpose.msra.mxu0 0.0
        %2223 = vmatprep.subr.mxu0 0.0
        %2224 = vmatpush2.xpose.msra.mxu0 0.0
        %2225 = vmatprep.subr.mxu0 0.0
        %2226 = vmatpush2.xpose.msra.mxu0 0.0
        %2227 = vmatprep.subr.mxu0 0.0
        %2228 = vmatpush2.xpose.msra.mxu0 0.0
        %2229 = vmatprep.subr.mxu0 0.0
        %2230 = vmatpush2.xpose.msra.mxu0 0.0
        %2231 = vmatprep.subr.mxu0 0.0
        %2232 = vmatpush2.xpose.msra.mxu0 0.0
        %2233 = vmatprep.subr.mxu0 0.0
        %2234 = vmatpush2.xpose.msra.mxu0 0.0
        %2235 = vmatprep.subr.mxu0 0.0
        %2236 = vmatpush2.xpose.msra.mxu0 0.0
        %2237 = vmatprep.subr.mxu0 0.0
        %2238 = vmatpush2.xpose.msra.mxu0 0.0
        %2239 = vmatprep.subr.mxu0 0.0
        %2240 = vmatpush2.xpose.msra.mxu0 0.0
        %2241 = vmatprep.subr.mxu0 0.0
        %2242 = vmatpush2.xpose.msra.mxu0 0.0
        %2243 = vmatprep.subr.mxu0 0.0
        %2244 = vmatpush2.xpose.msra.mxu0 0.0
        %2245 = vmatprep.subr.mxu0 0.0
        %2246 = vmatpush2.xpose.msra.mxu0 0.0
        %2247 = vmatprep.subr.mxu0 0.0
        %2248 = vmatpush2.xpose.msra.mxu0 0.0
        %2249 = vmatprep.mubr.f32.mxu0 0.0
        %2250 = vmatmul.mubr.f32.gmra.mxu0 %v2107
        %v2251 = vpop.f32.mrf.mxu0
        %v2252 = vadd.f32 0.0, %v2251
        %v2253 = vpop.f32.mrf.mxu0
        %2254 = vdwg.mxu0
        %v2255 = vmul.f32 %v2179, 0.17677669
        %v2256 = vmul.f32 %v2252, 0.17677669
        %v2257 = vsel %vm1178, %v2255, -inf
        %2258 = vmax.xlane.f32.xlu0 %v2257
        %v2259 = vpop.xlane.xlu0 %2258
        %v2260 = vsel %vm1178, %v2256, -inf
        %2261 = vmax.xlane.f32.xlu0 %v2260
        %v2262 = vpop.xlane.xlu0 %2261
        %v2263 = vsub.f32 %v2255, %v2259
        %v2264 = vsub.f32 %v2256, %v2262
        %v2265 = vmul.f32 %v2263, 1.442695
        %v2266 = vpow.pop %v2265
        %v2267 = vmul.f32 %v2264, 1.442695
        %v2268 = vpow.pop %v2267
        %v2269 = vsel %vm1178, %v2266, 0.0
        %2270 = vadd.xlane.f32.xlu0 %v2269
        %v2271 = vpop.xlane.xlu0 %2270
        %v2272 = vsel %vm1178, %v2268, 0.0
        %2273 = vadd.xlane.f32.xlu0 %v2272
        %v2274 = vpop.xlane.xlu0 %2273
        %v2275 = vrcp.pop %v2271
        %v2276 = vrcp.pop %v2274
        %v2277 = vmul.f32 %v2266, %v2275
        %v2278 = vmul.f32 %v2268, %v2276
        %2279 = vrot.lane.b32.xlu0 %v2100, 96
        %v2280 = vpop.permute.xlu0 %2279
        %v2283 = vsel %vm1178, %v2277, 0
        %2285 = vmatprep.subr.mxu0 0.0
        %2286 = vmatpush1.msra.mxu0 0.0
        %2287 = vmatprep.subr.mxu0 0.0
        %2288 = vmatpush1.msra.mxu0 0.0
        %2289 = vmatprep.subr.mxu0 0.0
        %2290 = vmatpush1.msra.mxu0 0.0
        %2291 = vmatprep.subr.mxu0 0.0
        %2292 = vmatpush1.msra.mxu0 0.0
        %2293 = vmatprep.subr.mxu0 0.0
        %2294 = vmatpush1.msra.mxu0 0.0
        %2295 = vmatprep.subr.mxu0 0.0
        %2296 = vmatpush1.msra.mxu0 0.0
        %2297 = vmatprep.subr.mxu0 0.0
        %2298 = vmatpush1.msra.mxu0 0.0
        %2299 = vmatprep.subr.mxu0 0.0
        %2300 = vmatpush1.msra.mxu0 0.0
        %2301 = vmatprep.subr.mxu0 0.0
        %2302 = vmatpush1.msra.mxu0 0.0
        %2303 = vmatprep.subr.mxu0 0.0
        %2304 = vmatpush1.msra.mxu0 0.0
        %2305 = vmatprep.subr.mxu0 0.0
        %2306 = vmatpush1.msra.mxu0 0.0
        %2307 = vmatprep.subr.mxu0 0.0
        %2308 = vmatpush1.msra.mxu0 0.0
        %2309 = vmatprep.subr.mxu0 0.0
        %2310 = vmatpush1.msra.mxu0 0.0
        %2311 = vmatprep.subr.mxu0 0.0
        %2312 = vmatpush1.msra.mxu0 0.0
        %2313 = vmatprep.subr.mxu0 0.0
        %2314 = vmatpush1.msra.mxu0 0.0
        %2315 = vmatprep.subr.mxu0 0.0
        %2316 = vmatpush1.msra.mxu0 %v2280
        %2317 = vmatprep.subr.mxu0 0.0
        %2318 = vmatpush2.msra.mxu0 0.0
        %2319 = vmatprep.subr.mxu0 0.0
        %2320 = vmatpush2.msra.mxu0 0.0
        %2321 = vmatprep.subr.mxu0 0.0
        %2322 = vmatpush2.msra.mxu0 0.0
        %2323 = vmatprep.subr.mxu0 0.0
        %2324 = vmatpush2.msra.mxu0 0.0
        %2325 = vmatprep.subr.mxu0 0.0
        %2326 = vmatpush2.msra.mxu0 0.0
        %2327 = vmatprep.subr.mxu0 0.0
        %2328 = vmatpush2.msra.mxu0 0.0
        %2329 = vmatprep.subr.mxu0 0.0
        %2330 = vmatpush2.msra.mxu0 0.0
        %2331 = vmatprep.subr.mxu0 0.0
        %2332 = vmatpush2.msra.mxu0 0.0
        %2333 = vmatprep.subr.mxu0 0.0
        %2334 = vmatpush2.msra.mxu0 0.0
        %2335 = vmatprep.subr.mxu0 0.0
        %2336 = vmatpush2.msra.mxu0 0.0
        %2337 = vmatprep.subr.mxu0 0.0
        %2338 = vmatpush2.msra.mxu0 0.0
        %2339 = vmatprep.subr.mxu0 0.0
        %2340 = vmatpush2.msra.mxu0 0.0
        %2341 = vmatprep.subr.mxu0 0.0
        %2342 = vmatpush2.msra.mxu0 0.0
        %2343 = vmatprep.subr.mxu0 0.0
        %2344 = vmatpush2.msra.mxu0 0.0
        %2345 = vmatprep.subr.mxu0 0.0
        %2346 = vmatpush2.msra.mxu0 0.0
        %2347 = vmatprep.subr.mxu0 0.0
        %2348 = vmatpush2.msra.mxu0 0.0
        %2349 = vmatprep.mubr.f32.mxu0 0.0
        %2350 = vmatmul.mubr.f32.gmra.mxu0 %v2283
        %v2351 = vpop.f32.mrf.mxu0
        %v2352 = vadd.f32 0.0, %v2351
        %v2353 = vpop.f32.mrf.mxu0
        %2354 = vdwg.mxu0
        %2355 = vrot.lane.b32.xlu0 %v2103, 96
        %v2356 = vpop.permute.xlu0 %2355
        %v2359 = vsel %vm1178, %v2278, 0
        %2361 = vmatprep.subr.mxu0 0.0
        %2362 = vmatpush1.msra.mxu0 0.0
        %2363 = vmatprep.subr.mxu0 0.0
        %2364 = vmatpush1.msra.mxu0 0.0
        %2365 = vmatprep.subr.mxu0 0.0
        %2366 = vmatpush1.msra.mxu0 0.0
        %2367 = vmatprep.subr.mxu0 0.0
        %2368 = vmatpush1.msra.mxu0 0.0
        %2369 = vmatprep.subr.mxu0 0.0
        %2370 = vmatpush1.msra.mxu0 0.0
        %2371 = vmatprep.subr.mxu0 0.0
        %2372 = vmatpush1.msra.mxu0 0.0
        %2373 = vmatprep.subr.mxu0 0.0
        %2374 = vmatpush1.msra.mxu0 0.0
        %2375 = vmatprep.subr.mxu0 0.0
        %2376 = vmatpush1.msra.mxu0 0.0
        %2377 = vmatprep.subr.mxu0 0.0
        %2378 = vmatpush1.msra.mxu0 0.0
        %2379 = vmatprep.subr.mxu0 0.0
        %2380 = vmatpush1.msra.mxu0 0.0
        %2381 = vmatprep.subr.mxu0 0.0
        %2382 = vmatpush1.msra.mxu0 0.0
        %2383 = vmatprep.subr.mxu0 0.0
        %2384 = vmatpush1.msra.mxu0 0.0
        %2385 = vmatprep.subr.mxu0 0.0
        %2386 = vmatpush1.msra.mxu0 0.0
        %2387 = vmatprep.subr.mxu0 0.0
        %2388 = vmatpush1.msra.mxu0 0.0
        %2389 = vmatprep.subr.mxu0 0.0
        %2390 = vmatpush1.msra.mxu0 0.0
        %2391 = vmatprep.subr.mxu0 0.0
        %2392 = vmatpush1.msra.mxu0 %v2356
        %2393 = vmatprep.subr.mxu0 0.0
        %2394 = vmatpush2.msra.mxu0 0.0
        %2395 = vmatprep.subr.mxu0 0.0
        %2396 = vmatpush2.msra.mxu0 0.0
        %2397 = vmatprep.subr.mxu0 0.0
        %2398 = vmatpush2.msra.mxu0 0.0
        %2399 = vmatprep.subr.mxu0 0.0
        %2400 = vmatpush2.msra.mxu0 0.0
        %2401 = vmatprep.subr.mxu0 0.0
        %2402 = vmatpush2.msra.mxu0 0.0
        %2403 = vmatprep.subr.mxu0 0.0
        %2404 = vmatpush2.msra.mxu0 0.0
        %2405 = vmatprep.subr.mxu0 0.0
        %2406 = vmatpush2.msra.mxu0 0.0
        %2407 = vmatprep.subr.mxu0 0.0
        %2408 = vmatpush2.msra.mxu0 0.0
        %2409 = vmatprep.subr.mxu0 0.0
        %2410 = vmatpush2.msra.mxu0 0.0
        %2411 = vmatprep.subr.mxu0 0.0
        %2412 = vmatpush2.msra.mxu0 0.0
        %2413 = vmatprep.subr.mxu0 0.0
        %2414 = vmatpush2.msra.mxu0 0.0
        %2415 = vmatprep.subr.mxu0 0.0
        %2416 = vmatpush2.msra.mxu0 0.0
        %2417 = vmatprep.subr.mxu0 0.0
        %2418 = vmatpush2.msra.mxu0 0.0
        %2419 = vmatprep.subr.mxu0 0.0
        %2420 = vmatpush2.msra.mxu0 0.0
        %2421 = vmatprep.subr.mxu0 0.0
        %2422 = vmatpush2.msra.mxu0 0.0
        %2423 = vmatprep.subr.mxu0 0.0
        %2424 = vmatpush2.msra.mxu0 0.0
        %2425 = vmatprep.mubr.f32.mxu0 0.0
        %2426 = vmatmul.mubr.f32.gmra.mxu0 %v2359
        %v2427 = vpop.f32.mrf.mxu0
        %v2428 = vadd.f32 0.0, %v2427
        %v2429 = vpop.f32.mrf.mxu0
        %2430 = vdwg.mxu0
        %v2431 = vadd.f32 %v2038, %v2352
        %v2432 = vadd.f32 %v2038, %v2428
        %v2433 = vpack.c.bf16 %v2432, %v2431
        %v2435 = vlaneseq
        %v2436 = vshrl.u32 %v2435, 7
        %v2437 = vsub.s32 0, %v2436
        %v2438 = vrot.slane %v1975, %v2437
        %v2444 = vunpack.c.l.b16 %v1977
        %v2445 = vunpack.c.l.b16 %v1978
        %v2446 = vunpack.c.l.b16 %v1979
        %v2447 = vunpack.c.l.b16 %v1980
        %v2448 = vpack.c.b16 %v2445, %v2444
        %v2449 = vpack.c.b16 %v2447, %v2446
        %v2453 = vsel %vm916, %v2433, 0
        %2455 = vmatprep.subr.bf16.mxu0 0
        %2456 = vmatpush1.bf16.msra.mxu0 0
        %2457 = vmatprep.subr.bf16.mxu0 0
        %2458 = vmatpush1.bf16.msra.mxu0 0
        %2459 = vmatprep.subr.bf16.mxu0 0
        %2460 = vmatpush1.bf16.msra.mxu0 0
        %2461 = vmatprep.subr.bf16.mxu0 0
        %2462 = vmatpush1.bf16.msra.mxu0 0
        %2463 = vmatprep.subr.bf16.mxu0 0
        %2464 = vmatpush1.bf16.msra.mxu0 0
        %2465 = vmatprep.subr.bf16.mxu0 0
        %2466 = vmatpush1.bf16.msra.mxu0 0
        %2467 = vmatprep.subr.bf16.mxu0 0
        %2468 = vmatpush1.bf16.msra.mxu0 %v2449
        %2469 = vmatprep.subr.bf16.mxu0 0
        %2470 = vmatpush1.bf16.msra.mxu0 %v2448
        %2471 = vmatprep.subr.bf16.mxu0 0
        %2472 = vmatpush2.bf16.msra.mxu0 0
        %2473 = vmatprep.subr.bf16.mxu0 0
        %2474 = vmatpush2.bf16.msra.mxu0 0
        %2475 = vmatprep.subr.bf16.mxu0 0
        %2476 = vmatpush2.bf16.msra.mxu0 0
        %2477 = vmatprep.subr.bf16.mxu0 0
        %2478 = vmatpush2.bf16.msra.mxu0 0
        %2479 = vmatprep.subr.bf16.mxu0 0
        %2480 = vmatpush2.bf16.msra.mxu0 0
        %2481 = vmatprep.subr.bf16.mxu0 0
        %2482 = vmatpush2.bf16.msra.mxu0 0
        %2483 = vmatprep.subr.bf16.mxu0 0
        %2484 = vmatpush2.bf16.msra.mxu0 0
        %2485 = vmatprep.subr.bf16.mxu0 0
        %2486 = vmatpush2.bf16.msra.mxu0 0
        %2487 = vmatprep.mubr.bf16.mxu0 0
        %2488 = vmatmul.mubr.bf16.gmra.mxu0 %v2453
        %v2489 = vpop.f32.mrf.mxu0
        %v2490 = vadd.f32 %v2438, %v2489
        %v2491 = vpop.f32.mrf.mxu0
        %v2492 = vpop.f32.mrf.mxu0
        %v2493 = vadd.f32 %v2438, %v2492
        %v2494 = vpop.f32.mrf.mxu0
        %2495 = vdwg.mxu0
        %v2496 = vmax.f32 %v2490, 0.0
        %v2497 = vmax.f32 %v2493, 0.0
        %v2498 = vadd.f32 %v2431, %v2496
        %v2499 = vadd.f32 %v2432, %v2497
        %s2500 = scalar_lea.vmem [#allocation10], 32
        %v2501 = vld [vmem:[%s2500] sm:$0xf]
        %v2502 = vld [vmem:[%s2500 + $0x4] sm:$0xf]
        %v2503 = vld [vmem:[%s2500 + $0x8] sm:$0xf]
        %v2504 = vld [vmem:[%s2500 + $0xc] sm:$0xf]
        %s2505 = scalar_lea.vmem [#allocation11], 32
        %v2506 = vld [vmem:[%s2505] sm:$0xf]
        %v2507 = vld [vmem:[%s2505 + $0x4] sm:$0xf]
        %v2508 = vld [vmem:[%s2505 + $0x8] sm:$0xf]
        %v2509 = vld [vmem:[%s2505 + $0xc] sm:$0xf]
        %s2510 = scalar_lea.vmem [#allocation14], 3
        %v2511 = vld [vmem:[%s2510] sm:$0x1]
        %s2512 = scalar_lea.vmem [#allocation16], 3
        %v2513 = vld [vmem:[%s2512] sm:$0x1]
        %s2514 = scalar_lea.vmem [#allocation17], 3
        %v2515 = vld [vmem:[%s2514] sm:$0x1]
        %s2516 = scalar_lea.vmem [#allocation13], 48
        %v2517 = vld [vmem:[%s2516] sm:$0xf]
        %v2518 = vld [vmem:[%s2516 + $0x4] sm:$0xf]
        %v2519 = vld [vmem:[%s2516 + $0x8] sm:$0xf]
        %v2520 = vld [vmem:[%s2516 + $0xc] sm:$0xf]
        %v2522 = vlaneseq
        %v2523 = vshrl.u32 %v2522, 7
        %v2524 = vsub.s32 0, %v2523
        %v2525 = vrot.slane %v2511, %v2524
        %v2531 = vunpack.c.l.b16 %v2501
        %v2532 = vunpack.c.l.b16 %v2502
        %v2533 = vunpack.c.l.b16 %v2503
        %v2534 = vunpack.c.l.b16 %v2504
        %v2535 = vpack.c.b16 %v2532, %v2531
        %v2536 = vpack.c.b16 %v2534, %v2533
        %2539 = vmatprep.subr.bf16.mxu0 0
        %2540 = vmatpush1.bf16.msra.mxu0 0
        %2541 = vmatprep.subr.bf16.mxu0 0
        %2542 = vmatpush1.bf16.msra.mxu0 0
        %2543 = vmatprep.subr.bf16.mxu0 0
        %2544 = vmatpush1.bf16.msra.mxu0 0
        %2545 = vmatprep.subr.bf16.mxu0 0
        %2546 = vmatpush1.bf16.msra.mxu0 0
        %2547 = vmatprep.subr.bf16.mxu0 0
        %2548 = vmatpush1.bf16.msra.mxu0 0
        %2549 = vmatprep.subr.bf16.mxu0 0
        %2550 = vmatpush1.bf16.msra.mxu0 0
        %2551 = vmatprep.subr.bf16.mxu0 0
        %2552 = vmatpush1.bf16.msra.mxu0 %v2536
        %2553 = vmatprep.subr.bf16.mxu0 0
        %2554 = vmatpush1.bf16.msra.mxu0 %v2535
        %2555 = vmatprep.subr.bf16.mxu0 0
        %2556 = vmatpush2.bf16.msra.mxu0 0
        %2557 = vmatprep.subr.bf16.mxu0 0
        %2558 = vmatpush2.bf16.msra.mxu0 0
        %2559 = vmatprep.subr.bf16.mxu0 0
        %2560 = vmatpush2.bf16.msra.mxu0 0
        %2561 = vmatprep.subr.bf16.mxu0 0
        %2562 = vmatpush2.bf16.msra.mxu0 0
        %2563 = vmatprep.subr.bf16.mxu0 0
        %2564 = vmatpush2.bf16.msra.mxu0 0
        %2565 = vmatprep.subr.bf16.mxu0 0
        %2566 = vmatpush2.bf16.msra.mxu0 0
        %2567 = vmatprep.subr.bf16.mxu0 0
        %2568 = vmatpush2.bf16.msra.mxu0 0
        %2569 = vmatprep.subr.bf16.mxu0 0
        %2570 = vmatpush2.bf16.msra.mxu0 0
        %2571 = vmatprep.mubr.bf16.mxu0 0
        %2572 = vmatmul.mubr.bf16.gmra.mxu0 %v2063
        %v2573 = vpop.f32.mrf.mxu0
        %v2574 = vadd.f32 %v2525, %v2573
        %v2575 = vpop.f32.mrf.mxu0
        %v2576 = vpop.f32.mrf.mxu0
        %v2577 = vadd.f32 %v2525, %v2576
        %v2578 = vpop.f32.mrf.mxu0
        %2579 = vdwg.mxu0
        %v2580 = vpack.c.bf16 %v2499, %v2498
        %v2582 = vlaneseq
        %v2583 = vshrl.u32 %v2582, 7
        %v2584 = vsub.s32 0, %v2583
        %v2585 = vrot.slane %v2513, %v2584
        %v2591 = vunpack.c.l.b16 %v2506
        %v2592 = vunpack.c.l.b16 %v2507
        %v2593 = vunpack.c.l.b16 %v2508
        %v2594 = vunpack.c.l.b16 %v2509
        %v2595 = vpack.c.b16 %v2592, %v2591
        %v2596 = vpack.c.b16 %v2594, %v2593
        %v2600 = vsel %vm916, %v2580, 0
        %2602 = vmatprep.subr.bf16.mxu0 0
        %2603 = vmatpush1.bf16.msra.mxu0 0
        %2604 = vmatprep.subr.bf16.mxu0 0
        %2605 = vmatpush1.bf16.msra.mxu0 0
        %2606 = vmatprep.subr.bf16.mxu0 0
        %2607 = vmatpush1.bf16.msra.mxu0 0
        %2608 = vmatprep.subr.bf16.mxu0 0
        %2609 = vmatpush1.bf16.msra.mxu0 0
        %2610 = vmatprep.subr.bf16.mxu0 0
        %2611 = vmatpush1.bf16.msra.mxu0 0
        %2612 = vmatprep.subr.bf16.mxu0 0
        %2613 = vmatpush1.bf16.msra.mxu0 0
        %2614 = vmatprep.subr.bf16.mxu0 0
        %2615 = vmatpush1.bf16.msra.mxu0 %v2596
        %2616 = vmatprep.subr.bf16.mxu0 0
        %2617 = vmatpush1.bf16.msra.mxu0 %v2595
        %2618 = vmatprep.subr.bf16.mxu0 0
        %2619 = vmatpush2.bf16.msra.mxu0 0
        %2620 = vmatprep.subr.bf16.mxu0 0
        %2621 = vmatpush2.bf16.msra.mxu0 0
        %2622 = vmatprep.subr.bf16.mxu0 0
        %2623 = vmatpush2.bf16.msra.mxu0 0
        %2624 = vmatprep.subr.bf16.mxu0 0
        %2625 = vmatpush2.bf16.msra.mxu0 0
        %2626 = vmatprep.subr.bf16.mxu0 0
        %2627 = vmatpush2.bf16.msra.mxu0 0
        %2628 = vmatprep.subr.bf16.mxu0 0
        %2629 = vmatpush2.bf16.msra.mxu0 0
        %2630 = vmatprep.subr.bf16.mxu0 0
        %2631 = vmatpush2.bf16.msra.mxu0 0
        %2632 = vmatprep.subr.bf16.mxu0 0
        %2633 = vmatpush2.bf16.msra.mxu0 0
        %2634 = vmatprep.mubr.bf16.mxu0 0
        %2635 = vmatmul.mubr.bf16.gmra.mxu0 %v2600
        %v2636 = vpop.f32.mrf.mxu0
        %v2637 = vadd.f32 %v2585, %v2636
        %v2638 = vpop.f32.mrf.mxu0
        %v2639 = vpop.f32.mrf.mxu0
        %v2640 = vadd.f32 %v2585, %v2639
        %v2641 = vpop.f32.mrf.mxu0
        %2642 = vdwg.mxu0
        %v2644 = vsel %vm916, %v2574, 0
        %v2647 = vsel %vm916, %v2637, 0
        %2649 = vmatprep.subr.mxu0 0.0
        %2650 = vmatpush1.xpose.msra.mxu0 0.0
        %2651 = vmatprep.subr.mxu0 0.0
        %2652 = vmatpush1.xpose.msra.mxu0 0.0
        %2653 = vmatprep.subr.mxu0 0.0
        %2654 = vmatpush1.xpose.msra.mxu0 0.0
        %2655 = vmatprep.subr.mxu0 0.0
        %2656 = vmatpush1.xpose.msra.mxu0 0.0
        %2657 = vmatprep.subr.mxu0 0.0
        %2658 = vmatpush1.xpose.msra.mxu0 0.0
        %2659 = vmatprep.subr.mxu0 0.0
        %2660 = vmatpush1.xpose.msra.mxu0 0.0
        %2661 = vmatprep.subr.mxu0 0.0
        %2662 = vmatpush1.xpose.msra.mxu0 0.0
        %2663 = vmatprep.subr.mxu0 0.0
        %2664 = vmatpush1.xpose.msra.mxu0 0.0
        %2665 = vmatprep.subr.mxu0 0.0
        %2666 = vmatpush1.xpose.msra.mxu0 0.0
        %2667 = vmatprep.subr.mxu0 0.0
        %2668 = vmatpush1.xpose.msra.mxu0 0.0
        %2669 = vmatprep.subr.mxu0 0.0
        %2670 = vmatpush1.xpose.msra.mxu0 0.0
        %2671 = vmatprep.subr.mxu0 0.0
        %2672 = vmatpush1.xpose.msra.mxu0 0.0
        %2673 = vmatprep.subr.mxu0 0.0
        %2674 = vmatpush1.xpose.msra.mxu0 0.0
        %2675 = vmatprep.subr.mxu0 0.0
        %2676 = vmatpush1.xpose.msra.mxu0 0.0
        %2677 = vmatprep.subr.mxu0 0.0
        %2678 = vmatpush1.xpose.msra.mxu0 0.0
        %2679 = vmatprep.subr.mxu0 0.0
        %2680 = vmatpush1.xpose.msra.mxu0 %v2647
        %2681 = vmatprep.subr.mxu0 0.0
        %2682 = vmatpush2.xpose.msra.mxu0 0.0
        %2683 = vmatprep.subr.mxu0 0.0
        %2684 = vmatpush2.xpose.msra.mxu0 0.0
        %2685 = vmatprep.subr.mxu0 0.0
        %2686 = vmatpush2.xpose.msra.mxu0 0.0
        %2687 = vmatprep.subr.mxu0 0.0
        %2688 = vmatpush2.xpose.msra.mxu0 0.0
        %2689 = vmatprep.subr.mxu0 0.0
        %2690 = vmatpush2.xpose.msra.mxu0 0.0
        %2691 = vmatprep.subr.mxu0 0.0
        %2692 = vmatpush2.xpose.msra.mxu0 0.0
        %2693 = vmatprep.subr.mxu0 0.0
        %2694 = vmatpush2.xpose.msra.mxu0 0.0
        %2695 = vmatprep.subr.mxu0 0.0
        %2696 = vmatpush2.xpose.msra.mxu0 0.0
        %2697 = vmatprep.subr.mxu0 0.0
        %2698 = vmatpush2.xpose.msra.mxu0 0.0
        %2699 = vmatprep.subr.mxu0 0.0
        %2700 = vmatpush2.xpose.msra.mxu0 0.0
        %2701 = vmatprep.subr.mxu0 0.0
        %2702 = vmatpush2.xpose.msra.mxu0 0.0
        %2703 = vmatprep.subr.mxu0 0.0
        %2704 = vmatpush2.xpose.msra.mxu0 0.0
        %2705 = vmatprep.subr.mxu0 0.0
        %2706 = vmatpush2.xpose.msra.mxu0 0.0
        %2707 = vmatprep.subr.mxu0 0.0
        %2708 = vmatpush2.xpose.msra.mxu0 0.0
        %2709 = vmatprep.subr.mxu0 0.0
        %2710 = vmatpush2.xpose.msra.mxu0 0.0
        %2711 = vmatprep.subr.mxu0 0.0
        %2712 = vmatpush2.xpose.msra.mxu0 0.0
        %2713 = vmatprep.mubr.f32.mxu0 0.0
        %2714 = vmatmul.mubr.f32.gmra.mxu0 %v2644
        %v2715 = vpop.f32.mrf.mxu0
        %v2716 = vadd.f32 0.0, %v2715
        %v2717 = vpop.f32.mrf.mxu0
        %2718 = vdwg.mxu0
        %v2720 = vsel %vm916, %v2577, 0
        %v2723 = vsel %vm916, %v2640, 0
        %2725 = vmatprep.subr.mxu0 0.0
        %2726 = vmatpush1.xpose.msra.mxu0 0.0
        %2727 = vmatprep.subr.mxu0 0.0
        %2728 = vmatpush1.xpose.msra.mxu0 0.0
        %2729 = vmatprep.subr.mxu0 0.0
        %2730 = vmatpush1.xpose.msra.mxu0 0.0
        %2731 = vmatprep.subr.mxu0 0.0
        %2732 = vmatpush1.xpose.msra.mxu0 0.0
        %2733 = vmatprep.subr.mxu0 0.0
        %2734 = vmatpush1.xpose.msra.mxu0 0.0
        %2735 = vmatprep.subr.mxu0 0.0
        %2736 = vmatpush1.xpose.msra.mxu0 0.0
        %2737 = vmatprep.subr.mxu0 0.0
        %2738 = vmatpush1.xpose.msra.mxu0 0.0
        %2739 = vmatprep.subr.mxu0 0.0
        %2740 = vmatpush1.xpose.msra.mxu0 0.0
        %2741 = vmatprep.subr.mxu0 0.0
        %2742 = vmatpush1.xpose.msra.mxu0 0.0
        %2743 = vmatprep.subr.mxu0 0.0
        %2744 = vmatpush1.xpose.msra.mxu0 0.0
        %2745 = vmatprep.subr.mxu0 0.0
        %2746 = vmatpush1.xpose.msra.mxu0 0.0
        %2747 = vmatprep.subr.mxu0 0.0
        %2748 = vmatpush1.xpose.msra.mxu0 0.0
        %2749 = vmatprep.subr.mxu0 0.0
        %2750 = vmatpush1.xpose.msra.mxu0 0.0
        %2751 = vmatprep.subr.mxu0 0.0
        %2752 = vmatpush1.xpose.msra.mxu0 0.0
        %2753 = vmatprep.subr.mxu0 0.0
        %2754 = vmatpush1.xpose.msra.mxu0 0.0
        %2755 = vmatprep.subr.mxu0 0.0
        %2756 = vmatpush1.xpose.msra.mxu0 %v2723
        %2757 = vmatprep.subr.mxu0 0.0
        %2758 = vmatpush2.xpose.msra.mxu0 0.0
        %2759 = vmatprep.subr.mxu0 0.0
        %2760 = vmatpush2.xpose.msra.mxu0 0.0
        %2761 = vmatprep.subr.mxu0 0.0
        %2762 = vmatpush2.xpose.msra.mxu0 0.0
        %2763 = vmatprep.subr.mxu0 0.0
        %2764 = vmatpush2.xpose.msra.mxu0 0.0
        %2765 = vmatprep.subr.mxu0 0.0
        %2766 = vmatpush2.xpose.msra.mxu0 0.0
        %2767 = vmatprep.subr.mxu0 0.0
        %2768 = vmatpush2.xpose.msra.mxu0 0.0
        %2769 = vmatprep.subr.mxu0 0.0
        %2770 = vmatpush2.xpose.msra.mxu0 0.0
        %2771 = vmatprep.subr.mxu0 0.0
        %2772 = vmatpush2.xpose.msra.mxu0 0.0
        %2773 = vmatprep.subr.mxu0 0.0
        %2774 = vmatpush2.xpose.msra.mxu0 0.0
        %2775 = vmatprep.subr.mxu0 0.0
        %2776 = vmatpush2.xpose.msra.mxu0 0.0
        %2777 = vmatprep.subr.mxu0 0.0
        %2778 = vmatpush2.xpose.msra.mxu0 0.0
        %2779 = vmatprep.subr.mxu0 0.0
        %2780 = vmatpush2.xpose.msra.mxu0 0.0
        %2781 = vmatprep.subr.mxu0 0.0
        %2782 = vmatpush2.xpose.msra.mxu0 0.0
        %2783 = vmatprep.subr.mxu0 0.0
        %2784 = vmatpush2.xpose.msra.mxu0 0.0
        %2785 = vmatprep.subr.mxu0 0.0
        %2786 = vmatpush2.xpose.msra.mxu0 0.0
        %2787 = vmatprep.subr.mxu0 0.0
        %2788 = vmatpush2.xpose.msra.mxu0 0.0
        %2789 = vmatprep.mubr.f32.mxu0 0.0
        %2790 = vmatmul.mubr.f32.gmra.mxu0 %v2720
        %v2791 = vpop.f32.mrf.mxu0
        %v2792 = vadd.f32 0.0, %v2791
        %v2793 = vpop.f32.mrf.mxu0
        %2794 = vdwg.mxu0
        %v2795 = vmul.f32 %v2716, 0.17677669
        %v2796 = vmul.f32 %v2792, 0.17677669
        %v2797 = vsel %vm1178, %v2795, -inf
        %2798 = vmax.xlane.f32.xlu0 %v2797
        %v2799 = vpop.xlane.xlu0 %2798
        %v2800 = vsel %vm1178, %v2796, -inf
        %2801 = vmax.xlane.f32.xlu0 %v2800
        %v2802 = vpop.xlane.xlu0 %2801
        %v2803 = vsub.f32 %v2795, %v2799
        %v2804 = vsub.f32 %v2796, %v2802
        %v2805 = vmul.f32 %v2803, 1.442695
        %v2806 = vpow.pop %v2805
        %v2807 = vmul.f32 %v2804, 1.442695
        %v2808 = vpow.pop %v2807
        %v2809 = vsel %vm1178, %v2806, 0.0
        %2810 = vadd.xlane.f32.xlu0 %v2809
        %v2811 = vpop.xlane.xlu0 %2810
        %v2812 = vsel %vm1178, %v2808, 0.0
        %2813 = vadd.xlane.f32.xlu0 %v2812
        %v2814 = vpop.xlane.xlu0 %2813
        %v2815 = vrcp.pop %v2811
        %v2816 = vrcp.pop %v2814
        %v2817 = vmul.f32 %v2806, %v2815
        %v2818 = vmul.f32 %v2808, %v2816
        %2819 = vrot.lane.b32.xlu0 %v2637, 96
        %v2820 = vpop.permute.xlu0 %2819
        %v2823 = vsel %vm1178, %v2817, 0
        %2825 = vmatprep.subr.mxu0 0.0
        %2826 = vmatpush1.msra.mxu0 0.0
        %2827 = vmatprep.subr.mxu0 0.0
        %2828 = vmatpush1.msra.mxu0 0.0
        %2829 = vmatprep.subr.mxu0 0.0
        %2830 = vmatpush1.msra.mxu0 0.0
        %2831 = vmatprep.subr.mxu0 0.0
        %2832 = vmatpush1.msra.mxu0 0.0
        %2833 = vmatprep.subr.mxu0 0.0
        %2834 = vmatpush1.msra.mxu0 0.0
        %2835 = vmatprep.subr.mxu0 0.0
        %2836 = vmatpush1.msra.mxu0 0.0
        %2837 = vmatprep.subr.mxu0 0.0
        %2838 = vmatpush1.msra.mxu0 0.0
        %2839 = vmatprep.subr.mxu0 0.0
        %2840 = vmatpush1.msra.mxu0 0.0
        %2841 = vmatprep.subr.mxu0 0.0
        %2842 = vmatpush1.msra.mxu0 0.0
        %2843 = vmatprep.subr.mxu0 0.0
        %2844 = vmatpush1.msra.mxu0 0.0
        %2845 = vmatprep.subr.mxu0 0.0
        %2846 = vmatpush1.msra.mxu0 0.0
        %2847 = vmatprep.subr.mxu0 0.0
        %2848 = vmatpush1.msra.mxu0 0.0
        %2849 = vmatprep.subr.mxu0 0.0
        %2850 = vmatpush1.msra.mxu0 0.0
        %2851 = vmatprep.subr.mxu0 0.0
        %2852 = vmatpush1.msra.mxu0 0.0
        %2853 = vmatprep.subr.mxu0 0.0
        %2854 = vmatpush1.msra.mxu0 0.0
        %2855 = vmatprep.subr.mxu0 0.0
        %2856 = vmatpush1.msra.mxu0 %v2820
        %2857 = vmatprep.subr.mxu0 0.0
        %2858 = vmatpush2.msra.mxu0 0.0
        %2859 = vmatprep.subr.mxu0 0.0
        %2860 = vmatpush2.msra.mxu0 0.0
        %2861 = vmatprep.subr.mxu0 0.0
        %2862 = vmatpush2.msra.mxu0 0.0
        %2863 = vmatprep.subr.mxu0 0.0
        %2864 = vmatpush2.msra.mxu0 0.0
        %2865 = vmatprep.subr.mxu0 0.0
        %2866 = vmatpush2.msra.mxu0 0.0
        %2867 = vmatprep.subr.mxu0 0.0
        %2868 = vmatpush2.msra.mxu0 0.0
        %2869 = vmatprep.subr.mxu0 0.0
        %2870 = vmatpush2.msra.mxu0 0.0
        %2871 = vmatprep.subr.mxu0 0.0
        %2872 = vmatpush2.msra.mxu0 0.0
        %2873 = vmatprep.subr.mxu0 0.0
        %2874 = vmatpush2.msra.mxu0 0.0
        %2875 = vmatprep.subr.mxu0 0.0
        %2876 = vmatpush2.msra.mxu0 0.0
        %2877 = vmatprep.subr.mxu0 0.0
        %2878 = vmatpush2.msra.mxu0 0.0
        %2879 = vmatprep.subr.mxu0 0.0
        %2880 = vmatpush2.msra.mxu0 0.0
        %2881 = vmatprep.subr.mxu0 0.0
        %2882 = vmatpush2.msra.mxu0 0.0
        %2883 = vmatprep.subr.mxu0 0.0
        %2884 = vmatpush2.msra.mxu0 0.0
        %2885 = vmatprep.subr.mxu0 0.0
        %2886 = vmatpush2.msra.mxu0 0.0
        %2887 = vmatprep.subr.mxu0 0.0
        %2888 = vmatpush2.msra.mxu0 0.0
        %2889 = vmatprep.mubr.f32.mxu0 0.0
        %2890 = vmatmul.mubr.f32.gmra.mxu0 %v2823
        %v2891 = vpop.f32.mrf.mxu0
        %v2892 = vadd.f32 0.0, %v2891
        %v2893 = vpop.f32.mrf.mxu0
        %2894 = vdwg.mxu0
        %2895 = vrot.lane.b32.xlu0 %v2640, 96
        %v2896 = vpop.permute.xlu0 %2895
        %v2899 = vsel %vm1178, %v2818, 0
        %2901 = vmatprep.subr.mxu0 0.0
        %2902 = vmatpush1.msra.mxu0 0.0
        %2903 = vmatprep.subr.mxu0 0.0
        %2904 = vmatpush1.msra.mxu0 0.0
        %2905 = vmatprep.subr.mxu0 0.0
        %2906 = vmatpush1.msra.mxu0 0.0
        %2907 = vmatprep.subr.mxu0 0.0
        %2908 = vmatpush1.msra.mxu0 0.0
        %2909 = vmatprep.subr.mxu0 0.0
        %2910 = vmatpush1.msra.mxu0 0.0
        %2911 = vmatprep.subr.mxu0 0.0
        %2912 = vmatpush1.msra.mxu0 0.0
        %2913 = vmatprep.subr.mxu0 0.0
        %2914 = vmatpush1.msra.mxu0 0.0
        %2915 = vmatprep.subr.mxu0 0.0
        %2916 = vmatpush1.msra.mxu0 0.0
        %2917 = vmatprep.subr.mxu0 0.0
        %2918 = vmatpush1.msra.mxu0 0.0
        %2919 = vmatprep.subr.mxu0 0.0
        %2920 = vmatpush1.msra.mxu0 0.0
        %2921 = vmatprep.subr.mxu0 0.0
        %2922 = vmatpush1.msra.mxu0 0.0
        %2923 = vmatprep.subr.mxu0 0.0
        %2924 = vmatpush1.msra.mxu0 0.0
        %2925 = vmatprep.subr.mxu0 0.0
        %2926 = vmatpush1.msra.mxu0 0.0
        %2927 = vmatprep.subr.mxu0 0.0
        %2928 = vmatpush1.msra.mxu0 0.0
        %2929 = vmatprep.subr.mxu0 0.0
        %2930 = vmatpush1.msra.mxu0 0.0
        %2931 = vmatprep.subr.mxu0 0.0
        %2932 = vmatpush1.msra.mxu0 %v2896
        %2933 = vmatprep.subr.mxu0 0.0
        %2934 = vmatpush2.msra.mxu0 0.0
        %2935 = vmatprep.subr.mxu0 0.0
        %2936 = vmatpush2.msra.mxu0 0.0
        %2937 = vmatprep.subr.mxu0 0.0
        %2938 = vmatpush2.msra.mxu0 0.0
        %2939 = vmatprep.subr.mxu0 0.0
        %2940 = vmatpush2.msra.mxu0 0.0
        %2941 = vmatprep.subr.mxu0 0.0
        %2942 = vmatpush2.msra.mxu0 0.0
        %2943 = vmatprep.subr.mxu0 0.0
        %2944 = vmatpush2.msra.mxu0 0.0
        %2945 = vmatprep.subr.mxu0 0.0
        %2946 = vmatpush2.msra.mxu0 0.0
        %2947 = vmatprep.subr.mxu0 0.0
        %2948 = vmatpush2.msra.mxu0 0.0
        %2949 = vmatprep.subr.mxu0 0.0
        %2950 = vmatpush2.msra.mxu0 0.0
        %2951 = vmatprep.subr.mxu0 0.0
        %2952 = vmatpush2.msra.mxu0 0.0
        %2953 = vmatprep.subr.mxu0 0.0
        %2954 = vmatpush2.msra.mxu0 0.0
        %2955 = vmatprep.subr.mxu0 0.0
        %2956 = vmatpush2.msra.mxu0 0.0
        %2957 = vmatprep.subr.mxu0 0.0
        %2958 = vmatpush2.msra.mxu0 0.0
        %2959 = vmatprep.subr.mxu0 0.0
        %2960 = vmatpush2.msra.mxu0 0.0
        %2961 = vmatprep.subr.mxu0 0.0
        %2962 = vmatpush2.msra.mxu0 0.0
        %2963 = vmatprep.subr.mxu0 0.0
        %2964 = vmatpush2.msra.mxu0 0.0
        %2965 = vmatprep.mubr.f32.mxu0 0.0
        %2966 = vmatmul.mubr.f32.gmra.mxu0 %v2899
        %v2967 = vpop.f32.mrf.mxu0
        %v2968 = vadd.f32 0.0, %v2967
        %v2969 = vpop.f32.mrf.mxu0
        %2970 = vdwg.mxu0
        %v2971 = vadd.f32 %v2574, %v2892
        %v2972 = vadd.f32 %v2577, %v2968
        %v2973 = vpack.c.bf16 %v2972, %v2971
        %v2975 = vlaneseq
        %v2976 = vshrl.u32 %v2975, 7
        %v2977 = vsub.s32 0, %v2976
        %v2978 = vrot.slane %v2515, %v2977
        %v2984 = vunpack.c.l.b16 %v2517
        %v2985 = vunpack.c.l.b16 %v2518
        %v2986 = vunpack.c.l.b16 %v2519
        %v2987 = vunpack.c.l.b16 %v2520
        %v2988 = vpack.c.b16 %v2985, %v2984
        %v2989 = vpack.c.b16 %v2987, %v2986
        %v2993 = vsel %vm916, %v2973, 0
        %2995 = vmatprep.subr.bf16.mxu0 0
        %2996 = vmatpush1.bf16.msra.mxu0 0
        %2997 = vmatprep.subr.bf16.mxu0 0
        %2998 = vmatpush1.bf16.msra.mxu0 0
        %2999 = vmatprep.subr.bf16.mxu0 0
        %3000 = vmatpush1.bf16.msra.mxu0 0
        %3001 = vmatprep.subr.bf16.mxu0 0
        %3002 = vmatpush1.bf16.msra.mxu0 0
        %3003 = vmatprep.subr.bf16.mxu0 0
        %3004 = vmatpush1.bf16.msra.mxu0 0
        %3005 = vmatprep.subr.bf16.mxu0 0
        %3006 = vmatpush1.bf16.msra.mxu0 0
        %3007 = vmatprep.subr.bf16.mxu0 0
        %3008 = vmatpush1.bf16.msra.mxu0 %v2989
        %3009 = vmatprep.subr.bf16.mxu0 0
        %3010 = vmatpush1.bf16.msra.mxu0 %v2988
        %3011 = vmatprep.subr.bf16.mxu0 0
        %3012 = vmatpush2.bf16.msra.mxu0 0
        %3013 = vmatprep.subr.bf16.mxu0 0
        %3014 = vmatpush2.bf16.msra.mxu0 0
        %3015 = vmatprep.subr.bf16.mxu0 0
        %3016 = vmatpush2.bf16.msra.mxu0 0
        %3017 = vmatprep.subr.bf16.mxu0 0
        %3018 = vmatpush2.bf16.msra.mxu0 0
        %3019 = vmatprep.subr.bf16.mxu0 0
        %3020 = vmatpush2.bf16.msra.mxu0 0
        %3021 = vmatprep.subr.bf16.mxu0 0
        %3022 = vmatpush2.bf16.msra.mxu0 0
        %3023 = vmatprep.subr.bf16.mxu0 0
        %3024 = vmatpush2.bf16.msra.mxu0 0
        %3025 = vmatprep.subr.bf16.mxu0 0
        %3026 = vmatpush2.bf16.msra.mxu0 0
        %3027 = vmatprep.mubr.bf16.mxu0 0
        %3028 = vmatmul.mubr.bf16.gmra.mxu0 %v2993
        %v3029 = vpop.f32.mrf.mxu0
        %v3030 = vadd.f32 %v2978, %v3029
        %v3031 = vpop.f32.mrf.mxu0
        %v3032 = vpop.f32.mrf.mxu0
        %v3033 = vadd.f32 %v2978, %v3032
        %v3034 = vpop.f32.mrf.mxu0
        %3035 = vdwg.mxu0
        %v3036 = vmax.f32 %v3030, 0.0
        %v3037 = vmax.f32 %v3033, 0.0
        %v3038 = vadd.f32 %v2971, %v3036
        %v3039 = vadd.f32 %v2972, %v3037
        %s3040 = scalar_lea.vmem [#allocation10], 48
        %v3041 = vld [vmem:[%s3040] sm:$0xf]
        %v3042 = vld [vmem:[%s3040 + $0x4] sm:$0xf]
        %v3043 = vld [vmem:[%s3040 + $0x8] sm:$0xf]
        %v3044 = vld [vmem:[%s3040 + $0xc] sm:$0xf]
        %s3045 = scalar_lea.vmem [#allocation11], 48
        %v3046 = vld [vmem:[%s3045] sm:$0xf]
        %v3047 = vld [vmem:[%s3045 + $0x4] sm:$0xf]
        %v3048 = vld [vmem:[%s3045 + $0x8] sm:$0xf]
        %v3049 = vld [vmem:[%s3045 + $0xc] sm:$0xf]
        %s3050 = scalar_lea.vmem [#allocation14], 4
        %v3051 = vld [vmem:[%s3050] sm:$0x1]
        %s3052 = scalar_lea.vmem [#allocation16], 4
        %v3053 = vld [vmem:[%s3052] sm:$0x1]
        %s3054 = scalar_lea.vmem [#allocation17], 4
        %v3055 = vld [vmem:[%s3054] sm:$0x1]
        %s3056 = scalar_lea.vmem [#allocation13], 64
        %v3057 = vld [vmem:[%s3056] sm:$0xf]
        %v3058 = vld [vmem:[%s3056 + $0x4] sm:$0xf]
        %v3059 = vld [vmem:[%s3056 + $0x8] sm:$0xf]
        %v3060 = vld [vmem:[%s3056 + $0xc] sm:$0xf]
        %v3061 = vpack.c.bf16 %v881, %v880
        %v3063 = vlaneseq
        %v3064 = vshrl.u32 %v3063, 7
        %v3065 = vsub.s32 0, %v3064
        %v3066 = vrot.slane %v3051, %v3065
        %v3072 = vunpack.c.l.b16 %v3041
        %v3073 = vunpack.c.l.b16 %v3042
        %v3074 = vunpack.c.l.b16 %v3043
        %v3075 = vunpack.c.l.b16 %v3044
        %v3076 = vpack.c.b16 %v3073, %v3072
        %v3077 = vpack.c.b16 %v3075, %v3074
        %v3081 = vsel %vm916, %v3061, 0
        %3083 = vmatprep.subr.bf16.mxu0 0
        %3084 = vmatpush1.bf16.msra.mxu0 0
        %3085 = vmatprep.subr.bf16.mxu0 0
        %3086 = vmatpush1.bf16.msra.mxu0 0
        %3087 = vmatprep.subr.bf16.mxu0 0
        %3088 = vmatpush1.bf16.msra.mxu0 0
        %3089 = vmatprep.subr.bf16.mxu0 0
        %3090 = vmatpush1.bf16.msra.mxu0 0
        %3091 = vmatprep.subr.bf16.mxu0 0
        %3092 = vmatpush1.bf16.msra.mxu0 0
        %3093 = vmatprep.subr.bf16.mxu0 0
        %3094 = vmatpush1.bf16.msra.mxu0 0
        %3095 = vmatprep.subr.bf16.mxu0 0
        %3096 = vmatpush1.bf16.msra.mxu0 %v3077
        %3097 = vmatprep.subr.bf16.mxu0 0
        %3098 = vmatpush1.bf16.msra.mxu0 %v3076
        %3099 = vmatprep.subr.bf16.mxu0 0
        %3100 = vmatpush2.bf16.msra.mxu0 0
        %3101 = vmatprep.subr.bf16.mxu0 0
        %3102 = vmatpush2.bf16.msra.mxu0 0
        %3103 = vmatprep.subr.bf16.mxu0 0
        %3104 = vmatpush2.bf16.msra.mxu0 0
        %3105 = vmatprep.subr.bf16.mxu0 0
        %3106 = vmatpush2.bf16.msra.mxu0 0
        %3107 = vmatprep.subr.bf16.mxu0 0
        %3108 = vmatpush2.bf16.msra.mxu0 0
        %3109 = vmatprep.subr.bf16.mxu0 0
        %3110 = vmatpush2.bf16.msra.mxu0 0
        %3111 = vmatprep.subr.bf16.mxu0 0
        %3112 = vmatpush2.bf16.msra.mxu0 0
        %3113 = vmatprep.subr.bf16.mxu0 0
        %3114 = vmatpush2.bf16.msra.mxu0 0
        %3115 = vmatprep.mubr.bf16.mxu0 0
        %3116 = vmatmul.mubr.bf16.gmra.mxu0 %v3081
        %v3117 = vpop.f32.mrf.mxu0
        %v3118 = vadd.f32 %v3066, %v3117
        %v3119 = vpop.f32.mrf.mxu0
        %v3120 = vpop.f32.mrf.mxu0
        %v3121 = vadd.f32 %v3066, %v3120
        %v3122 = vpop.f32.mrf.mxu0
        %3123 = vdwg.mxu0
        %v3124 = vpack.c.bf16 %v3039, %v3038
        %v3126 = vlaneseq
        %v3127 = vshrl.u32 %v3126, 7
        %v3128 = vsub.s32 0, %v3127
        %v3129 = vrot.slane %v3053, %v3128
        %v3135 = vunpack.c.l.b16 %v3046
        %v3136 = vunpack.c.l.b16 %v3047
        %v3137 = vunpack.c.l.b16 %v3048
        %v3138 = vunpack.c.l.b16 %v3049
        %v3139 = vpack.c.b16 %v3136, %v3135
        %v3140 = vpack.c.b16 %v3138, %v3137
        %v3144 = vsel %vm916, %v3124, 0
        %3146 = vmatprep.subr.bf16.mxu0 0
        %3147 = vmatpush1.bf16.msra.mxu0 0
        %3148 = vmatprep.subr.bf16.mxu0 0
        %3149 = vmatpush1.bf16.msra.mxu0 0
        %3150 = vmatprep.subr.bf16.mxu0 0
        %3151 = vmatpush1.bf16.msra.mxu0 0
        %3152 = vmatprep.subr.bf16.mxu0 0
        %3153 = vmatpush1.bf16.msra.mxu0 0
        %3154 = vmatprep.subr.bf16.mxu0 0
        %3155 = vmatpush1.bf16.msra.mxu0 0
        %3156 = vmatprep.subr.bf16.mxu0 0
        %3157 = vmatpush1.bf16.msra.mxu0 0
        %3158 = vmatprep.subr.bf16.mxu0 0
        %3159 = vmatpush1.bf16.msra.mxu0 %v3140
        %3160 = vmatprep.subr.bf16.mxu0 0
        %3161 = vmatpush1.bf16.msra.mxu0 %v3139
        %3162 = vmatprep.subr.bf16.mxu0 0
        %3163 = vmatpush2.bf16.msra.mxu0 0
        %3164 = vmatprep.subr.bf16.mxu0 0
        %3165 = vmatpush2.bf16.msra.mxu0 0
        %3166 = vmatprep.subr.bf16.mxu0 0
        %3167 = vmatpush2.bf16.msra.mxu0 0
        %3168 = vmatprep.subr.bf16.mxu0 0
        %3169 = vmatpush2.bf16.msra.mxu0 0
        %3170 = vmatprep.subr.bf16.mxu0 0
        %3171 = vmatpush2.bf16.msra.mxu0 0
        %3172 = vmatprep.subr.bf16.mxu0 0
        %3173 = vmatpush2.bf16.msra.mxu0 0
        %3174 = vmatprep.subr.bf16.mxu0 0
        %3175 = vmatpush2.bf16.msra.mxu0 0
        %3176 = vmatprep.subr.bf16.mxu0 0
        %3177 = vmatpush2.bf16.msra.mxu0 0
        %3178 = vmatprep.mubr.bf16.mxu0 0
        %3179 = vmatmul.mubr.bf16.gmra.mxu0 %v3144
        %v3180 = vpop.f32.mrf.mxu0
        %v3181 = vadd.f32 %v3129, %v3180
        %v3182 = vpop.f32.mrf.mxu0
        %v3183 = vpop.f32.mrf.mxu0
        %v3184 = vadd.f32 %v3129, %v3183
        %v3185 = vpop.f32.mrf.mxu0
        %3186 = vdwg.mxu0
        %v3188 = vsel %vm916, %v3118, 0
        %v3191 = vsel %vm916, %v3121, 0
        %v3194 = vsel %vm916, %v3181, 0
        %3196 = vmatprep.subr.mxu0 0.0
        %3197 = vmatpush1.xpose.msra.mxu0 0.0
        %3198 = vmatprep.subr.mxu0 0.0
        %3199 = vmatpush1.xpose.msra.mxu0 0.0
        %3200 = vmatprep.subr.mxu0 0.0
        %3201 = vmatpush1.xpose.msra.mxu0 0.0
        %3202 = vmatprep.subr.mxu0 0.0
        %3203 = vmatpush1.xpose.msra.mxu0 0.0
        %3204 = vmatprep.subr.mxu0 0.0
        %3205 = vmatpush1.xpose.msra.mxu0 0.0
        %3206 = vmatprep.subr.mxu0 0.0
        %3207 = vmatpush1.xpose.msra.mxu0 0.0
        %3208 = vmatprep.subr.mxu0 0.0
        %3209 = vmatpush1.xpose.msra.mxu0 0.0
        %3210 = vmatprep.subr.mxu0 0.0
        %3211 = vmatpush1.xpose.msra.mxu0 0.0
        %3212 = vmatprep.subr.mxu0 0.0
        %3213 = vmatpush1.xpose.msra.mxu0 0.0
        %3214 = vmatprep.subr.mxu0 0.0
        %3215 = vmatpush1.xpose.msra.mxu0 0.0
        %3216 = vmatprep.subr.mxu0 0.0
        %3217 = vmatpush1.xpose.msra.mxu0 0.0
        %3218 = vmatprep.subr.mxu0 0.0
        %3219 = vmatpush1.xpose.msra.mxu0 0.0
        %3220 = vmatprep.subr.mxu0 0.0
        %3221 = vmatpush1.xpose.msra.mxu0 0.0
        %3222 = vmatprep.subr.mxu0 0.0
        %3223 = vmatpush1.xpose.msra.mxu0 0.0
        %3224 = vmatprep.subr.mxu0 0.0
        %3225 = vmatpush1.xpose.msra.mxu0 0.0
        %3226 = vmatprep.subr.mxu0 0.0
        %3227 = vmatpush1.xpose.msra.mxu0 %v3194
        %3228 = vmatprep.subr.mxu0 0.0
        %3229 = vmatpush2.xpose.msra.mxu0 0.0
        %3230 = vmatprep.subr.mxu0 0.0
        %3231 = vmatpush2.xpose.msra.mxu0 0.0
        %3232 = vmatprep.subr.mxu0 0.0
        %3233 = vmatpush2.xpose.msra.mxu0 0.0
        %3234 = vmatprep.subr.mxu0 0.0
        %3235 = vmatpush2.xpose.msra.mxu0 0.0
        %3236 = vmatprep.subr.mxu0 0.0
        %3237 = vmatpush2.xpose.msra.mxu0 0.0
        %3238 = vmatprep.subr.mxu0 0.0
        %3239 = vmatpush2.xpose.msra.mxu0 0.0
        %3240 = vmatprep.subr.mxu0 0.0
        %3241 = vmatpush2.xpose.msra.mxu0 0.0
        %3242 = vmatprep.subr.mxu0 0.0
        %3243 = vmatpush2.xpose.msra.mxu0 0.0
        %3244 = vmatprep.subr.mxu0 0.0
        %3245 = vmatpush2.xpose.msra.mxu0 0.0
        %3246 = vmatprep.subr.mxu0 0.0
        %3247 = vmatpush2.xpose.msra.mxu0 0.0
        %3248 = vmatprep.subr.mxu0 0.0
        %3249 = vmatpush2.xpose.msra.mxu0 0.0
        %3250 = vmatprep.subr.mxu0 0.0
        %3251 = vmatpush2.xpose.msra.mxu0 0.0
        %3252 = vmatprep.subr.mxu0 0.0
        %3253 = vmatpush2.xpose.msra.mxu0 0.0
        %3254 = vmatprep.subr.mxu0 0.0
        %3255 = vmatpush2.xpose.msra.mxu0 0.0
        %3256 = vmatprep.subr.mxu0 0.0
        %3257 = vmatpush2.xpose.msra.mxu0 0.0
        %3258 = vmatprep.subr.mxu0 0.0
        %3259 = vmatpush2.xpose.msra.mxu0 0.0
        %3260 = vmatprep.mubr.f32.mxu0 0.0
        %3261 = vmatmul.mubr.f32.gmra.mxu0 %v3188
        %v3262 = vpop.f32.mrf.mxu0
        %v3263 = vadd.f32 0.0, %v3262
        %v3264 = vpop.f32.mrf.mxu0
        %3265 = vmatprep.mubr.f32.mxu0 0.0
        %3266 = vmatmul.mubr.f32.gmra.mxu0 %v3191
        %v3267 = vpop.f32.mrf.mxu0
        %v3268 = vadd.f32 0.0, %v3267
        %v3269 = vpop.f32.mrf.mxu0
        %3270 = vdwg.mxu0
        %v3272 = vsel %vm916, %v3184, 0
        %3274 = vmatprep.subr.mxu0 0.0
        %3275 = vmatpush1.xpose.msra.mxu0 0.0
        %3276 = vmatprep.subr.mxu0 0.0
        %3277 = vmatpush1.xpose.msra.mxu0 0.0
        %3278 = vmatprep.subr.mxu0 0.0
        %3279 = vmatpush1.xpose.msra.mxu0 0.0
        %3280 = vmatprep.subr.mxu0 0.0
        %3281 = vmatpush1.xpose.msra.mxu0 0.0
        %3282 = vmatprep.subr.mxu0 0.0
        %3283 = vmatpush1.xpose.msra.mxu0 0.0
        %3284 = vmatprep.subr.mxu0 0.0
        %3285 = vmatpush1.xpose.msra.mxu0 0.0
        %3286 = vmatprep.subr.mxu0 0.0
        %3287 = vmatpush1.xpose.msra.mxu0 0.0
        %3288 = vmatprep.subr.mxu0 0.0
        %3289 = vmatpush1.xpose.msra.mxu0 0.0
        %3290 = vmatprep.subr.mxu0 0.0
        %3291 = vmatpush1.xpose.msra.mxu0 0.0
        %3292 = vmatprep.subr.mxu0 0.0
        %3293 = vmatpush1.xpose.msra.mxu0 0.0
        %3294 = vmatprep.subr.mxu0 0.0
        %3295 = vmatpush1.xpose.msra.mxu0 0.0
        %3296 = vmatprep.subr.mxu0 0.0
        %3297 = vmatpush1.xpose.msra.mxu0 0.0
        %3298 = vmatprep.subr.mxu0 0.0
        %3299 = vmatpush1.xpose.msra.mxu0 0.0
        %3300 = vmatprep.subr.mxu0 0.0
        %3301 = vmatpush1.xpose.msra.mxu0 0.0
        %3302 = vmatprep.subr.mxu0 0.0
        %3303 = vmatpush1.xpose.msra.mxu0 0.0
        %3304 = vmatprep.subr.mxu0 0.0
        %3305 = vmatpush1.xpose.msra.mxu0 %v3272
        %3306 = vmatprep.subr.mxu0 0.0
        %3307 = vmatpush2.xpose.msra.mxu0 0.0
        %3308 = vmatprep.subr.mxu0 0.0
        %3309 = vmatpush2.xpose.msra.mxu0 0.0
        %3310 = vmatprep.subr.mxu0 0.0
        %3311 = vmatpush2.xpose.msra.mxu0 0.0
        %3312 = vmatprep.subr.mxu0 0.0
        %3313 = vmatpush2.xpose.msra.mxu0 0.0
        %3314 = vmatprep.subr.mxu0 0.0
        %3315 = vmatpush2.xpose.msra.mxu0 0.0
        %3316 = vmatprep.subr.mxu0 0.0
        %3317 = vmatpush2.xpose.msra.mxu0 0.0
        %3318 = vmatprep.subr.mxu0 0.0
        %3319 = vmatpush2.xpose.msra.mxu0 0.0
        %3320 = vmatprep.subr.mxu0 0.0
        %3321 = vmatpush2.xpose.msra.mxu0 0.0
        %3322 = vmatprep.subr.mxu0 0.0
        %3323 = vmatpush2.xpose.msra.mxu0 0.0
        %3324 = vmatprep.subr.mxu0 0.0
        %3325 = vmatpush2.xpose.msra.mxu0 0.0
        %3326 = vmatprep.subr.mxu0 0.0
        %3327 = vmatpush2.xpose.msra.mxu0 0.0
        %3328 = vmatprep.subr.mxu0 0.0
        %3329 = vmatpush2.xpose.msra.mxu0 0.0
        %3330 = vmatprep.subr.mxu0 0.0
        %3331 = vmatpush2.xpose.msra.mxu0 0.0
        %3332 = vmatprep.subr.mxu0 0.0
        %3333 = vmatpush2.xpose.msra.mxu0 0.0
        %3334 = vmatprep.subr.mxu0 0.0
        %3335 = vmatpush2.xpose.msra.mxu0 0.0
        %3336 = vmatprep.subr.mxu0 0.0
        %3337 = vmatpush2.xpose.msra.mxu0 0.0
        %3338 = vmatprep.mubr.f32.mxu0 0.0
        %3339 = vmatmul.mubr.f32.gmra.mxu0 %v3188
        %v3340 = vpop.f32.mrf.mxu0
        %v3341 = vadd.f32 0.0, %v3340
        %v3342 = vpop.f32.mrf.mxu0
        %3343 = vmatprep.mubr.f32.mxu0 0.0
        %3344 = vmatmul.mubr.f32.gmra.mxu0 %v3191
        %v3345 = vpop.f32.mrf.mxu0
        %v3346 = vadd.f32 0.0, %v3345
        %v3347 = vpop.f32.mrf.mxu0
        %3348 = vdwg.mxu0
        %v3349 = vmul.f32 %v3263, 0.17677669
        %v3350 = vmul.f32 %v3268, 0.17677669
        %v3351 = vmul.f32 %v3341, 0.17677669
        %v3352 = vmul.f32 %v3346, 0.17677669
        %v3353 = vsel %vm1178, %v3349, -inf
        %3354 = vmax.xlane.f32.xlu0 %v3353
        %v3355 = vpop.xlane.xlu0 %3354
        %v3356 = vsel %vm1178, %v3350, -inf
        %3357 = vmax.xlane.f32.xlu0 %v3356
        %v3358 = vpop.xlane.xlu0 %3357
        %v3359 = vsel %vm1178, %v3351, -inf
        %3360 = vmax.xlane.f32.xlu0 %v3359
        %v3361 = vpop.xlane.xlu0 %3360
        %v3362 = vsel %vm1178, %v3352, -inf
        %3363 = vmax.xlane.f32.xlu0 %v3362
        %v3364 = vpop.xlane.xlu0 %3363
        %v3365 = vsub.f32 %v3349, %v3355
        %v3366 = vsub.f32 %v3350, %v3358
        %v3367 = vsub.f32 %v3351, %v3361
        %v3368 = vsub.f32 %v3352, %v3364
        %v3369 = vmul.f32 %v3365, 1.442695
        %v3370 = vpow.pop %v3369
        %v3371 = vmul.f32 %v3366, 1.442695
        %v3372 = vpow.pop %v3371
        %v3373 = vmul.f32 %v3367, 1.442695
        %v3374 = vpow.pop %v3373
        %v3375 = vmul.f32 %v3368, 1.442695
        %v3376 = vpow.pop %v3375
        %v3377 = vsel %vm1178, %v3370, 0.0
        %3378 = vadd.xlane.f32.xlu0 %v3377
        %v3379 = vpop.xlane.xlu0 %3378
        %v3380 = vsel %vm1178, %v3372, 0.0
        %3381 = vadd.xlane.f32.xlu0 %v3380
        %v3382 = vpop.xlane.xlu0 %3381
        %v3383 = vsel %vm1178, %v3374, 0.0
        %3384 = vadd.xlane.f32.xlu0 %v3383
        %v3385 = vpop.xlane.xlu0 %3384
        %v3386 = vsel %vm1178, %v3376, 0.0
        %3387 = vadd.xlane.f32.xlu0 %v3386
        %v3388 = vpop.xlane.xlu0 %3387
        %v3389 = vrcp.pop %v3379
        %v3390 = vrcp.pop %v3382
        %v3391 = vrcp.pop %v3385
        %v3392 = vrcp.pop %v3388
        %v3393 = vmul.f32 %v3370, %v3389
        %v3394 = vmul.f32 %v3372, %v3390
        %v3395 = vmul.f32 %v3374, %v3391
        %v3396 = vmul.f32 %v3376, %v3392
        %3397 = vrot.lane.b32.xlu0 %v3181, 96
        %v3398 = vpop.permute.xlu0 %3397
        %v3401 = vsel %vm1178, %v3393, 0
        %v3404 = vsel %vm1178, %v3394, 0
        %3406 = vmatprep.subr.mxu0 0.0
        %3407 = vmatpush1.msra.mxu0 0.0
        %3408 = vmatprep.subr.mxu0 0.0
        %3409 = vmatpush1.msra.mxu0 0.0
        %3410 = vmatprep.subr.mxu0 0.0
        %3411 = vmatpush1.msra.mxu0 0.0
        %3412 = vmatprep.subr.mxu0 0.0
        %3413 = vmatpush1.msra.mxu0 0.0
        %3414 = vmatprep.subr.mxu0 0.0
        %3415 = vmatpush1.msra.mxu0 0.0
        %3416 = vmatprep.subr.mxu0 0.0
        %3417 = vmatpush1.msra.mxu0 0.0
        %3418 = vmatprep.subr.mxu0 0.0
        %3419 = vmatpush1.msra.mxu0 0.0
        %3420 = vmatprep.subr.mxu0 0.0
        %3421 = vmatpush1.msra.mxu0 0.0
        %3422 = vmatprep.subr.mxu0 0.0
        %3423 = vmatpush1.msra.mxu0 0.0
        %3424 = vmatprep.subr.mxu0 0.0
        %3425 = vmatpush1.msra.mxu0 0.0
        %3426 = vmatprep.subr.mxu0 0.0
        %3427 = vmatpush1.msra.mxu0 0.0
        %3428 = vmatprep.subr.mxu0 0.0
        %3429 = vmatpush1.msra.mxu0 0.0
        %3430 = vmatprep.subr.mxu0 0.0
        %3431 = vmatpush1.msra.mxu0 0.0
        %3432 = vmatprep.subr.mxu0 0.0
        %3433 = vmatpush1.msra.mxu0 0.0
        %3434 = vmatprep.subr.mxu0 0.0
        %3435 = vmatpush1.msra.mxu0 0.0
        %3436 = vmatprep.subr.mxu0 0.0
        %3437 = vmatpush1.msra.mxu0 %v3398
        %3438 = vmatprep.subr.mxu0 0.0
        %3439 = vmatpush2.msra.mxu0 0.0
        %3440 = vmatprep.subr.mxu0 0.0
        %3441 = vmatpush2.msra.mxu0 0.0
        %3442 = vmatprep.subr.mxu0 0.0
        %3443 = vmatpush2.msra.mxu0 0.0
        %3444 = vmatprep.subr.mxu0 0.0
        %3445 = vmatpush2.msra.mxu0 0.0
        %3446 = vmatprep.subr.mxu0 0.0
        %3447 = vmatpush2.msra.mxu0 0.0
        %3448 = vmatprep.subr.mxu0 0.0
        %3449 = vmatpush2.msra.mxu0 0.0
        %3450 = vmatprep.subr.mxu0 0.0
        %3451 = vmatpush2.msra.mxu0 0.0
        %3452 = vmatprep.subr.mxu0 0.0
        %3453 = vmatpush2.msra.mxu0 0.0
        %3454 = vmatprep.subr.mxu0 0.0
        %3455 = vmatpush2.msra.mxu0 0.0
        %3456 = vmatprep.subr.mxu0 0.0
        %3457 = vmatpush2.msra.mxu0 0.0
        %3458 = vmatprep.subr.mxu0 0.0
        %3459 = vmatpush2.msra.mxu0 0.0
        %3460 = vmatprep.subr.mxu0 0.0
        %3461 = vmatpush2.msra.mxu0 0.0
        %3462 = vmatprep.subr.mxu0 0.0
        %3463 = vmatpush2.msra.mxu0 0.0
        %3464 = vmatprep.subr.mxu0 0.0
        %3465 = vmatpush2.msra.mxu0 0.0
        %3466 = vmatprep.subr.mxu0 0.0
        %3467 = vmatpush2.msra.mxu0 0.0
        %3468 = vmatprep.subr.mxu0 0.0
        %3469 = vmatpush2.msra.mxu0 0.0
        %3470 = vmatprep.mubr.f32.mxu0 0.0
        %3471 = vmatmul.mubr.f32.gmra.mxu0 %v3401
        %v3472 = vpop.f32.mrf.mxu0
        %v3473 = vadd.f32 0.0, %v3472
        %v3474 = vpop.f32.mrf.mxu0
        %3475 = vmatprep.mubr.f32.mxu0 0.0
        %3476 = vmatmul.mubr.f32.gmra.mxu0 %v3404
        %v3477 = vpop.f32.mrf.mxu0
        %v3478 = vadd.f32 0.0, %v3477
        %v3479 = vpop.f32.mrf.mxu0
        %3480 = vdwg.mxu0
        %3481 = vrot.lane.b32.xlu0 %v3184, 96
        %v3482 = vpop.permute.xlu0 %3481
        %v3485 = vsel %vm1178, %v3395, 0
        %v3488 = vsel %vm1178, %v3396, 0
        %3490 = vmatprep.subr.mxu0 0.0
        %3491 = vmatpush1.msra.mxu0 0.0
        %3492 = vmatprep.subr.mxu0 0.0
        %3493 = vmatpush1.msra.mxu0 0.0
        %3494 = vmatprep.subr.mxu0 0.0
        %3495 = vmatpush1.msra.mxu0 0.0
        %3496 = vmatprep.subr.mxu0 0.0
        %3497 = vmatpush1.msra.mxu0 0.0
        %3498 = vmatprep.subr.mxu0 0.0
        %3499 = vmatpush1.msra.mxu0 0.0
        %3500 = vmatprep.subr.mxu0 0.0
        %3501 = vmatpush1.msra.mxu0 0.0
        %3502 = vmatprep.subr.mxu0 0.0
        %3503 = vmatpush1.msra.mxu0 0.0
        %3504 = vmatprep.subr.mxu0 0.0
        %3505 = vmatpush1.msra.mxu0 0.0
        %3506 = vmatprep.subr.mxu0 0.0
        %3507 = vmatpush1.msra.mxu0 0.0
        %3508 = vmatprep.subr.mxu0 0.0
        %3509 = vmatpush1.msra.mxu0 0.0
        %3510 = vmatprep.subr.mxu0 0.0
        %3511 = vmatpush1.msra.mxu0 0.0
        %3512 = vmatprep.subr.mxu0 0.0
        %3513 = vmatpush1.msra.mxu0 0.0
        %3514 = vmatprep.subr.mxu0 0.0
        %3515 = vmatpush1.msra.mxu0 0.0
        %3516 = vmatprep.subr.mxu0 0.0
        %3517 = vmatpush1.msra.mxu0 0.0
        %3518 = vmatprep.subr.mxu0 0.0
        %3519 = vmatpush1.msra.mxu0 0.0
        %3520 = vmatprep.subr.mxu0 0.0
        %3521 = vmatpush1.msra.mxu0 %v3482
        %3522 = vmatprep.subr.mxu0 0.0
        %3523 = vmatpush2.msra.mxu0 0.0
        %3524 = vmatprep.subr.mxu0 0.0
        %3525 = vmatpush2.msra.mxu0 0.0
        %3526 = vmatprep.subr.mxu0 0.0
        %3527 = vmatpush2.msra.mxu0 0.0
        %3528 = vmatprep.subr.mxu0 0.0
        %3529 = vmatpush2.msra.mxu0 0.0
        %3530 = vmatprep.subr.mxu0 0.0
        %3531 = vmatpush2.msra.mxu0 0.0
        %3532 = vmatprep.subr.mxu0 0.0
        %3533 = vmatpush2.msra.mxu0 0.0
        %3534 = vmatprep.subr.mxu0 0.0
        %3535 = vmatpush2.msra.mxu0 0.0
        %3536 = vmatprep.subr.mxu0 0.0
        %3537 = vmatpush2.msra.mxu0 0.0
        %3538 = vmatprep.subr.mxu0 0.0
        %3539 = vmatpush2.msra.mxu0 0.0
        %3540 = vmatprep.subr.mxu0 0.0
        %3541 = vmatpush2.msra.mxu0 0.0
        %3542 = vmatprep.subr.mxu0 0.0
        %3543 = vmatpush2.msra.mxu0 0.0
        %3544 = vmatprep.subr.mxu0 0.0
        %3545 = vmatpush2.msra.mxu0 0.0
        %3546 = vmatprep.subr.mxu0 0.0
        %3547 = vmatpush2.msra.mxu0 0.0
        %3548 = vmatprep.subr.mxu0 0.0
        %3549 = vmatpush2.msra.mxu0 0.0
        %3550 = vmatprep.subr.mxu0 0.0
        %3551 = vmatpush2.msra.mxu0 0.0
        %3552 = vmatprep.subr.mxu0 0.0
        %3553 = vmatpush2.msra.mxu0 0.0
        %3554 = vmatprep.mubr.f32.mxu0 0.0
        %3555 = vmatmul.mubr.f32.gmra.mxu0 %v3485
        %v3556 = vpop.f32.mrf.mxu0
        %v3557 = vadd.f32 0.0, %v3556
        %v3558 = vpop.f32.mrf.mxu0
        %3559 = vmatprep.mubr.f32.mxu0 0.0
        %3560 = vmatmul.mubr.f32.gmra.mxu0 %v3488
        %v3561 = vpop.f32.mrf.mxu0
        %v3562 = vadd.f32 0.0, %v3561
        %v3563 = vpop.f32.mrf.mxu0
        %3564 = vdwg.mxu0
        %v3565 = vadd.f32 %v3118, %v3473
        %v3566 = vadd.f32 %v3121, %v3478
        %v3567 = vadd.f32 %v3118, %v3557
        %v3568 = vadd.f32 %v3121, %v3562
        %v3569 = vpack.c.bf16 %v3566, %v3565
        %v3570 = vpack.c.bf16 %v3568, %v3567
        %v3572 = vlaneseq
        %v3573 = vshrl.u32 %v3572, 7
        %v3574 = vsub.s32 0, %v3573
        %v3575 = vrot.slane %v3055, %v3574
        %v3581 = vunpack.c.l.b16 %v3057
        %v3582 = vunpack.c.l.b16 %v3058
        %v3583 = vunpack.c.l.b16 %v3059
        %v3584 = vunpack.c.l.b16 %v3060
        %v3585 = vpack.c.b16 %v3582, %v3581
        %v3586 = vpack.c.b16 %v3584, %v3583
        %v3590 = vsel %vm916, %v3569, 0
        %v3593 = vsel %vm916, %v3570, 0
        %3595 = vmatprep.subr.bf16.mxu0 0
        %3596 = vmatpush1.bf16.msra.mxu0 0
        %3597 = vmatprep.subr.bf16.mxu0 0
        %3598 = vmatpush1.bf16.msra.mxu0 0
        %3599 = vmatprep.subr.bf16.mxu0 0
        %3600 = vmatpush1.bf16.msra.mxu0 0
        %3601 = vmatprep.subr.bf16.mxu0 0
        %3602 = vmatpush1.bf16.msra.mxu0 0
        %3603 = vmatprep.subr.bf16.mxu0 0
        %3604 = vmatpush1.bf16.msra.mxu0 0
        %3605 = vmatprep.subr.bf16.mxu0 0
        %3606 = vmatpush1.bf16.msra.mxu0 0
        %3607 = vmatprep.subr.bf16.mxu0 0
        %3608 = vmatpush1.bf16.msra.mxu0 %v3586
        %3609 = vmatprep.subr.bf16.mxu0 0
        %3610 = vmatpush1.bf16.msra.mxu0 %v3585
        %3611 = vmatprep.subr.bf16.mxu0 0
        %3612 = vmatpush2.bf16.msra.mxu0 0
        %3613 = vmatprep.subr.bf16.mxu0 0
        %3614 = vmatpush2.bf16.msra.mxu0 0
        %3615 = vmatprep.subr.bf16.mxu0 0
        %3616 = vmatpush2.bf16.msra.mxu0 0
        %3617 = vmatprep.subr.bf16.mxu0 0
        %3618 = vmatpush2.bf16.msra.mxu0 0
        %3619 = vmatprep.subr.bf16.mxu0 0
        %3620 = vmatpush2.bf16.msra.mxu0 0
        %3621 = vmatprep.subr.bf16.mxu0 0
        %3622 = vmatpush2.bf16.msra.mxu0 0
        %3623 = vmatprep.subr.bf16.mxu0 0
        %3624 = vmatpush2.bf16.msra.mxu0 0
        %3625 = vmatprep.subr.bf16.mxu0 0
        %3626 = vmatpush2.bf16.msra.mxu0 0
        %3627 = vmatprep.mubr.bf16.mxu0 0
        %3628 = vmatmul.mubr.bf16.gmra.mxu0 %v3590
        %v3629 = vpop.f32.mrf.mxu0
        %v3630 = vadd.f32 %v3575, %v3629
        %v3631 = vpop.f32.mrf.mxu0
        %v3632 = vpop.f32.mrf.mxu0
        %v3633 = vadd.f32 %v3575, %v3632
        %v3634 = vpop.f32.mrf.mxu0
        %3635 = vmatprep.mubr.bf16.mxu0 0
        %3636 = vmatmul.mubr.bf16.gmra.mxu0 %v3593
        %v3637 = vpop.f32.mrf.mxu0
        %v3638 = vadd.f32 %v3575, %v3637
        %v3639 = vpop.f32.mrf.mxu0
        %v3640 = vpop.f32.mrf.mxu0
        %v3641 = vadd.f32 %v3575, %v3640
        %v3642 = vpop.f32.mrf.mxu0
        %3643 = vdwg.mxu0
        %v3644 = vmax.f32 %v3630, 0.0
        %v3645 = vmax.f32 %v3633, 0.0
        %v3646 = vmax.f32 %v3638, 0.0
        %v3647 = vmax.f32 %v3641, 0.0
        %v3648 = vadd.f32 %v3565, %v3644
        %v3649 = vadd.f32 %v3566, %v3645
        %v3650 = vadd.f32 %v3567, %v3646
        %v3651 = vadd.f32 %v3568, %v3647
        %v3652 = vld [vmem:[#allocation20] sm:$0xf]
        %v3653 = vld [vmem:[#allocation20 + $0x4] sm:$0xf]
        %v3654 = vld [vmem:[#allocation20 + $0x8] sm:$0xf]
        %v3655 = vld [vmem:[#allocation20 + $0xc] sm:$0xf]
        %v3656 = vpack.c.bf16 %v3649, %v3648
        %v3657 = vpack.c.bf16 %v3651, %v3650
        %v3658 = vld [vmem:[%s13] sm:$0x1]
        %v3660 = vlaneseq
        %v3661 = vshrl.u32 %v3660, 7
        %v3662 = vsub.s32 0, %v3661
        %v3663 = vrot.slane %v3658, %v3662
        %v3669 = vunpack.c.l.b16 %v3652
        %v3670 = vunpack.c.l.b16 %v3653
        %v3671 = vunpack.c.l.b16 %v3654
        %v3672 = vunpack.c.l.b16 %v3655
        %v3673 = vpack.c.b16 %v3670, %v3669
        %v3674 = vpack.c.b16 %v3672, %v3671
        %v3678 = vsel %vm916, %v3656, 0
        %v3681 = vsel %vm916, %v3657, 0
        %3683 = vmatprep.subr.bf16.mxu0 0
        %3684 = vmatpush1.bf16.msra.mxu0 0
        %3685 = vmatprep.subr.bf16.mxu0 0
        %3686 = vmatpush1.bf16.msra.mxu0 0
        %3687 = vmatprep.subr.bf16.mxu0 0
        %3688 = vmatpush1.bf16.msra.mxu0 0
        %3689 = vmatprep.subr.bf16.mxu0 0
        %3690 = vmatpush1.bf16.msra.mxu0 0
        %3691 = vmatprep.subr.bf16.mxu0 0
        %3692 = vmatpush1.bf16.msra.mxu0 0
        %3693 = vmatprep.subr.bf16.mxu0 0
        %3694 = vmatpush1.bf16.msra.mxu0 0
        %3695 = vmatprep.subr.bf16.mxu0 0
        %3696 = vmatpush1.bf16.msra.mxu0 %v3674
        %3697 = vmatprep.subr.bf16.mxu0 0
        %3698 = vmatpush1.bf16.msra.mxu0 %v3673
        %3699 = vmatprep.subr.bf16.mxu0 0
        %3700 = vmatpush2.bf16.msra.mxu0 0
        %3701 = vmatprep.subr.bf16.mxu0 0
        %3702 = vmatpush2.bf16.msra.mxu0 0
        %3703 = vmatprep.subr.bf16.mxu0 0
        %3704 = vmatpush2.bf16.msra.mxu0 0
        %3705 = vmatprep.subr.bf16.mxu0 0
        %3706 = vmatpush2.bf16.msra.mxu0 0
        %3707 = vmatprep.subr.bf16.mxu0 0
        %3708 = vmatpush2.bf16.msra.mxu0 0
        %3709 = vmatprep.subr.bf16.mxu0 0
        %3710 = vmatpush2.bf16.msra.mxu0 0
        %3711 = vmatprep.subr.bf16.mxu0 0
        %3712 = vmatpush2.bf16.msra.mxu0 0
        %3713 = vmatprep.subr.bf16.mxu0 0
        %3714 = vmatpush2.bf16.msra.mxu0 0
        %3715 = vmatprep.mubr.bf16.mxu0 0
        %3716 = vmatmul.mubr.bf16.gmra.mxu0 %v3678
        %v3717 = vpop.f32.mrf.mxu0
        %v3718 = vadd.f32 %v3663, %v3717
        %v3719 = vpop.f32.mrf.mxu0
        %v3720 = vpop.f32.mrf.mxu0
        %v3721 = vadd.f32 %v3663, %v3720
        %v3722 = vpop.f32.mrf.mxu0
        %3723 = vmatprep.mubr.bf16.mxu0 0
        %3724 = vmatmul.mubr.bf16.gmra.mxu0 %v3681
        %v3725 = vpop.f32.mrf.mxu0
        %v3726 = vadd.f32 %v3663, %v3725
        %v3727 = vpop.f32.mrf.mxu0
        %v3728 = vpop.f32.mrf.mxu0
        %v3729 = vadd.f32 %v3663, %v3728
        %v3730 = vpop.f32.mrf.mxu0
        %3731 = vdwg.mxu0
        %vm3732 = vcmp.ne.f32.partialorder %v3718, %v3718
        %vm3733 = vcmp.ne.f32.partialorder %v3721, %v3721
        %vm3734 = vcmp.ne.f32.partialorder %v3726, %v3726
        %vm3735 = vcmp.ne.f32.partialorder %v3729, %v3729
        %v3736 = vsel %vm3732, 1, 0
        %v3737 = vsel %vm3733, 1, 0
        %v3738 = vsel %vm3734, 1, 0
        %v3739 = vsel %vm3735, 1, 0
        %v3740 = vcvt.s32.f32 %v3736
        %v3741 = vcvt.s32.f32 %v3737
        %v3742 = vcvt.s32.f32 %v3738
        %v3743 = vcvt.s32.f32 %v3739
        %v3744 = vsel %vm916, %v3740, -inf
        %3745 = vmax.xlane.f32.xlu0 %v3744
        %v3746 = vpop.xlane.xlu0 %3745
        %v3747 = vsel %vm916, %v3741, -inf
        %3748 = vmax.xlane.f32.xlu0 %v3747
        %v3749 = vpop.xlane.xlu0 %3748
        %v3750 = vsel %vm916, %v3742, -inf
        %3751 = vmax.xlane.f32.xlu0 %v3750
        %v3752 = vpop.xlane.xlu0 %3751
        %v3753 = vsel %vm916, %v3743, -inf
        %3754 = vmax.xlane.f32.xlu0 %v3753
        %v3755 = vpop.xlane.xlu0 %3754
        %v3756 = vmax.f32 %v3746, %v3749
        %v3757 = vrot.slane %v3756, 4
        %v3758 = vmax.f32 %v3756, %v3757
        %v3759 = vrot.slane %v3758, 2
        %v3760 = vmax.f32 %v3758, %v3759
        %v3761 = vrot.slane %v3760, 1
        %v3762 = vmax.f32 %v3760, %v3761
        %v3763 = vmax.f32 %v3752, %v3755
        %v3764 = vrot.slane %v3763, 4
        %v3765 = vmax.f32 %v3763, %v3764
        %v3766 = vrot.slane %v3765, 2
        %v3767 = vmax.f32 %v3765, %v3766
        %v3768 = vrot.slane %v3767, 1
        %v3769 = vmax.f32 %v3767, %v3768
        %v3770 = vmax.f32 %v3762, %v3769
        %vm3771 = vcmask 0
        %3772 = vst.msk [vmem:[%s873] sm:$0x1] %vm3771, %v3770
        %v3773 = vsel %vm916, %v3718, -inf
        %v3774 = vsel %vm916, %v3721, -inf
        %v3775 = vmax.f32 %v3773, %v3774
        %v3776 = vrot.slane %v3775, 4
        %v3777 = vmax.f32 %v3775, %v3776
        %v3778 = vrot.slane %v3777, 2
        %v3779 = vmax.f32 %v3777, %v3778
        %v3780 = vrot.slane %v3779, 1
        %v3781 = vmax.f32 %v3779, %v3780
        %v3782 = vsel %vm916, %v3726, -inf
        %v3783 = vsel %vm916, %v3729, -inf
        %v3784 = vmax.f32 %v3782, %v3783
        %v3785 = vrot.slane %v3784, 4
        %v3786 = vmax.f32 %v3784, %v3785
        %v3787 = vrot.slane %v3786, 2
        %v3788 = vmax.f32 %v3786, %v3787
        %v3789 = vrot.slane %v3788, 1
        %v3790 = vmax.f32 %v3788, %v3789
        %v3791 = vld [vmem:[%s14] sm:$0x1]
        %v3792 = vld [vmem:[%s15] sm:$0x1]
        %v3794 = vsel %vm916, %v3791, 0
        %v3797 = vsel %vm916, %v3718, 0
        %v3800 = vsel %vm916, %v3721, 0
        %3802 = vmatprep.subr.mxu0 0.0
        %3803 = vmatpush1.xpose.msra.mxu0 0.0
        %3804 = vmatprep.subr.mxu0 0.0
        %3805 = vmatpush1.xpose.msra.mxu0 0.0
        %3806 = vmatprep.subr.mxu0 0.0
        %3807 = vmatpush1.xpose.msra.mxu0 0.0
        %3808 = vmatprep.subr.mxu0 0.0
        %3809 = vmatpush1.xpose.msra.mxu0 0.0
        %3810 = vmatprep.subr.mxu0 0.0
        %3811 = vmatpush1.xpose.msra.mxu0 0.0
        %3812 = vmatprep.subr.mxu0 0.0
        %3813 = vmatpush1.xpose.msra.mxu0 0.0
        %3814 = vmatprep.subr.mxu0 0.0
        %3815 = vmatpush1.xpose.msra.mxu0 0.0
        %3816 = vmatprep.subr.mxu0 0.0
        %3817 = vmatpush1.xpose.msra.mxu0 0.0
        %3818 = vmatprep.subr.mxu0 0.0
        %3819 = vmatpush1.xpose.msra.mxu0 0.0
        %3820 = vmatprep.subr.mxu0 0.0
        %3821 = vmatpush1.xpose.msra.mxu0 0.0
        %3822 = vmatprep.subr.mxu0 0.0
        %3823 = vmatpush1.xpose.msra.mxu0 0.0
        %3824 = vmatprep.subr.mxu0 0.0
        %3825 = vmatpush1.xpose.msra.mxu0 0.0
        %3826 = vmatprep.subr.mxu0 0.0
        %3827 = vmatpush1.xpose.msra.mxu0 0.0
        %3828 = vmatprep.subr.mxu0 0.0
        %3829 = vmatpush1.xpose.msra.mxu0 0.0
        %3830 = vmatprep.subr.mxu0 0.0
        %3831 = vmatpush1.xpose.msra.mxu0 %v3800
        %3832 = vmatprep.subr.mxu0 0.0
        %3833 = vmatpush1.xpose.msra.mxu0 %v3797
        %3834 = vmatprep.subr.mxu0 0.0
        %3835 = vmatpush2.xpose.msra.mxu0 0.0
        %3836 = vmatprep.subr.mxu0 0.0
        %3837 = vmatpush2.xpose.msra.mxu0 0.0
        %3838 = vmatprep.subr.mxu0 0.0
        %3839 = vmatpush2.xpose.msra.mxu0 0.0
        %3840 = vmatprep.subr.mxu0 0.0
        %3841 = vmatpush2.xpose.msra.mxu0 0.0
        %3842 = vmatprep.subr.mxu0 0.0
        %3843 = vmatpush2.xpose.msra.mxu0 0.0
        %3844 = vmatprep.subr.mxu0 0.0
        %3845 = vmatpush2.xpose.msra.mxu0 0.0
        %3846 = vmatprep.subr.mxu0 0.0
        %3847 = vmatpush2.xpose.msra.mxu0 0.0
        %3848 = vmatprep.subr.mxu0 0.0
        %3849 = vmatpush2.xpose.msra.mxu0 0.0
        %3850 = vmatprep.subr.mxu0 0.0
        %3851 = vmatpush2.xpose.msra.mxu0 0.0
        %3852 = vmatprep.subr.mxu0 0.0
        %3853 = vmatpush2.xpose.msra.mxu0 0.0
        %3854 = vmatprep.subr.mxu0 0.0
        %3855 = vmatpush2.xpose.msra.mxu0 0.0
        %3856 = vmatprep.subr.mxu0 0.0
        %3857 = vmatpush2.xpose.msra.mxu0 0.0
        %3858 = vmatprep.subr.mxu0 0.0
        %3859 = vmatpush2.xpose.msra.mxu0 0.0
        %3860 = vmatprep.subr.mxu0 0.0
        %3861 = vmatpush2.xpose.msra.mxu0 0.0
        %3862 = vmatprep.subr.mxu0 0.0
        %3863 = vmatpush2.xpose.msra.mxu0 0.0
        %3864 = vmatprep.subr.mxu0 0.0
        %3865 = vmatpush2.xpose.msra.mxu0 0.0
        %3866 = vmatprep.mubr.f32.mxu0 0.0
        %3867 = vmatmul.mubr.f32.gmra.mxu0 %v3794
        %v3868 = vpop.f32.mrf.mxu0
        %v3869 = vadd.f32 %v3792, %v3868
        %v3870 = vpop.f32.mrf.mxu0
        %3871 = vdwg.mxu0
        %v3873 = vsel %vm916, %v3726, 0
        %v3876 = vsel %vm916, %v3729, 0
        %3878 = vmatprep.subr.mxu0 0.0
        %3879 = vmatpush1.xpose.msra.mxu0 0.0
        %3880 = vmatprep.subr.mxu0 0.0
        %3881 = vmatpush1.xpose.msra.mxu0 0.0
        %3882 = vmatprep.subr.mxu0 0.0
        %3883 = vmatpush1.xpose.msra.mxu0 0.0
        %3884 = vmatprep.subr.mxu0 0.0
        %3885 = vmatpush1.xpose.msra.mxu0 0.0
        %3886 = vmatprep.subr.mxu0 0.0
        %3887 = vmatpush1.xpose.msra.mxu0 0.0
        %3888 = vmatprep.subr.mxu0 0.0
        %3889 = vmatpush1.xpose.msra.mxu0 0.0
        %3890 = vmatprep.subr.mxu0 0.0
        %3891 = vmatpush1.xpose.msra.mxu0 0.0
        %3892 = vmatprep.subr.mxu0 0.0
        %3893 = vmatpush1.xpose.msra.mxu0 0.0
        %3894 = vmatprep.subr.mxu0 0.0
        %3895 = vmatpush1.xpose.msra.mxu0 0.0
        %3896 = vmatprep.subr.mxu0 0.0
        %3897 = vmatpush1.xpose.msra.mxu0 0.0
        %3898 = vmatprep.subr.mxu0 0.0
        %3899 = vmatpush1.xpose.msra.mxu0 0.0
        %3900 = vmatprep.subr.mxu0 0.0
        %3901 = vmatpush1.xpose.msra.mxu0 0.0
        %3902 = vmatprep.subr.mxu0 0.0
        %3903 = vmatpush1.xpose.msra.mxu0 0.0
        %3904 = vmatprep.subr.mxu0 0.0
        %3905 = vmatpush1.xpose.msra.mxu0 0.0
        %3906 = vmatprep.subr.mxu0 0.0
        %3907 = vmatpush1.xpose.msra.mxu0 %v3876
        %3908 = vmatprep.subr.mxu0 0.0
        %3909 = vmatpush1.xpose.msra.mxu0 %v3873
        %3910 = vmatprep.subr.mxu0 0.0
        %3911 = vmatpush2.xpose.msra.mxu0 0.0
        %3912 = vmatprep.subr.mxu0 0.0
        %3913 = vmatpush2.xpose.msra.mxu0 0.0
        %3914 = vmatprep.subr.mxu0 0.0
        %3915 = vmatpush2.xpose.msra.mxu0 0.0
        %3916 = vmatprep.subr.mxu0 0.0
        %3917 = vmatpush2.xpose.msra.mxu0 0.0
        %3918 = vmatprep.subr.mxu0 0.0
        %3919 = vmatpush2.xpose.msra.mxu0 0.0
        %3920 = vmatprep.subr.mxu0 0.0
        %3921 = vmatpush2.xpose.msra.mxu0 0.0
        %3922 = vmatprep.subr.mxu0 0.0
        %3923 = vmatpush2.xpose.msra.mxu0 0.0
        %3924 = vmatprep.subr.mxu0 0.0
        %3925 = vmatpush2.xpose.msra.mxu0 0.0
        %3926 = vmatprep.subr.mxu0 0.0
        %3927 = vmatpush2.xpose.msra.mxu0 0.0
        %3928 = vmatprep.subr.mxu0 0.0
        %3929 = vmatpush2.xpose.msra.mxu0 0.0
        %3930 = vmatprep.subr.mxu0 0.0
        %3931 = vmatpush2.xpose.msra.mxu0 0.0
        %3932 = vmatprep.subr.mxu0 0.0
        %3933 = vmatpush2.xpose.msra.mxu0 0.0
        %3934 = vmatprep.subr.mxu0 0.0
        %3935 = vmatpush2.xpose.msra.mxu0 0.0
        %3936 = vmatprep.subr.mxu0 0.0
        %3937 = vmatpush2.xpose.msra.mxu0 0.0
        %3938 = vmatprep.subr.mxu0 0.0
        %3939 = vmatpush2.xpose.msra.mxu0 0.0
        %3940 = vmatprep.subr.mxu0 0.0
        %3941 = vmatpush2.xpose.msra.mxu0 0.0
        %3942 = vmatprep.mubr.f32.mxu0 0.0
        %3943 = vmatmul.mubr.f32.gmra.mxu0 %v3794
        %v3944 = vpop.f32.mrf.mxu0
        %v3945 = vadd.f32 %v3792, %v3944
        %v3946 = vpop.f32.mrf.mxu0
        %3947 = vdwg.mxu0
        %v3948 = vtanh.pop %v3869
        %v3949 = vtanh.pop %v3945
        %v3950 = vmul.f32 %v3948, 1.442695
        %v3951 = vpow.pop %v3950
        %v3952 = vmul.f32 %v3949, 1.442695
        %v3953 = vpow.pop %v3952
        %v3954 = vld [vmem:[%s755] sm:$0x1]
        %v3955 = vld [vmem:[%s755 + $0x1] sm:$0x1]
        %v3956 = vmul.f32 %v3951, %v3954
        %v3957 = vmul.f32 %v3953, %v3955
        %vm3958 = vcmask 122880
        %v3959 = vsel %vm3958, %v3956, 0.0
        %3960 = vadd.xlane.f32.xlu0 %v3959
        %v3961 = vpop.xlane.xlu0 %3960
        %v3962 = vsel %vm3958, %v3957, 0.0
        %3963 = vadd.xlane.f32.xlu0 %v3962
        %v3964 = vpop.xlane.xlu0 %3963
        %v3965 = vrcp.pop %v3961
        %v3966 = vrcp.pop %v3964
        %v3967 = vmul.f32 %v3956, %v3965
        %v3968 = vmul.f32 %v3957, %v3966
        %v3969 = vadd.f32 %v3967, 1e-10
        %v3970 = vadd.f32 %v3968, 1e-10
        %vm3971 = vcmask 130048
        %v3973 = vsel %vm3971, %v3969, 0
        %3975 = vmatprep.subr.mxu0 0.0
        %3976 = vmatpush1.msra.mxu0 0.0
        %3977 = vmatprep.subr.mxu0 0.0
        %3978 = vmatpush1.msra.mxu0 0.0
        %3979 = vmatprep.subr.mxu0 0.0
        %3980 = vmatpush1.msra.mxu0 0.0
        %3981 = vmatprep.subr.mxu0 0.0
        %3982 = vmatpush1.msra.mxu0 0.0
        %3983 = vmatprep.subr.mxu0 0.0
        %3984 = vmatpush1.msra.mxu0 0.0
        %3985 = vmatprep.subr.mxu0 0.0
        %3986 = vmatpush1.msra.mxu0 0.0
        %3987 = vmatprep.subr.mxu0 0.0
        %3988 = vmatpush1.msra.mxu0 0.0
        %3989 = vmatprep.subr.mxu0 0.0
        %3990 = vmatpush1.msra.mxu0 0.0
        %3991 = vmatprep.subr.mxu0 0.0
        %3992 = vmatpush1.msra.mxu0 0.0
        %3993 = vmatprep.subr.mxu0 0.0
        %3994 = vmatpush1.msra.mxu0 0.0
        %3995 = vmatprep.subr.mxu0 0.0
        %3996 = vmatpush1.msra.mxu0 0.0
        %3997 = vmatprep.subr.mxu0 0.0
        %3998 = vmatpush1.msra.mxu0 0.0
        %3999 = vmatprep.subr.mxu0 0.0
        %4000 = vmatpush1.msra.mxu0 0.0
        %4001 = vmatprep.subr.mxu0 0.0
        %4002 = vmatpush1.msra.mxu0 0.0
        %4003 = vmatprep.subr.mxu0 0.0
        %4004 = vmatpush1.msra.mxu0 %v3721
        %4005 = vmatprep.subr.mxu0 0.0
        %4006 = vmatpush1.msra.mxu0 %v3718
        %4007 = vmatprep.subr.mxu0 0.0
        %4008 = vmatpush2.msra.mxu0 0.0
        %4009 = vmatprep.subr.mxu0 0.0
        %4010 = vmatpush2.msra.mxu0 0.0
        %4011 = vmatprep.subr.mxu0 0.0
        %4012 = vmatpush2.msra.mxu0 0.0
        %4013 = vmatprep.subr.mxu0 0.0
        %4014 = vmatpush2.msra.mxu0 0.0
        %4015 = vmatprep.subr.mxu0 0.0
        %4016 = vmatpush2.msra.mxu0 0.0
        %4017 = vmatprep.subr.mxu0 0.0
        %4018 = vmatpush2.msra.mxu0 0.0
        %4019 = vmatprep.subr.mxu0 0.0
        %4020 = vmatpush2.msra.mxu0 0.0
        %4021 = vmatprep.subr.mxu0 0.0
        %4022 = vmatpush2.msra.mxu0 0.0
        %4023 = vmatprep.subr.mxu0 0.0
        %4024 = vmatpush2.msra.mxu0 0.0
        %4025 = vmatprep.subr.mxu0 0.0
        %4026 = vmatpush2.msra.mxu0 0.0
        %4027 = vmatprep.subr.mxu0 0.0
        %4028 = vmatpush2.msra.mxu0 0.0
        %4029 = vmatprep.subr.mxu0 0.0
        %4030 = vmatpush2.msra.mxu0 0.0
        %4031 = vmatprep.subr.mxu0 0.0
        %4032 = vmatpush2.msra.mxu0 0.0
        %4033 = vmatprep.subr.mxu0 0.0
        %4034 = vmatpush2.msra.mxu0 0.0
        %4035 = vmatprep.subr.mxu0 0.0
        %4036 = vmatpush2.msra.mxu0 0.0
        %4037 = vmatprep.subr.mxu0 0.0
        %4038 = vmatpush2.msra.mxu0 0.0
        %4039 = vmatprep.mubr.f32.mxu0 0.0
        %4040 = vmatmul.mubr.f32.gmra.mxu0 %v3973
        %v4041 = vpop.f32.mrf.mxu0
        %v4042 = vadd.f32 0.0, %v4041
        %v4043 = vpop.f32.mrf.mxu0
        %4044 = vdwg.mxu0
        %v4046 = vsel %vm3971, %v3970, 0
        %4048 = vmatprep.subr.mxu0 0.0
        %4049 = vmatpush1.msra.mxu0 0.0
        %4050 = vmatprep.subr.mxu0 0.0
        %4051 = vmatpush1.msra.mxu0 0.0
        %4052 = vmatprep.subr.mxu0 0.0
        %4053 = vmatpush1.msra.mxu0 0.0
        %4054 = vmatprep.subr.mxu0 0.0
        %4055 = vmatpush1.msra.mxu0 0.0
        %4056 = vmatprep.subr.mxu0 0.0
        %4057 = vmatpush1.msra.mxu0 0.0
        %4058 = vmatprep.subr.mxu0 0.0
        %4059 = vmatpush1.msra.mxu0 0.0
        %4060 = vmatprep.subr.mxu0 0.0
        %4061 = vmatpush1.msra.mxu0 0.0
        %4062 = vmatprep.subr.mxu0 0.0
        %4063 = vmatpush1.msra.mxu0 0.0
        %4064 = vmatprep.subr.mxu0 0.0
        %4065 = vmatpush1.msra.mxu0 0.0
        %4066 = vmatprep.subr.mxu0 0.0
        %4067 = vmatpush1.msra.mxu0 0.0
        %4068 = vmatprep.subr.mxu0 0.0
        %4069 = vmatpush1.msra.mxu0 0.0
        %4070 = vmatprep.subr.mxu0 0.0
        %4071 = vmatpush1.msra.mxu0 0.0
        %4072 = vmatprep.subr.mxu0 0.0
        %4073 = vmatpush1.msra.mxu0 0.0
        %4074 = vmatprep.subr.mxu0 0.0
        %4075 = vmatpush1.msra.mxu0 0.0
        %4076 = vmatprep.subr.mxu0 0.0
        %4077 = vmatpush1.msra.mxu0 %v3729
        %4078 = vmatprep.subr.mxu0 0.0
        %4079 = vmatpush1.msra.mxu0 %v3726
        %4080 = vmatprep.subr.mxu0 0.0
        %4081 = vmatpush2.msra.mxu0 0.0
        %4082 = vmatprep.subr.mxu0 0.0
        %4083 = vmatpush2.msra.mxu0 0.0
        %4084 = vmatprep.subr.mxu0 0.0
        %4085 = vmatpush2.msra.mxu0 0.0
        %4086 = vmatprep.subr.mxu0 0.0
        %4087 = vmatpush2.msra.mxu0 0.0
        %4088 = vmatprep.subr.mxu0 0.0
        %4089 = vmatpush2.msra.mxu0 0.0
        %4090 = vmatprep.subr.mxu0 0.0
        %4091 = vmatpush2.msra.mxu0 0.0
        %4092 = vmatprep.subr.mxu0 0.0
        %4093 = vmatpush2.msra.mxu0 0.0
        %4094 = vmatprep.subr.mxu0 0.0
        %4095 = vmatpush2.msra.mxu0 0.0
        %4096 = vmatprep.subr.mxu0 0.0
        %4097 = vmatpush2.msra.mxu0 0.0
        %4098 = vmatprep.subr.mxu0 0.0
        %4099 = vmatpush2.msra.mxu0 0.0
        %4100 = vmatprep.subr.mxu0 0.0
        %4101 = vmatpush2.msra.mxu0 0.0
        %4102 = vmatprep.subr.mxu0 0.0
        %4103 = vmatpush2.msra.mxu0 0.0
        %4104 = vmatprep.subr.mxu0 0.0
        %4105 = vmatpush2.msra.mxu0 0.0
        %4106 = vmatprep.subr.mxu0 0.0
        %4107 = vmatpush2.msra.mxu0 0.0
        %4108 = vmatprep.subr.mxu0 0.0
        %4109 = vmatpush2.msra.mxu0 0.0
        %4110 = vmatprep.subr.mxu0 0.0
        %4111 = vmatpush2.msra.mxu0 0.0
        %4112 = vmatprep.mubr.f32.mxu0 0.0
        %4113 = vmatmul.mubr.f32.gmra.mxu0 %v4046
        %v4114 = vpop.f32.mrf.mxu0
        %v4115 = vadd.f32 0.0, %v4114
        %v4116 = vpop.f32.mrf.mxu0
        %4117 = vdwg.mxu0
        %v4118 = vld [vmem:[#allocation22] sm:$0xff]
        %v4119 = vld [vmem:[#allocation22 + $0x8] sm:$0xff]
        %v4120 = vld [vmem:[#allocation22 + $0x10] sm:$0xf]
        %v4121 = vld [vmem:[#allocation22 + $0x14] sm:$0xff]
        %v4122 = vld [vmem:[#allocation22 + $0x1c] sm:$0xff]
        %v4123 = vld [vmem:[#allocation22 + $0x24] sm:$0xf]
        %v4124 = vld [vmem:[#allocation22 + $0x28] sm:$0xff]
        %v4125 = vld [vmem:[#allocation22 + $0x30] sm:$0xff]
        %v4126 = vld [vmem:[#allocation22 + $0x38] sm:$0xf]
        %v4127 = vld [vmem:[#allocation22 + $0x3c] sm:$0xff]
        %v4128 = vld [vmem:[#allocation22 + $0x44] sm:$0xff]
        %v4129 = vld [vmem:[#allocation22 + $0x4c] sm:$0xf]
        %v4130 = vpack.c.bf16 %v3781, %v3781
        %v4131 = vpack.c.bf16 %v3790, %v3790
        %v4132 = vld [vmem:[#allocation23] sm:$0xff]
        %v4133 = vld [vmem:[#allocation23 + $0x8] sm:$0xff]
        %v4134 = vld [vmem:[#allocation23 + $0x10] sm:$0xf]
        %v4135 = vld [vmem:[#allocation23 + $0x14] sm:$0xff]
        %v4136 = vld [vmem:[#allocation23 + $0x1c] sm:$0xff]
        %v4137 = vld [vmem:[#allocation23 + $0x24] sm:$0xf]
        %v4138 = vld [vmem:[#allocation23 + $0x28] sm:$0xff]
        %v4139 = vld [vmem:[#allocation23 + $0x30] sm:$0xff]
        %v4140 = vld [vmem:[#allocation23 + $0x38] sm:$0xf]
        %v4141 = vld [vmem:[#allocation23 + $0x3c] sm:$0xff]
        %v4142 = vld [vmem:[#allocation23 + $0x44] sm:$0xff]
        %v4143 = vld [vmem:[#allocation23 + $0x4c] sm:$0xf]
        %v4144 = vpack.c.bf16 %v4042, %v4042
        %v4145 = vpack.c.bf16 %v4115, %v4115
        %v4148 = vunpack.c.l.b16 %v4144
        %v4149 = vunpack.c.l.b16 %v4145
        %v4150 = vrot.slane %v4149, 7
        %vm4151 = vcmask 1041409
        %v4152 = vsel %vm4151, %v4150, %v4148
        %v4153 = vpack.c.b16 %v4152, %v4152
        %v4166 = vunpack.c.l.b16 %v4132
        %v4167 = vunpack.c.h.b16 %v4132
        %v4168 = vunpack.c.l.b16 %v4133
        %v4169 = vunpack.c.h.b16 %v4133
        %v4170 = vunpack.c.l.b16 %v4134
        %v4171 = vunpack.c.l.b16 %v4135
        %v4172 = vunpack.c.h.b16 %v4135
        %v4173 = vunpack.c.l.b16 %v4136
        %v4174 = vunpack.c.h.b16 %v4136
        %v4175 = vunpack.c.l.b16 %v4137
        %v4176 = vunpack.c.l.b16 %v4138
        %v4177 = vunpack.c.h.b16 %v4138
        %v4178 = vunpack.c.l.b16 %v4139
        %v4179 = vunpack.c.h.b16 %v4139
        %v4180 = vunpack.c.l.b16 %v4140
        %v4181 = vunpack.c.l.b16 %v4141
        %v4182 = vunpack.c.h.b16 %v4141
        %v4183 = vunpack.c.l.b16 %v4142
        %v4184 = vunpack.c.h.b16 %v4142
        %v4185 = vunpack.c.l.b16 %v4143
        %v4186 = vpack.c.b16 %v4171, %v4166
        %v4187 = vpack.c.b16 %v4172, %v4167
        %v4188 = vpack.c.b16 %v4173, %v4168
        %v4189 = vpack.c.b16 %v4174, %v4169
        %v4190 = vpack.c.b16 %v4175, %v4170
        %v4191 = vpack.c.b16 %v4181, %v4176
        %v4192 = vpack.c.b16 %v4182, %v4177
        %v4193 = vpack.c.b16 %v4183, %v4178
        %v4194 = vpack.c.b16 %v4184, %v4179
        %v4195 = vpack.c.b16 %v4185, %v4180
        %v4207 = vsel %vm916, %v4153, 0
        %4209 = vmatprep.subr.bf16.mxu0 0
        %4210 = vmatpush1.bf16.msra.mxu0 0
        %4211 = vmatprep.subr.bf16.mxu0 0
        %4212 = vmatpush1.bf16.msra.mxu0 0
        %4213 = vmatprep.subr.bf16.mxu0 0
        %4214 = vmatpush1.bf16.msra.mxu0 0
        %4215 = vmatprep.subr.bf16.mxu0 0
        %4216 = vmatpush1.bf16.msra.mxu0 0
        %4217 = vmatprep.subr.bf16.mxu0 0
        %4218 = vmatpush1.bf16.msra.mxu0 0
        %4219 = vmatprep.subr.bf16.mxu0 0
        %4220 = vmatpush1.bf16.msra.mxu0 0
        %4221 = vmatprep.subr.bf16.mxu0 %v4192
        %4222 = vmatpush1.bf16.msra.mxu0 %v4191
        %4223 = vmatprep.subr.bf16.mxu0 %v4187
        %4224 = vmatpush1.bf16.msra.mxu0 %v4186
        %4225 = vmatprep.subr.bf16.mxu0 0
        %4226 = vmatpush2.bf16.msra.mxu0 0
        %4227 = vmatprep.subr.bf16.mxu0 0
        %4228 = vmatpush2.bf16.msra.mxu0 0
        %4229 = vmatprep.subr.bf16.mxu0 0
        %4230 = vmatpush2.bf16.msra.mxu0 0
        %4231 = vmatprep.subr.bf16.mxu0 0
        %4232 = vmatpush2.bf16.msra.mxu0 0
        %4233 = vmatprep.subr.bf16.mxu0 0
        %4234 = vmatpush2.bf16.msra.mxu0 0
        %4235 = vmatprep.subr.bf16.mxu0 0
        %4236 = vmatpush2.bf16.msra.mxu0 0
        %4237 = vmatprep.subr.bf16.mxu0 0
        %4238 = vmatpush2.bf16.msra.mxu0 0
        %4239 = vmatprep.subr.bf16.mxu0 0
        %4240 = vmatpush2.bf16.msra.mxu0 0
        %4241 = vmatprep.mubr.bf16.mxu0 0
        %4242 = vmatmul.mubr.bf16.gmra.mxu0 %v4207
        %v4243 = vpop.f32.mrf.mxu0
        %v4244 = vadd.f32 0.0, %v4243
        %v4245 = vpop.f32.mrf.mxu0
        %v4246 = vadd.f32 0.0, %v4245
        %v4247 = vpop.f32.mrf.mxu0
        %v4248 = vpop.f32.mrf.mxu0
        %4249 = vdwg.mxu0
        %4250 = vmatprep.subr.bf16.mxu0 0
        %4251 = vmatpush1.bf16.msra.mxu0 0
        %4252 = vmatprep.subr.bf16.mxu0 0
        %4253 = vmatpush1.bf16.msra.mxu0 0
        %4254 = vmatprep.subr.bf16.mxu0 0
        %4255 = vmatpush1.bf16.msra.mxu0 0
        %4256 = vmatprep.subr.bf16.mxu0 0
        %4257 = vmatpush1.bf16.msra.mxu0 0
        %4258 = vmatprep.subr.bf16.mxu0 0
        %4259 = vmatpush1.bf16.msra.mxu0 0
        %4260 = vmatprep.subr.bf16.mxu0 0
        %4261 = vmatpush1.bf16.msra.mxu0 0
        %4262 = vmatprep.subr.bf16.mxu0 %v4194
        %4263 = vmatpush1.bf16.msra.mxu0 %v4193
        %4264 = vmatprep.subr.bf16.mxu0 %v4189
        %4265 = vmatpush1.bf16.msra.mxu0 %v4188
        %4266 = vmatprep.subr.bf16.mxu0 0
        %4267 = vmatpush2.bf16.msra.mxu0 0
        %4268 = vmatprep.subr.bf16.mxu0 0
        %4269 = vmatpush2.bf16.msra.mxu0 0
        %4270 = vmatprep.subr.bf16.mxu0 0
        %4271 = vmatpush2.bf16.msra.mxu0 0
        %4272 = vmatprep.subr.bf16.mxu0 0
        %4273 = vmatpush2.bf16.msra.mxu0 0
        %4274 = vmatprep.subr.bf16.mxu0 0
        %4275 = vmatpush2.bf16.msra.mxu0 0
        %4276 = vmatprep.subr.bf16.mxu0 0
        %4277 = vmatpush2.bf16.msra.mxu0 0
        %4278 = vmatprep.subr.bf16.mxu0 0
        %4279 = vmatpush2.bf16.msra.mxu0 0
        %4280 = vmatprep.subr.bf16.mxu0 0
        %4281 = vmatpush2.bf16.msra.mxu0 0
        %4282 = vmatprep.mubr.bf16.mxu0 0
        %4283 = vmatmul.mubr.bf16.gmra.mxu0 %v4207
        %v4284 = vpop.f32.mrf.mxu0
        %v4285 = vadd.f32 0.0, %v4284
        %v4286 = vpop.f32.mrf.mxu0
        %v4287 = vadd.f32 0.0, %v4286
        %v4288 = vpop.f32.mrf.mxu0
        %v4289 = vpop.f32.mrf.mxu0
        %4290 = vdwg.mxu0
        %4291 = vmatprep.subr.bf16.mxu0 0
        %4292 = vmatpush1.bf16.msra.mxu0 0
        %4293 = vmatprep.subr.bf16.mxu0 0
        %4294 = vmatpush1.bf16.msra.mxu0 0
        %4295 = vmatprep.subr.bf16.mxu0 0
        %4296 = vmatpush1.bf16.msra.mxu0 0
        %4297 = vmatprep.subr.bf16.mxu0 0
        %4298 = vmatpush1.bf16.msra.mxu0 0
        %4299 = vmatprep.subr.bf16.mxu0 0
        %4300 = vmatpush1.bf16.msra.mxu0 0
        %4301 = vmatprep.subr.bf16.mxu0 0
        %4302 = vmatpush1.bf16.msra.mxu0 0
        %4303 = vmatprep.subr.bf16.mxu0 0
        %4304 = vmatpush1.bf16.msra.mxu0 %v4195
        %4305 = vmatprep.subr.bf16.mxu0 0
        %4306 = vmatpush1.bf16.msra.mxu0 %v4190
        %4307 = vmatprep.subr.bf16.mxu0 0
        %4308 = vmatpush2.bf16.msra.mxu0 0
        %4309 = vmatprep.subr.bf16.mxu0 0
        %4310 = vmatpush2.bf16.msra.mxu0 0
        %4311 = vmatprep.subr.bf16.mxu0 0
        %4312 = vmatpush2.bf16.msra.mxu0 0
        %4313 = vmatprep.subr.bf16.mxu0 0
        %4314 = vmatpush2.bf16.msra.mxu0 0
        %4315 = vmatprep.subr.bf16.mxu0 0
        %4316 = vmatpush2.bf16.msra.mxu0 0
        %4317 = vmatprep.subr.bf16.mxu0 0
        %4318 = vmatpush2.bf16.msra.mxu0 0
        %4319 = vmatprep.subr.bf16.mxu0 0
        %4320 = vmatpush2.bf16.msra.mxu0 0
        %4321 = vmatprep.subr.bf16.mxu0 0
        %4322 = vmatpush2.bf16.msra.mxu0 0
        %4323 = vmatprep.mubr.bf16.mxu0 0
        %4324 = vmatmul.mubr.bf16.gmra.mxu0 %v4207
        %v4325 = vpop.f32.mrf.mxu0
        %v4326 = vadd.f32 0.0, %v4325
        %v4327 = vpop.f32.mrf.mxu0
        %v4328 = vpop.f32.mrf.mxu0
        %v4329 = vpop.f32.mrf.mxu0
        %4330 = vdwg.mxu0
        %v4333 = vunpack.c.l.b16 %v4130
        %v4334 = vunpack.c.l.b16 %v4131
        %v4335 = vsel %vm4151, %v4334, %v4333
        %v4336 = vpack.c.b16 %v4335, %v4335
        %v4349 = vunpack.c.l.b16 %v4118
        %v4350 = vunpack.c.h.b16 %v4118
        %v4351 = vunpack.c.l.b16 %v4119
        %v4352 = vunpack.c.h.b16 %v4119
        %v4353 = vunpack.c.l.b16 %v4120
        %v4354 = vunpack.c.l.b16 %v4121
        %v4355 = vunpack.c.h.b16 %v4121
        %v4356 = vunpack.c.l.b16 %v4122
        %v4357 = vunpack.c.h.b16 %v4122
        %v4358 = vunpack.c.l.b16 %v4123
        %v4359 = vunpack.c.l.b16 %v4124
        %v4360 = vunpack.c.h.b16 %v4124
        %v4361 = vunpack.c.l.b16 %v4125
        %v4362 = vunpack.c.h.b16 %v4125
        %v4363 = vunpack.c.l.b16 %v4126
        %v4364 = vunpack.c.l.b16 %v4127
        %v4365 = vunpack.c.h.b16 %v4127
        %v4366 = vunpack.c.l.b16 %v4128
        %v4367 = vunpack.c.h.b16 %v4128
        %v4368 = vunpack.c.l.b16 %v4129
        %v4369 = vpack.c.b16 %v4354, %v4349
        %v4370 = vpack.c.b16 %v4355, %v4350
        %v4371 = vpack.c.b16 %v4356, %v4351
        %v4372 = vpack.c.b16 %v4357, %v4352
        %v4373 = vpack.c.b16 %v4358, %v4353
        %v4374 = vpack.c.b16 %v4364, %v4359
        %v4375 = vpack.c.b16 %v4365, %v4360
        %v4376 = vpack.c.b16 %v4366, %v4361
        %v4377 = vpack.c.b16 %v4367, %v4362
        %v4378 = vpack.c.b16 %v4368, %v4363
        %v4390 = vsel %vm916, %v4336, 0
        %4392 = vmatprep.subr.bf16.mxu0 0
        %4393 = vmatpush1.bf16.msra.mxu0 0
        %4394 = vmatprep.subr.bf16.mxu0 0
        %4395 = vmatpush1.bf16.msra.mxu0 0
        %4396 = vmatprep.subr.bf16.mxu0 0
        %4397 = vmatpush1.bf16.msra.mxu0 0
        %4398 = vmatprep.subr.bf16.mxu0 0
        %4399 = vmatpush1.bf16.msra.mxu0 0
        %4400 = vmatprep.subr.bf16.mxu0 0
        %4401 = vmatpush1.bf16.msra.mxu0 0
        %4402 = vmatprep.subr.bf16.mxu0 0
        %4403 = vmatpush1.bf16.msra.mxu0 0
        %4404 = vmatprep.subr.bf16.mxu0 %v4375
        %4405 = vmatpush1.bf16.msra.mxu0 %v4374
        %4406 = vmatprep.subr.bf16.mxu0 %v4370
        %4407 = vmatpush1.bf16.msra.mxu0 %v4369
        %4408 = vmatprep.subr.bf16.mxu0 0
        %4409 = vmatpush2.bf16.msra.mxu0 0
        %4410 = vmatprep.subr.bf16.mxu0 0
        %4411 = vmatpush2.bf16.msra.mxu0 0
        %4412 = vmatprep.subr.bf16.mxu0 0
        %4413 = vmatpush2.bf16.msra.mxu0 0
        %4414 = vmatprep.subr.bf16.mxu0 0
        %4415 = vmatpush2.bf16.msra.mxu0 0
        %4416 = vmatprep.subr.bf16.mxu0 0
        %4417 = vmatpush2.bf16.msra.mxu0 0
        %4418 = vmatprep.subr.bf16.mxu0 0
        %4419 = vmatpush2.bf16.msra.mxu0 0
        %4420 = vmatprep.subr.bf16.mxu0 0
        %4421 = vmatpush2.bf16.msra.mxu0 0
        %4422 = vmatprep.subr.bf16.mxu0 0
        %4423 = vmatpush2.bf16.msra.mxu0 0
        %4424 = vmatprep.mubr.bf16.mxu0 0
        %4425 = vmatmul.mubr.bf16.gmra.mxu0 %v4390
        %v4426 = vpop.f32.mrf.mxu0
        %v4427 = vadd.f32 %v4244, %v4426
        %v4428 = vpop.f32.mrf.mxu0
        %v4429 = vadd.f32 %v4246, %v4428
        %v4430 = vpop.f32.mrf.mxu0
        %v4431 = vpop.f32.mrf.mxu0
        %4432 = vdwg.mxu0
        %4433 = vmatprep.subr.bf16.mxu0 0
        %4434 = vmatpush1.bf16.msra.mxu0 0
        %4435 = vmatprep.subr.bf16.mxu0 0
        %4436 = vmatpush1.bf16.msra.mxu0 0
        %4437 = vmatprep.subr.bf16.mxu0 0
        %4438 = vmatpush1.bf16.msra.mxu0 0
        %4439 = vmatprep.subr.bf16.mxu0 0
        %4440 = vmatpush1.bf16.msra.mxu0 0
        %4441 = vmatprep.subr.bf16.mxu0 0
        %4442 = vmatpush1.bf16.msra.mxu0 0
        %4443 = vmatprep.subr.bf16.mxu0 0
        %4444 = vmatpush1.bf16.msra.mxu0 0
        %4445 = vmatprep.subr.bf16.mxu0 %v4377
        %4446 = vmatpush1.bf16.msra.mxu0 %v4376
        %4447 = vmatprep.subr.bf16.mxu0 %v4372
        %4448 = vmatpush1.bf16.msra.mxu0 %v4371
        %4449 = vmatprep.subr.bf16.mxu0 0
        %4450 = vmatpush2.bf16.msra.mxu0 0
        %4451 = vmatprep.subr.bf16.mxu0 0
        %4452 = vmatpush2.bf16.msra.mxu0 0
        %4453 = vmatprep.subr.bf16.mxu0 0
        %4454 = vmatpush2.bf16.msra.mxu0 0
        %4455 = vmatprep.subr.bf16.mxu0 0
        %4456 = vmatpush2.bf16.msra.mxu0 0
        %4457 = vmatprep.subr.bf16.mxu0 0
        %4458 = vmatpush2.bf16.msra.mxu0 0
        %4459 = vmatprep.subr.bf16.mxu0 0
        %4460 = vmatpush2.bf16.msra.mxu0 0
        %4461 = vmatprep.subr.bf16.mxu0 0
        %4462 = vmatpush2.bf16.msra.mxu0 0
        %4463 = vmatprep.subr.bf16.mxu0 0
        %4464 = vmatpush2.bf16.msra.mxu0 0
        %4465 = vmatprep.mubr.bf16.mxu0 0
        %4466 = vmatmul.mubr.bf16.gmra.mxu0 %v4390
        %v4467 = vpop.f32.mrf.mxu0
        %v4468 = vadd.f32 %v4285, %v4467
        %v4469 = vpop.f32.mrf.mxu0
        %v4470 = vadd.f32 %v4287, %v4469
        %v4471 = vpop.f32.mrf.mxu0
        %v4472 = vpop.f32.mrf.mxu0
        %4473 = vdwg.mxu0
        %4474 = vmatprep.subr.bf16.mxu0 0
        %4475 = vmatpush1.bf16.msra.mxu0 0
        %4476 = vmatprep.subr.bf16.mxu0 0
        %4477 = vmatpush1.bf16.msra.mxu0 0
        %4478 = vmatprep.subr.bf16.mxu0 0
        %4479 = vmatpush1.bf16.msra.mxu0 0
        %4480 = vmatprep.subr.bf16.mxu0 0
        %4481 = vmatpush1.bf16.msra.mxu0 0
        %4482 = vmatprep.subr.bf16.mxu0 0
        %4483 = vmatpush1.bf16.msra.mxu0 0
        %4484 = vmatprep.subr.bf16.mxu0 0
        %4485 = vmatpush1.bf16.msra.mxu0 0
        %4486 = vmatprep.subr.bf16.mxu0 0
        %4487 = vmatpush1.bf16.msra.mxu0 %v4378
        %4488 = vmatprep.subr.bf16.mxu0 0
        %4489 = vmatpush1.bf16.msra.mxu0 %v4373
        %4490 = vmatprep.subr.bf16.mxu0 0
        %4491 = vmatpush2.bf16.msra.mxu0 0
        %4492 = vmatprep.subr.bf16.mxu0 0
        %4493 = vmatpush2.bf16.msra.mxu0 0
        %4494 = vmatprep.subr.bf16.mxu0 0
        %4495 = vmatpush2.bf16.msra.mxu0 0
        %4496 = vmatprep.subr.bf16.mxu0 0
        %4497 = vmatpush2.bf16.msra.mxu0 0
        %4498 = vmatprep.subr.bf16.mxu0 0
        %4499 = vmatpush2.bf16.msra.mxu0 0
        %4500 = vmatprep.subr.bf16.mxu0 0
        %4501 = vmatpush2.bf16.msra.mxu0 0
        %4502 = vmatprep.subr.bf16.mxu0 0
        %4503 = vmatpush2.bf16.msra.mxu0 0
        %4504 = vmatprep.subr.bf16.mxu0 0
        %4505 = vmatpush2.bf16.msra.mxu0 0
        %4506 = vmatprep.mubr.bf16.mxu0 0
        %4507 = vmatmul.mubr.bf16.gmra.mxu0 %v4390
        %v4508 = vpop.f32.mrf.mxu0
        %v4509 = vadd.f32 %v4326, %v4508
        %v4510 = vpop.f32.mrf.mxu0
        %v4511 = vpop.f32.mrf.mxu0
        %v4512 = vpop.f32.mrf.mxu0
        %4513 = vdwg.mxu0
        %v4514 = vld [vmem:[%s18] sm:$0x1f]
        %v4516 = vlaneseq
        %v4517 = vshrl.u32 %v4516, 7
        %v4518 = vsub.s32 0, %v4517
        %v4519 = vrot.slane %v4514, %v4518
        %v4520 = vlaneseq
        %v4521 = vshrl.u32 %v4520, 7
        %v4522 = vsub.s32 1, %v4521
        %v4523 = vrot.slane %v4514, %v4522
        %v4524 = vlaneseq
        %v4525 = vshrl.u32 %v4524, 7
        %v4526 = vsub.s32 2, %v4525
        %v4527 = vrot.slane %v4514, %v4526
        %v4528 = vlaneseq
        %v4529 = vshrl.u32 %v4528, 7
        %v4530 = vsub.s32 3, %v4529
        %v4531 = vrot.slane %v4514, %v4530
        %v4532 = vlaneseq
        %v4533 = vshrl.u32 %v4532, 7
        %v4534 = vsub.s32 4, %v4533
        %v4535 = vrot.slane %v4514, %v4534
        %v4541 = vadd.f32 %v4427, %v4519
        %v4542 = vadd.f32 %v4429, %v4523
        %v4543 = vadd.f32 %v4468, %v4527
        %v4544 = vadd.f32 %v4470, %v4531
        %v4545 = vadd.f32 %v4509, %v4535
        %v4551 = vcombine.low %v4541, %v4542
        %v4552 = vcombine.low %v4543, %v4544
        %v4554 = vunpack.c.l.s4 1966171168
        %v4555 = vunpack.c.0.s8 %v4554
        %v4556 = vlaneseq
        %v4557 = vshrl.u32 %v4556, 7
        %v4558 = vsub.s32 %v4555, %v4557
        %v4559 = vrot.slane %v4551, %v4558
        %v4561 = vunpack.c.l.s4 1966171168
        %v4562 = vunpack.c.0.s8 %v4561
        %v4563 = vlaneseq
        %v4564 = vshrl.u32 %v4563, 7
        %v4565 = vsub.s32 %v4562, %v4564
        %v4566 = vrot.slane %v4552, %v4565
        %v4568 = vunpack.c.l.s4 1966171168
        %v4569 = vunpack.c.0.s8 %v4568
        %v4570 = vlaneseq
        %v4571 = vshrl.u32 %v4570, 7
        %v4572 = vsub.s32 %v4569, %v4571
        %v4573 = vrot.slane %v4545, %v4572
        %v4574 = vcombine.low %v4559, %v4566
        %v4575 = vcombine.high %v4559, %v4566
        %v4576 = vcombine.high %v4573, %v4573
        %v4578 = vunpack.c.l.s4 1966171168
        %v4579 = vunpack.c.0.s8 %v4578
        %v4580 = vlaneseq
        %v4581 = vshrl.u32 %v4580, 7
        %v4582 = vsub.s32 %v4579, %v4581
        %v4583 = vrot.slane %v4574, %v4582
        %v4585 = vunpack.c.l.s4 1966171168
        %v4586 = vunpack.c.0.s8 %v4585
        %v4587 = vlaneseq
        %v4588 = vshrl.u32 %v4587, 7
        %v4589 = vsub.s32 %v4586, %v4588
        %v4590 = vrot.slane %v4575, %v4589
        %v4592 = vunpack.c.l.s4 1966171168
        %v4593 = vunpack.c.0.s8 %v4592
        %v4594 = vlaneseq
        %v4595 = vshrl.u32 %v4594, 7
        %v4596 = vsub.s32 %v4593, %v4595
        %v4597 = vrot.slane %v4573, %v4596
        %v4599 = vunpack.c.l.s4 1966171168
        %v4600 = vunpack.c.0.s8 %v4599
        %v4601 = vlaneseq
        %v4602 = vshrl.u32 %v4601, 7
        %v4603 = vsub.s32 %v4600, %v4602
        %v4604 = vrot.slane %v4576, %v4603
        %v4605 = vcombine.low %v4583, %v4597
        %v4606 = vcombine.low %v4590, %v4604
        %v4609 = vlaneseq
        %vm4610 = vcmp.ge.s32.totalorder %v4609, 0
        %vm4611 = vcmp.lt.s32.totalorder %v4609, 640
        %vm4612 = vmand %vm4610, %vm4611
        %4613 = vst.msk [vmem:[%s862] sm:$0x1f] %vm4612, %v4605
        %4614 = vst.msk [vmem:[%s862 + $0x5] sm:$0x1f] %vm4612, %v4606
        %s4615 = sand.u32 %s464, 1
        %s4616 = scalar_lea.sflag [#allocation4], %s4615
        %s4617 = sand.u32 %s464, 1
        %s4618 = smul.addr %s4617, 10
        %s4619 = scalar_lea.vmem [#allocation25], %s4618
        %p4620 = scmp.lt.s32.totalorder %s47, 1
        %s4621 = scalar_select %p4620, %s47, 1
        %s4622 = scalar_lea.vmem %s20, %s4621
        // Predicated region
        $region153: #{tpu_custom_call.1} parent=95 // pred_check
          %p4623 = pneg %p474
        $region154: #{tpu_custom_call.1} parent=95 // pred_check_branch
          %4625 = sbr.rel (%p4623) target = $region156
        $region155: #{tpu_custom_call.1} parent=95 // pred_region
          %s4626 = smul.u32 2, %s47
          %s4628 = ssub.s32 160, 160
          %4629 = vsyncadd %s4616, %s4628
          %s4630 = smul.addr %s4626, 5
          %s4631 = smul.addr %s4630, 16
          %s4632 = scalar_lea.hbm %s19, %s4631
          %s4633 = sshll.u32 %s4619, 4
          %s4634 = int_to_ptr.vmem [resolvable:$true] %s4633
          %4639 = dma.vmem_to_hbm [thread:$0]  %s4634, 160, %s4632, %s4616, 80, 80, 5
        $region156: #{tpu_custom_call.1} parent=95 // pred_fallthru
          _
        // Predicated region
        $region157: #{tpu_custom_call.1} parent=95 // pred_check
          %p4640 = pneg %p500
        $region158: #{tpu_custom_call.1} parent=95 // pred_check_branch
          %4642 = sbr.rel (%p4640) target = $region160
        $region159: #{tpu_custom_call.1} parent=95 // pred_region
          _
        $region160: #{tpu_custom_call.1} parent=95 // pred_fallthru
          _
      $region96: #{tpu_custom_call.1} parent=5 // pred_fallthru
        _
      %p4643 = scmp.le.s32.totalorder 2, %s42
      // Predicated region
      $region161: #{tpu_custom_call.1} parent=5 // pred_check
        %p4644 = pneg %p4643
      $region162: #{tpu_custom_call.1} parent=5 // pred_check_branch
        %4646 = sbr.rel (%p4644) target = $region164
      $region163: #{tpu_custom_call.1} parent=5 // pred_region
        %s4647 = ssub.s32 %s42, 2
        // Predicated region
        $region165: #{tpu_custom_call.1} parent=163 // pred_check
          %p4648 = pneg %p480
        $region166: #{tpu_custom_call.1} parent=163 // pred_check_branch
          %4650 = sbr.rel (%p4648) target = $region168
        $region167: #{tpu_custom_call.1} parent=163 // pred_region
          %s4651 = sand.u32 %s465, 1
          %s4652 = scalar_lea.sflag [#allocation4], %s4651
          %s4653 = sand.u32 %s465, 1
          %s4654 = smul.addr %s4653, 10
          %s4655 = scalar_lea.vmem [#allocation25], %s4654
          %4656 = dma.done %s4652, 160
        $region168: #{tpu_custom_call.1} parent=163 // pred_fallthru
          _
        // Predicated region
        $region169: #{tpu_custom_call.1} parent=163 // pred_check
          %p4657 = pneg %p506
        $region170: #{tpu_custom_call.1} parent=163 // pred_check_branch
          %4659 = sbr.rel (%p4657) target = $region172
        $region171: #{tpu_custom_call.1} parent=163 // pred_region
          %p4660 = scmp.lt.s32.totalorder %s48, 1
          %s4661 = scalar_select %p4660, %s48, 1
          %s4662 = scalar_lea.vmem %s20, %s4661
        $region172: #{tpu_custom_call.1} parent=163 // pred_fallthru
          _
      $region164: #{tpu_custom_call.1} parent=5 // pred_fallthru
        _
    $region6: #{tpu_custom_call.1} parent=1 // loop_footer
      %s46 = sadd.s32 1, %s42
    $region7: #{tpu_custom_call.1} parent=1 // loop_footer_branch
      %41 = sbr.rel target = $region3
    $region8: #{tpu_custom_call.1} parent=1 // loop_exit
      _
    %4663 = vsyncpa [#allocation3], 1
    %s4664 = scalar_lea.sflag [#allocation3], 1
    %4665 = vsyncpa %s4664, 1
    %4666 = vsyncpa [#allocation6], 1
    %s4667 = scalar_lea.sflag [#allocation6], 1
    %4668 = vsyncpa %s4667, 1
    %4669 = vsyncpa [#allocation9], 1
    %4670 = vsyncpa [#allocation12], 1
    %4671 = vsyncpa [#allocation15], 1
    %4672 = vsyncpa [#allocation18], 1
    %4673 = vsyncpa [#allocation21], 1
    %4674 = vsyncpa [#allocation24], 1
    %4675 = vsyncpa [#allocation4], 1
    %s4676 = scalar_lea.sflag [#allocation4], 1
    %4677 = vsyncpa %s4676, 1

</llo_original>
